<compile_context>
chip_gen: v7x
topology: tpu7x:2x2x1
jax: 0.10.0
libtpu: 0.0.40
codegen_flags: <defaults>
</compile_context>

<pallas_src>
import functools

import jax
import jax.numpy as jnp
import numpy as np
from jax.experimental import pallas as pl
from jax.experimental.pallas import tpu as pltpu


def _down_kernel(x_ref, w1_ref, b1_ref, w2_ref, b2_ref, o_ref, y1_sc, y2_sc, *,
                 block_n, S, W, Cin, Cout, M1, M2, Hp, Wp):
    """One grid step: `block_n` images in a flattened-spatial ("wide") layout.

    x_ref : (block_n*S, Cin)        flattened NHWC rows, per-image row stride S
    w1_ref: (9*Cin, Cout)           conv1 weights, tap-major (kh, kw, ci) rows
    b1_ref: (1, Cout)
    w2_ref: (9*Cout, Cout)          conv2 weights
    b2_ref: (1, Cout)
    o_ref : (block_n, Hp, Wp, Cout) pooled output
    y1_sc : (M1, Cout) VMEM         conv1+ReLU intermediate (wide rows)
    y2_sc : (M2, Cout) VMEM         conv2+ReLU intermediate (wide rows)

    "Wide" trick: the conv is evaluated for every flat row r, i.e. also for the
    columns whose 3x3 windows wrap into the next image row.  Those rows hold
    garbage but are never read by the next stage or by the pool, so every tap is
    one contiguous row-shifted slice and one MXU matmul -- no reshapes.
    """

    def conv3x3_relu(src_ref, w_ref, b_ref, M, C):
        # 9 row-shifted views, each contracted on the MXU against a (C, Cout) slab.
        acc = None
        for kh in range(3):
            for kw in range(3):
                t = kh * 3 + kw
                lhs = src_ref[kh * W + kw: kh * W + kw + M, :]     # (M, C)
                rhs = w_ref[t * C:(t + 1) * C, :]                  # (C, Cout)
                d = jnp.dot(lhs, rhs, preferred_element_type=jnp.float32)
                acc = d if acc is None else acc + d
        return jnp.maximum(acc + b_ref[...], 0.0)

    # ---- conv1 (3x3 valid) + ReLU ------------------------------------------
    y1_sc[...] = conv3x3_relu(x_ref, w1_ref, b1_ref, M1, Cin)

    # ---- conv2 (3x3 valid) + ReLU ------------------------------------------
    y2_sc[...] = conv3x3_relu(y1_sc, w2_ref, b2_ref, M2, Cout)

    # ---- MaxPool2d(2, 2) ----------------------------------------------------
    # W direction: adjacent flat rows (even / odd column) via two stride-2 loads.
    Mzw = M2 // 2
    zw = jnp.maximum(y2_sc[pl.ds(0, Mzw, 2), :],
                     y2_sc[pl.ds(1, Mzw, 2), :])                   # (Mzw, Cout)
    # H direction: max of the two image-row slabs, one contiguous row-slab store each.
    Wh = W // 2
    Sh = S // 2
    for b in range(block_n):
        for ip in range(Hp):
            r0 = b * Sh + (2 * ip) * Wh
            r1 = r0 + Wh
            o_ref[b, ip] = jnp.maximum(zw[r0:r0 + Wp, :], zw[r1:r1 + Wp, :])


def _round_up(v, m):
    return -(-v // m) * m


def _pick_block_n(N, S, Cin, Cout, H1, H2, W, Hp, Wp):
    """Largest batch chunk that (a) keeps >= 2 grid steps when possible (megacore)
    and (b) keeps the estimated per-step VMEM footprint under a safe budget."""
    lane_cin = _round_up(max(Cin, 1), 128)
    lane_cout = _round_up(max(Cout, 1), 128)

    def vmem_bytes(bn):
        m1 = (bn - 1) * S + H1 * W + 2
        m2 = (bn - 1) * S + H2 * W
        x_blk = bn * S * lane_cin * 2                 # input tile, double-buffered
        out_blk = bn * _round_up(Hp * Wp, 8) * lane_cout * 2
        scr = (_round_up(m1, 8) + _round_up(m2, 8)) * lane_cout
        return 4 * (x_blk + out_blk + scr)

    budget = 24 * 1024 * 1024                         # < default 32 MiB scoped VMEM
    for d in range(N, 0, -1):
        if N % d != 0:
            continue
        if vmem_bytes(d) > budget:
            continue
        if N // d >= 2:
            return d
    return 1


def down_forward(x_nchw, w1_oihw, b1, w2_oihw, b2, block_n=None):
    """Pallas implementation of Down.forward. Inputs/outputs follow PyTorch NCHW/OIHW."""
    x = jnp.transpose(x_nchw, (0, 2, 3, 1)).astype(jnp.float32)        # NHWC
    N, H, W, Cin = x.shape
    Cout = int(w1_oihw.shape[0])
    assert W % 2 == 0, "kernel assumes an even input width"
    H1, W1 = H - 2, W - 2
    H2, W2 = H1 - 2, W1 - 2
    Hp, Wp = H2 // 2, W2 // 2

    # Flattened-spatial layout: per-image row stride S (multiple of 8 sublanes,
    # >= H*W + 4 so the widest 3x3 tap slice of the last image stays in bounds).
    S = _round_up(H * W + 4, 8)

    if block_n is None:
        block_n = _pick_block_n(N, S, Cin, Cout, H1, H2, W, Hp, Wp)
    assert N % block_n == 0

    xf = x.reshape(N, H * W, Cin)
    xf = jnp.pad(xf, ((0, 0), (0, S - H * W), (0, 0)))
    xf = xf.reshape(N * S, Cin)

    # Weights as dense 2-D MXU operands, tap-major rows: row (kh*3+kw)*C + ci.
    w1m = jnp.transpose(w1_oihw, (2, 3, 1, 0)).reshape(9 * Cin, Cout).astype(jnp.float32)
    w2m = jnp.transpose(w2_oihw, (2, 3, 1, 0)).reshape(9 * Cout, Cout).astype(jnp.float32)
    b1r = jnp.asarray(b1, jnp.float32).reshape(1, Cout)
    b2r = jnp.asarray(b2, jnp.float32).reshape(1, Cout)

    # Wide row counts (the +2 on M1 keeps conv2's last tap slice in bounds).
    M1 = (block_n - 1) * S + H1 * W + 2
    M2 = (block_n - 1) * S + H2 * W

    kernel = functools.partial(
        _down_kernel, block_n=block_n, S=S, W=W, Cin=Cin, Cout=Cout,
        M1=M1, M2=M2, Hp=Hp, Wp=Wp)

    out_nhwc = pl.pallas_call(
        kernel,
        out_shape=jax.ShapeDtypeStruct((N, Hp, Wp, Cout), jnp.float32),
        grid=(N // block_n,),
        in_specs=[
            pl.BlockSpec((block_n * S, Cin), lambda n: (n, 0)),
            pl.BlockSpec((9 * Cin, Cout), lambda n: (0, 0)),
            pl.BlockSpec((1, Cout), lambda n: (0, 0)),
            pl.BlockSpec((9 * Cout, Cout), lambda n: (0, 0)),
            pl.BlockSpec((1, Cout), lambda n: (0, 0)),
        ],
        out_specs=pl.BlockSpec((block_n, Hp, Wp, Cout), lambda n: (n, 0, 0, 0)),
        scratch_shapes=[pltpu.VMEM((M1, Cout), jnp.float32),
                        pltpu.VMEM((M2, Cout), jnp.float32)],
        compiler_params=pltpu.CompilerParams(
            dimension_semantics=("parallel",)),
        # TODO(synk): for very large U-Net tiles (H,W >= 512) add H-tiling with a
        # 4-row halo per grid step instead of whole-image wide rows.
    )(xf, w1m, b1r, w2m, b2r)

    return jnp.transpose(out_nhwc, (0, 3, 1, 2))                       # back to NCHW


def down_reference(x_nchw, w1_oihw, b1, w2_oihw, b2):
    """Pure-JAX reference matching the PyTorch module exactly."""
    def conv_relu(x, w, b):
        y = jax.lax.conv_general_dilated(
            x, w, window_strides=(1, 1), padding="VALID",
            dimension_numbers=("NCHW", "OIHW", "NCHW"))
        return jax.nn.relu(y + b[None, :, None, None])

    y = conv_relu(conv_relu(x_nchw, w1_oihw, b1), w2_oihw, b2)
    return jax.lax.reduce_window(
        y, -jnp.inf, jax.lax.max,
        window_dimensions=(1, 1, 2, 2), window_strides=(1, 1, 2, 2),
        padding="VALID")


if __name__ == "__main__":
    N, Cin, Cout, H, W = 2, 4, 8, 16, 16

    key = jax.random.PRNGKey(0)
    kx, kw1, kb1, kw2, kb2 = jax.random.split(key, 5)
    x = jax.random.normal(kx, (N, Cin, H, W), jnp.float32)
    w1 = jax.random.normal(kw1, (Cout, Cin, 3, 3), jnp.float32) * 0.2
    b1 = jax.random.normal(kb1, (Cout,), jnp.float32) * 0.1
    w2 = jax.random.normal(kw2, (Cout, Cout, 3, 3), jnp.float32) * 0.2
    b2 = jax.random.normal(kb2, (Cout,), jnp.float32) * 0.1

    out = down_forward(x, w1, b1, w2, b2)
    jax.block_until_ready(out)

    ref = down_reference(x, w1, b1, w2, b2)
    np.testing.assert_allclose(np.asarray(out), np.asarray(ref),
                               rtol=1e-4, atol=1e-4)
    assert out.shape == (N, Cout, (H - 4) // 2, (W - 4) // 2)

    print("KERNEL_OK")
</pallas_src>

<mosaic_0001>
module attributes {stable_mosaic.version = 11 : i64} {
  func.func @_down_kernel(%arg0: i32, %arg1: memref<264x4xf32, #tpu.memory_space<vmem>>, %arg2: memref<36x8xf32, #tpu.memory_space<vmem>>, %arg3: memref<1x8xf32, #tpu.memory_space<vmem>>, %arg4: memref<72x8xf32, #tpu.memory_space<vmem>>, %arg5: memref<1x8xf32, #tpu.memory_space<vmem>>, %arg6: memref<1x6x6x8xf32, #tpu.memory_space<vmem>>, %arg7: memref<226x8xf32, #tpu.memory_space<vmem>>, %arg8: memref<192x8xf32, #tpu.memory_space<vmem>>) attributes {dimension_semantics = [#tpu.dimension_semantics<parallel>], iteration_bounds = array<i64: 2>, scalar_prefetch = 0 : i64, scratch_operands = 2 : i64, tpu.core_type = #tpu.core_type<tc>, window_params = [{transform_indices = @transform_0, window_bounds = array<i64: 264, 4>}, {pipeline_mode = #tpu.pipeline_mode<synchronous>, transform_indices = @transform_1, window_bounds = array<i64: 36, 8>}, {pipeline_mode = #tpu.pipeline_mode<synchronous>, transform_indices = @transform_2, window_bounds = array<i64: 1, 8>}, {pipeline_mode = #tpu.pipeline_mode<synchronous>, transform_indices = @transform_3, window_bounds = array<i64: 72, 8>}, {pipeline_mode = #tpu.pipeline_mode<synchronous>, transform_indices = @transform_4, window_bounds = array<i64: 1, 8>}, {transform_indices = @transform_5, window_bounds = array<i64: 1, 6, 6, 8>}]} {
    %c0 = arith.constant 0 : index
    %c0_0 = arith.constant 0 : index
    %0 = vector.load %arg1[%c0, %c0_0] : memref<264x4xf32, #tpu.memory_space<vmem>>, vector<226x4xf32>
    %c0_1 = arith.constant 0 : index
    %c0_2 = arith.constant 0 : index
    %1 = vector.load %arg2[%c0_1, %c0_2] : memref<36x8xf32, #tpu.memory_space<vmem>>, vector<4x8xf32>
    %cst = arith.constant dense<0.000000e+00> : vector<226x8xf32>
    %2 = tpu.matmul %0, %1, %cst {dimension_numbers = #tpu.dot_dimension_numbers<[1], [0], [0], [1], [0, 0, 1, 1], [], []>} : vector<226x4xf32>, vector<4x8xf32>, vector<226x8xf32> -> vector<226x8xf32>
    %c1 = arith.constant 1 : index
    %c0_3 = arith.constant 0 : index
    %3 = vector.load %arg1[%c1, %c0_3] : memref<264x4xf32, #tpu.memory_space<vmem>>, vector<226x4xf32>
    %c4 = arith.constant 4 : index
    %c0_4 = arith.constant 0 : index
    %4 = vector.load %arg2[%c4, %c0_4] : memref<36x8xf32, #tpu.memory_space<vmem>>, vector<4x8xf32>
    %cst_5 = arith.constant dense<0.000000e+00> : vector<226x8xf32>
    %5 = tpu.matmul %3, %4, %cst_5 {dimension_numbers = #tpu.dot_dimension_numbers<[1], [0], [0], [1], [0, 0, 1, 1], [], []>} : vector<226x4xf32>, vector<4x8xf32>, vector<226x8xf32> -> vector<226x8xf32>
    %6 = arith.addf %2, %5 : vector<226x8xf32>
    %c2 = arith.constant 2 : index
    %c0_6 = arith.constant 0 : index
    %7 = vector.load %arg1[%c2, %c0_6] : memref<264x4xf32, #tpu.memory_space<vmem>>, vector<226x4xf32>
    %c8 = arith.constant 8 : index
    %c0_7 = arith.constant 0 : index
    %8 = vector.load %arg2[%c8, %c0_7] : memref<36x8xf32, #tpu.memory_space<vmem>>, vector<4x8xf32>
    %cst_8 = arith.constant dense<0.000000e+00> : vector<226x8xf32>
    %9 = tpu.matmul %7, %8, %cst_8 {dimension_numbers = #tpu.dot_dimension_numbers<[1], [0], [0], [1], [0, 0, 1, 1], [], []>} : vector<226x4xf32>, vector<4x8xf32>, vector<226x8xf32> -> vector<226x8xf32>
    %10 = arith.addf %6, %9 : vector<226x8xf32>
    %c16 = arith.constant 16 : index
    %c0_9 = arith.constant 0 : index
    %11 = vector.load %arg1[%c16, %c0_9] : memref<264x4xf32, #tpu.memory_space<vmem>>, vector<226x4xf32>
    %c12 = arith.constant 12 : index
    %c0_10 = arith.constant 0 : index
    %12 = vector.load %arg2[%c12, %c0_10] : memref<36x8xf32, #tpu.memory_space<vmem>>, vector<4x8xf32>
    %cst_11 = arith.constant dense<0.000000e+00> : vector<226x8xf32>
    %13 = tpu.matmul %11, %12, %cst_11 {dimension_numbers = #tpu.dot_dimension_numbers<[1], [0], [0], [1], [0, 0, 1, 1], [], []>} : vector<226x4xf32>, vector<4x8xf32>, vector<226x8xf32> -> vector<226x8xf32>
    %14 = arith.addf %10, %13 : vector<226x8xf32>
    %c17 = arith.constant 17 : index
    %c0_12 = arith.constant 0 : index
    %15 = vector.load %arg1[%c17, %c0_12] : memref<264x4xf32, #tpu.memory_space<vmem>>, vector<226x4xf32>
    %c16_13 = arith.constant 16 : index
    %c0_14 = arith.constant 0 : index
    %16 = vector.load %arg2[%c16_13, %c0_14] : memref<36x8xf32, #tpu.memory_space<vmem>>, vector<4x8xf32>
    %cst_15 = arith.constant dense<0.000000e+00> : vector<226x8xf32>
    %17 = tpu.matmul %15, %16, %cst_15 {dimension_numbers = #tpu.dot_dimension_numbers<[1], [0], [0], [1], [0, 0, 1, 1], [], []>} : vector<226x4xf32>, vector<4x8xf32>, vector<226x8xf32> -> vector<226x8xf32>
    %18 = arith.addf %14, %17 : vector<226x8xf32>
    %c18 = arith.constant 18 : index
    %c0_16 = arith.constant 0 : index
    %19 = vector.load %arg1[%c18, %c0_16] : memref<264x4xf32, #tpu.memory_space<vmem>>, vector<226x4xf32>
    %c20 = arith.constant 20 : index
    %c0_17 = arith.constant 0 : index
    %20 = vector.load %arg2[%c20, %c0_17] : memref<36x8xf32, #tpu.memory_space<vmem>>, vector<4x8xf32>
    %cst_18 = arith.constant dense<0.000000e+00> : vector<226x8xf32>
    %21 = tpu.matmul %19, %20, %cst_18 {dimension_numbers = #tpu.dot_dimension_numbers<[1], [0], [0], [1], [0, 0, 1, 1], [], []>} : vector<226x4xf32>, vector<4x8xf32>, vector<226x8xf32> -> vector<226x8xf32>
    %22 = arith.addf %18, %21 : vector<226x8xf32>
    %c32 = arith.constant 32 : index
    %c0_19 = arith.constant 0 : index
    %23 = vector.load %arg1[%c32, %c0_19] : memref<264x4xf32, #tpu.memory_space<vmem>>, vector<226x4xf32>
    %c24 = arith.constant 24 : index
    %c0_20 = arith.constant 0 : index
    %24 = vector.load %arg2[%c24, %c0_20] : memref<36x8xf32, #tpu.memory_space<vmem>>, vector<4x8xf32>
    %cst_21 = arith.constant dense<0.000000e+00> : vector<226x8xf32>
    %25 = tpu.matmul %23, %24, %cst_21 {dimension_numbers = #tpu.dot_dimension_numbers<[1], [0], [0], [1], [0, 0, 1, 1], [], []>} : vector<226x4xf32>, vector<4x8xf32>, vector<226x8xf32> -> vector<226x8xf32>
    %26 = arith.addf %22, %25 : vector<226x8xf32>
    %c33 = arith.constant 33 : index
    %c0_22 = arith.constant 0 : index
    %27 = vector.load %arg1[%c33, %c0_22] : memref<264x4xf32, #tpu.memory_space<vmem>>, vector<226x4xf32>
    %c28 = arith.constant 28 : index
    %c0_23 = arith.constant 0 : index
    %28 = vector.load %arg2[%c28, %c0_23] : memref<36x8xf32, #tpu.memory_space<vmem>>, vector<4x8xf32>
    %cst_24 = arith.constant dense<0.000000e+00> : vector<226x8xf32>
    %29 = tpu.matmul %27, %28, %cst_24 {dimension_numbers = #tpu.dot_dimension_numbers<[1], [0], [0], [1], [0, 0, 1, 1], [], []>} : vector<226x4xf32>, vector<4x8xf32>, vector<226x8xf32> -> vector<226x8xf32>
    %30 = arith.addf %26, %29 : vector<226x8xf32>
    %c34 = arith.constant 34 : index
    %c0_25 = arith.constant 0 : index
    %31 = vector.load %arg1[%c34, %c0_25] : memref<264x4xf32, #tpu.memory_space<vmem>>, vector<226x4xf32>
    %c32_26 = arith.constant 32 : index
    %c0_27 = arith.constant 0 : index
    %32 = vector.load %arg2[%c32_26, %c0_27] : memref<36x8xf32, #tpu.memory_space<vmem>>, vector<4x8xf32>
    %cst_28 = arith.constant dense<0.000000e+00> : vector<226x8xf32>
    %33 = tpu.matmul %31, %32, %cst_28 {dimension_numbers = #tpu.dot_dimension_numbers<[1], [0], [0], [1], [0, 0, 1, 1], [], []>} : vector<226x4xf32>, vector<4x8xf32>, vector<226x8xf32> -> vector<226x8xf32>
    %34 = arith.addf %30, %33 : vector<226x8xf32>
    %c0_29 = arith.constant 0 : index
    %c0_30 = arith.constant 0 : index
    %35 = vector.load %arg3[%c0_29, %c0_30] : memref<1x8xf32, #tpu.memory_space<vmem>>, vector<1x8xf32>
    %36 = vector.broadcast %35 : vector<1x8xf32> to vector<226x8xf32>
    %37 = arith.addf %34, %36 : vector<226x8xf32>
    %cst_31 = arith.constant 0.000000e+00 : f32
    %38 = vector.broadcast %cst_31 : f32 to vector<226x8xf32>
    %39 = arith.maximumf %37, %38 : vector<226x8xf32>
    %c0_32 = arith.constant 0 : index
    %c0_33 = arith.constant 0 : index
    %40 = vector.load %arg7[%c0_32, %c0_33] : memref<226x8xf32, #tpu.memory_space<vmem>>, vector<226x8xf32>
    tpu.vector_store %arg7[%c0_32, %c0_33], %39 {strides = array<i32>} : memref<226x8xf32, #tpu.memory_space<vmem>>, vector<226x8xf32>,
    %c0_34 = arith.constant 0 : index
    %c0_35 = arith.constant 0 : index
    %41 = vector.load %arg7[%c0_34, %c0_35] : memref<226x8xf32, #tpu.memory_space<vmem>>, vector<192x8xf32>
    %c0_36 = arith.constant 0 : index
    %c0_37 = arith.constant 0 : index
    %42 = vector.load %arg4[%c0_36, %c0_37] : memref<72x8xf32, #tpu.memory_space<vmem>>, vector<8x8xf32>
    %cst_38 = arith.constant dense<0.000000e+00> : vector<192x8xf32>
    %43 = tpu.matmul %41, %42, %cst_38 {dimension_numbers = #tpu.dot_dimension_numbers<[1], [0], [0], [1], [0, 0, 1, 1], [], []>} : vector<192x8xf32>, vector<8x8xf32>, vector<192x8xf32> -> vector<192x8xf32>
    %c1_39 = arith.constant 1 : index
    %c0_40 = arith.constant 0 : index
    %44 = vector.load %arg7[%c1_39, %c0_40] : memref<226x8xf32, #tpu.memory_space<vmem>>, vector<192x8xf32>
    %c8_41 = arith.constant 8 : index
    %c0_42 = arith.constant 0 : index
    %45 = vector.load %arg4[%c8_41, %c0_42] : memref<72x8xf32, #tpu.memory_space<vmem>>, vector<8x8xf32>
    %cst_43 = arith.constant dense<0.000000e+00> : vector<192x8xf32>
    %46 = tpu.matmul %44, %45, %cst_43 {dimension_numbers = #tpu.dot_dimension_numbers<[1], [0], [0], [1], [0, 0, 1, 1], [], []>} : vector<192x8xf32>, vector<8x8xf32>, vector<192x8xf32> -> vector<192x8xf32>
    %47 = arith.addf %43, %46 : vector<192x8xf32>
    %c2_44 = arith.constant 2 : index
    %c0_45 = arith.constant 0 : index
    %48 = vector.load %arg7[%c2_44, %c0_45] : memref<226x8xf32, #tpu.memory_space<vmem>>, vector<192x8xf32>
    %c16_46 = arith.constant 16 : index
    %c0_47 = arith.constant 0 : index
    %49 = vector.load %arg4[%c16_46, %c0_47] : memref<72x8xf32, #tpu.memory_space<vmem>>, vector<8x8xf32>
    %cst_48 = arith.constant dense<0.000000e+00> : vector<192x8xf32>
    %50 = tpu.matmul %48, %49, %cst_48 {dimension_numbers = #tpu.dot_dimension_numbers<[1], [0], [0], [1], [0, 0, 1, 1], [], []>} : vector<192x8xf32>, vector<8x8xf32>, vector<192x8xf32> -> vector<192x8xf32>
    %51 = arith.addf %47, %50 : vector<192x8xf32>
    %c16_49 = arith.constant 16 : index
    %c0_50 = arith.constant 0 : index
    %52 = vector.load %arg7[%c16_49, %c0_50] : memref<226x8xf32, #tpu.memory_space<vmem>>, vector<192x8xf32>
    %c24_51 = arith.constant 24 : index
    %c0_52 = arith.constant 0 : index
    %53 = vector.load %arg4[%c24_51, %c0_52] : memref<72x8xf32, #tpu.memory_space<vmem>>, vector<8x8xf32>
    %cst_53 = arith.constant dense<0.000000e+00> : vector<192x8xf32>
    %54 = tpu.matmul %52, %53, %cst_53 {dimension_numbers = #tpu.dot_dimension_numbers<[1], [0], [0], [1], [0, 0, 1, 1], [], []>} : vector<192x8xf32>, vector<8x8xf32>, vector<192x8xf32> -> vector<192x8xf32>
    %55 = arith.addf %51, %54 : vector<192x8xf32>
    %c17_54 = arith.constant 17 : index
    %c0_55 = arith.constant 0 : index
    %56 = vector.load %arg7[%c17_54, %c0_55] : memref<226x8xf32, #tpu.memory_space<vmem>>, vector<192x8xf32>
    %c32_56 = arith.constant 32 : index
    %c0_57 = arith.constant 0 : index
    %57 = vector.load %arg4[%c32_56, %c0_57] : memref<72x8xf32, #tpu.memory_space<vmem>>, vector<8x8xf32>
    %cst_58 = arith.constant dense<0.000000e+00> : vector<192x8xf32>
    %58 = tpu.matmul %56, %57, %cst_58 {dimension_numbers = #tpu.dot_dimension_numbers<[1], [0], [0], [1], [0, 0, 1, 1], [], []>} : vector<192x8xf32>, vector<8x8xf32>, vector<192x8xf32> -> vector<192x8xf32>
    %59 = arith.addf %55, %58 : vector<192x8xf32>
    %c18_59 = arith.constant 18 : index
    %c0_60 = arith.constant 0 : index
    %60 = vector.load %arg7[%c18_59, %c0_60] : memref<226x8xf32, #tpu.memory_space<vmem>>, vector<192x8xf32>
    %c40 = arith.constant 40 : index
    %c0_61 = arith.constant 0 : index
    %61 = vector.load %arg4[%c40, %c0_61] : memref<72x8xf32, #tpu.memory_space<vmem>>, vector<8x8xf32>
    %cst_62 = arith.constant dense<0.000000e+00> : vector<192x8xf32>
    %62 = tpu.matmul %60, %61, %cst_62 {dimension_numbers = #tpu.dot_dimension_numbers<[1], [0], [0], [1], [0, 0, 1, 1], [], []>} : vector<192x8xf32>, vector<8x8xf32>, vector<192x8xf32> -> vector<192x8xf32>
    %63 = arith.addf %59, %62 : vector<192x8xf32>
    %c32_63 = arith.constant 32 : index
    %c0_64 = arith.constant 0 : index
    %64 = vector.load %arg7[%c32_63, %c0_64] : memref<226x8xf32, #tpu.memory_space<vmem>>, vector<192x8xf32>
    %c48 = arith.constant 48 : index
    %c0_65 = arith.constant 0 : index
    %65 = vector.load %arg4[%c48, %c0_65] : memref<72x8xf32, #tpu.memory_space<vmem>>, vector<8x8xf32>
    %cst_66 = arith.constant dense<0.000000e+00> : vector<192x8xf32>
    %66 = tpu.matmul %64, %65, %cst_66 {dimension_numbers = #tpu.dot_dimension_numbers<[1], [0], [0], [1], [0, 0, 1, 1], [], []>} : vector<192x8xf32>, vector<8x8xf32>, vector<192x8xf32> -> vector<192x8xf32>
    %67 = arith.addf %63, %66 : vector<192x8xf32>
    %c33_67 = arith.constant 33 : index
    %c0_68 = arith.constant 0 : index
    %68 = vector.load %arg7[%c33_67, %c0_68] : memref<226x8xf32, #tpu.memory_space<vmem>>, vector<192x8xf32>
    %c56 = arith.constant 56 : index
    %c0_69 = arith.constant 0 : index
    %69 = vector.load %arg4[%c56, %c0_69] : memref<72x8xf32, #tpu.memory_space<vmem>>, vector<8x8xf32>
    %cst_70 = arith.constant dense<0.000000e+00> : vector<192x8xf32>
    %70 = tpu.matmul %68, %69, %cst_70 {dimension_numbers = #tpu.dot_dimension_numbers<[1], [0], [0], [1], [0, 0, 1, 1], [], []>} : vector<192x8xf32>, vector<8x8xf32>, vector<192x8xf32> -> vector<192x8xf32>
    %71 = arith.addf %67, %70 : vector<192x8xf32>
    %c34_71 = arith.constant 34 : index
    %c0_72 = arith.constant 0 : index
    %72 = vector.load %arg7[%c34_71, %c0_72] : memref<226x8xf32, #tpu.memory_space<vmem>>, vector<192x8xf32>
    %c64 = arith.constant 64 : index
    %c0_73 = arith.constant 0 : index
    %73 = vector.load %arg4[%c64, %c0_73] : memref<72x8xf32, #tpu.memory_space<vmem>>, vector<8x8xf32>
    %cst_74 = arith.constant dense<0.000000e+00> : vector<192x8xf32>
    %74 = tpu.matmul %72, %73, %cst_74 {dimension_numbers = #tpu.dot_dimension_numbers<[1], [0], [0], [1], [0, 0, 1, 1], [], []>} : vector<192x8xf32>, vector<8x8xf32>, vector<192x8xf32> -> vector<192x8xf32>
    %75 = arith.addf %71, %74 : vector<192x8xf32>
    %c0_75 = arith.constant 0 : index
    %c0_76 = arith.constant 0 : index
    %76 = vector.load %arg5[%c0_75, %c0_76] : memref<1x8xf32, #tpu.memory_space<vmem>>, vector<1x8xf32>
    %77 = vector.broadcast %76 : vector<1x8xf32> to vector<192x8xf32>
    %78 = arith.addf %75, %77 : vector<192x8xf32>
    %cst_77 = arith.constant 0.000000e+00 : f32
    %79 = vector.broadcast %cst_77 : f32 to vector<192x8xf32>
    %80 = arith.maximumf %78, %79 : vector<192x8xf32>
    %c0_78 = arith.constant 0 : index
    %c0_79 = arith.constant 0 : index
    %81 = vector.load %arg8[%c0_78, %c0_79] : memref<192x8xf32, #tpu.memory_space<vmem>>, vector<192x8xf32>
    tpu.vector_store %arg8[%c0_78, %c0_79], %80 {strides = array<i32>} : memref<192x8xf32, #tpu.memory_space<vmem>>, vector<192x8xf32>,
    %c0_80 = arith.constant 0 : index
    %c0_81 = arith.constant 0 : index
    %82 = tpu.strided_load %arg8[%c0_80, %c0_81] {strides = array<i32: 2, 1>} : memref<192x8xf32, #tpu.memory_space<vmem>>, vector<96x8xf32>
    %c1_82 = arith.constant 1 : index
    %c0_83 = arith.constant 0 : index
    %83 = tpu.strided_load %arg8[%c1_82, %c0_83] {strides = array<i32: 2, 1>} : memref<192x8xf32, #tpu.memory_space<vmem>>, vector<96x8xf32>
    %84 = arith.maximumf %82, %83 : vector<96x8xf32>
    %85 = vector.extract_strided_slice %84 {offsets = [0, 0], sizes = [6, 8], strides = [1, 1]} : vector<96x8xf32> to vector<6x8xf32>
    %86 = vector.extract_strided_slice %84 {offsets = [8, 0], sizes = [6, 8], strides = [1, 1]} : vector<96x8xf32> to vector<6x8xf32>
    %87 = arith.maximumf %85, %86 : vector<6x8xf32>
    %c0_84 = arith.constant 0 : index
    %c0_85 = arith.constant 0 : index
    %c0_86 = arith.constant 0 : index
    %c0_87 = arith.constant 0 : index
    %88 = vector.load %arg6[%c0_84, %c0_85, %c0_86, %c0_87] : memref<1x6x6x8xf32, #tpu.memory_space<vmem>>, vector<1x1x6x8xf32>
    %89 = vector.shape_cast %88 : vector<1x1x6x8xf32> to vector<6x8xf32>
    %90 = vector.shape_cast %87 : vector<6x8xf32> to vector<1x1x6x8xf32>
    tpu.vector_store %arg6[%c0_84, %c0_85, %c0_86, %c0_87], %90 {strides = array<i32>} : memref<1x6x6x8xf32, #tpu.memory_space<vmem>>, vector<1x1x6x8xf32>,
    %91 = vector.extract_strided_slice %84 {offsets = [16, 0], sizes = [6, 8], strides = [1, 1]} : vector<96x8xf32> to vector<6x8xf32>
    %92 = vector.extract_strided_slice %84 {offsets = [24, 0], sizes = [6, 8], strides = [1, 1]} : vector<96x8xf32> to vector<6x8xf32>
    %93 = arith.maximumf %91, %92 : vector<6x8xf32>
    %c0_88 = arith.constant 0 : index
    %c1_89 = arith.constant 1 : index
    %c0_90 = arith.constant 0 : index
    %c0_91 = arith.constant 0 : index
    %94 = vector.load %arg6[%c0_88, %c1_89, %c0_90, %c0_91] : memref<1x6x6x8xf32, #tpu.memory_space<vmem>>, vector<1x1x6x8xf32>
    %95 = vector.shape_cast %94 : vector<1x1x6x8xf32> to vector<6x8xf32>
    %96 = vector.shape_cast %93 : vector<6x8xf32> to vector<1x1x6x8xf32>
    tpu.vector_store %arg6[%c0_88, %c1_89, %c0_90, %c0_91], %96 {strides = array<i32>} : memref<1x6x6x8xf32, #tpu.memory_space<vmem>>, vector<1x1x6x8xf32>,
    %97 = vector.extract_strided_slice %84 {offsets = [32, 0], sizes = [6, 8], strides = [1, 1]} : vector<96x8xf32> to vector<6x8xf32>
    %98 = vector.extract_strided_slice %84 {offsets = [40, 0], sizes = [6, 8], strides = [1, 1]} : vector<96x8xf32> to vector<6x8xf32>
    %99 = arith.maximumf %97, %98 : vector<6x8xf32>
    %c0_92 = arith.constant 0 : index
    %c2_93 = arith.constant 2 : index
    %c0_94 = arith.constant 0 : index
    %c0_95 = arith.constant 0 : index
    %100 = vector.load %arg6[%c0_92, %c2_93, %c0_94, %c0_95] : memref<1x6x6x8xf32, #tpu.memory_space<vmem>>, vector<1x1x6x8xf32>
    %101 = vector.shape_cast %100 : vector<1x1x6x8xf32> to vector<6x8xf32>
    %102 = vector.shape_cast %99 : vector<6x8xf32> to vector<1x1x6x8xf32>
    tpu.vector_store %arg6[%c0_92, %c2_93, %c0_94, %c0_95], %102 {strides = array<i32>} : memref<1x6x6x8xf32, #tpu.memory_space<vmem>>, vector<1x1x6x8xf32>,
    %103 = vector.extract_strided_slice %84 {offsets = [48, 0], sizes = [6, 8], strides = [1, 1]} : vector<96x8xf32> to vector<6x8xf32>
    %104 = vector.extract_strided_slice %84 {offsets = [56, 0], sizes = [6, 8], strides = [1, 1]} : vector<96x8xf32> to vector<6x8xf32>
    %105 = arith.maximumf %103, %104 : vector<6x8xf32>
    %c0_96 = arith.constant 0 : index
    %c3 = arith.constant 3 : index
    %c0_97 = arith.constant 0 : index
    %c0_98 = arith.constant 0 : index
    %106 = vector.load %arg6[%c0_96, %c3, %c0_97, %c0_98] : memref<1x6x6x8xf32, #tpu.memory_space<vmem>>, vector<1x1x6x8xf32>
    %107 = vector.shape_cast %106 : vector<1x1x6x8xf32> to vector<6x8xf32>
    %108 = vector.shape_cast %105 : vector<6x8xf32> to vector<1x1x6x8xf32>
    tpu.vector_store %arg6[%c0_96, %c3, %c0_97, %c0_98], %108 {strides = array<i32>} : memref<1x6x6x8xf32, #tpu.memory_space<vmem>>, vector<1x1x6x8xf32>,
    %109 = vector.extract_strided_slice %84 {offsets = [64, 0], sizes = [6, 8], strides = [1, 1]} : vector<96x8xf32> to vector<6x8xf32>
    %110 = vector.extract_strided_slice %84 {offsets = [72, 0], sizes = [6, 8], strides = [1, 1]} : vector<96x8xf32> to vector<6x8xf32>
    %111 = arith.maximumf %109, %110 : vector<6x8xf32>
    %c0_99 = arith.constant 0 : index
    %c4_100 = arith.constant 4 : index
    %c0_101 = arith.constant 0 : index
    %c0_102 = arith.constant 0 : index
    %112 = vector.load %arg6[%c0_99, %c4_100, %c0_101, %c0_102] : memref<1x6x6x8xf32, #tpu.memory_space<vmem>>, vector<1x1x6x8xf32>
    %113 = vector.shape_cast %112 : vector<1x1x6x8xf32> to vector<6x8xf32>
    %114 = vector.shape_cast %111 : vector<6x8xf32> to vector<1x1x6x8xf32>
    tpu.vector_store %arg6[%c0_99, %c4_100, %c0_101, %c0_102], %114 {strides = array<i32>} : memref<1x6x6x8xf32, #tpu.memory_space<vmem>>, vector<1x1x6x8xf32>,
    %115 = vector.extract_strided_slice %84 {offsets = [80, 0], sizes = [6, 8], strides = [1, 1]} : vector<96x8xf32> to vector<6x8xf32>
    %116 = vector.extract_strided_slice %84 {offsets = [88, 0], sizes = [6, 8], strides = [1, 1]} : vector<96x8xf32> to vector<6x8xf32>
    %117 = arith.maximumf %115, %116 : vector<6x8xf32>
    %c0_103 = arith.constant 0 : index
    %c5 = arith.constant 5 : index
    %c0_104 = arith.constant 0 : index
    %c0_105 = arith.constant 0 : index
    %118 = vector.load %arg6[%c0_103, %c5, %c0_104, %c0_105] : memref<1x6x6x8xf32, #tpu.memory_space<vmem>>, vector<1x1x6x8xf32>
    %119 = vector.shape_cast %118 : vector<1x1x6x8xf32> to vector<6x8xf32>
    %120 = vector.shape_cast %117 : vector<6x8xf32> to vector<1x1x6x8xf32>
    tpu.vector_store %arg6[%c0_103, %c5, %c0_104, %c0_105], %120 {strides = array<i32>} : memref<1x6x6x8xf32, #tpu.memory_space<vmem>>, vector<1x1x6x8xf32>,
    return
  }
  func.func @transform_0(%arg0: i32) -> (i32, i32) {
    %c0_i32 = arith.constant 0 : i32
    %c0_i32_0 = arith.constant 0 : i32
    return %arg0, %c0_i32 : i32, i32
  }
  func.func @transform_1(%arg0: i32) -> (i32, i32) {
    %c0_i32 = arith.constant 0 : i32
    %c0_i32_0 = arith.constant 0 : i32
    %c0_i32_1 = arith.constant 0 : i32
    return %c0_i32, %c0_i32_0 : i32, i32
  }
  func.func @transform_2(%arg0: i32) -> (i32, i32) {
    %c0_i32 = arith.constant 0 : i32
    %c0_i32_0 = arith.constant 0 : i32
    %c0_i32_1 = arith.constant 0 : i32
    return %c0_i32, %c0_i32_0 : i32, i32
  }
  func.func @transform_3(%arg0: i32) -> (i32, i32) {
    %c0_i32 = arith.constant 0 : i32
    %c0_i32_0 = arith.constant 0 : i32
    %c0_i32_1 = arith.constant 0 : i32
    return %c0_i32, %c0_i32_0 : i32, i32
  }
  func.func @transform_4(%arg0: i32) -> (i32, i32) {
    %c0_i32 = arith.constant 0 : i32
    %c0_i32_0 = arith.constant 0 : i32
    %c0_i32_1 = arith.constant 0 : i32
    return %c0_i32, %c0_i32_0 : i32, i32
  }
  func.func @transform_5(%arg0: i32) -> (i32, i32, i32, i32) {
    %c0_i32 = arith.constant 0 : i32
    %c0_i32_0 = arith.constant 0 : i32
    %c0_i32_1 = arith.constant 0 : i32
    %c0_i32_2 = arith.constant 0 : i32
    return %arg0, %c0_i32, %c0_i32_0, %c0_i32_1 : i32, i32, i32, i32
  }
}

</mosaic_0001>

<llo_original>
// kernel: tpu_custom_call.1
$region0: #{tpu_custom_call.1}
  #allocation0 [shape = 'u32[]', space=smem, size = 0x4, offset = 0x4, fixed_abs, tag = 'smem constant byte address 0x4 - core index']
  #allocation1 [shape = 'u32[144,128]{1,0:T(1,128)}', space=vmem, size = 0x12000, scoped, tag = 'internal scratch']
  #allocation2 [shape = 'f32[226,8]{1,0:T(8,128)}', space=vmem, size = 0x1d000, scoped, tag = 'scratch operand']
  #allocation3 [shape = 'f32[192,8]{1,0:T(8,128)}', space=vmem, size = 0x18000, scoped, tag = 'scratch operand']
  %s0 = inlined_call_operand.vmem [shape: f32[528,4], index: 0, kind: input, shape index: {}]
  %s1 = inlined_call_operand.vmem [shape: f32[36,8], index: 1, kind: input, shape index: {}]
  %s2 = inlined_call_operand.vmem [shape: f32[1,8], index: 2, kind: input, shape index: {}]
  %s3 = inlined_call_operand.vmem [shape: f32[72,8], index: 3, kind: input, shape index: {}]
  %s4 = inlined_call_operand.vmem [shape: f32[1,8], index: 4, kind: input, shape index: {}]
  %s5 = inlined_call_operand.vmem [shape: f32[2,6,6,8], index: 5, kind: output, shape index: {}]
  %s6 = sld [smem:[#allocation0]]
  $region53: #{tpu_custom_call.1} parent=0
    _
  %s8 = ssub.s32 1, %s6
  %s9 = scalar_select 0, %s8, %s6
  loop: start=0, step=1, limit=4
  $region2: #{tpu_custom_call.1} parent=0 // loop_pre_header
    _
  $region3: #{tpu_custom_call.1} parent=0 // loop_header
    %s11 = sphi 0, %s15
    %p12 = scmp.ge.s32.totalorder %s11, 4
    %s21 = sphi 0, %s23
    %s24 = sphi 0, %s21
    %s25 = sphi 0, %s24
    %s41 = sphi 0, %s25
    %s45 = sphi 0, %s45
    %s47 = sphi 0, %s45
    %s48 = sphi 0, %s47
    %s62 = sphi 0, %s48
    %s66 = sphi 0, %s66
    %s68 = sphi 0, %s66
    %s69 = sphi 0, %s68
    %s83 = sphi 0, %s69
    %s87 = sphi 0, %s87
    %s89 = sphi 0, %s87
    %s90 = sphi 0, %s89
    %s104 = sphi 0, %s90
    %s108 = sphi 0, %s108
    %s110 = sphi 0, %s108
    %s111 = sphi 0, %s110
    %s125 = sphi 0, %s111
    %s131 = sphi 0, %s133
    %s134 = sphi 0, %s131
    %s135 = sphi 0, %s134
    %s151 = sphi 0, %s135
  $region4: #{tpu_custom_call.1} parent=0 // loop_header_branch
    %14 = sbr.rel (%p12) target = $region8
  $region5: #{tpu_custom_call.1} parent=0 // loop_body
    %s16 = ssub.s32 %s11, 1
    %s17 = ssub.s32 %s11, 2
    %s18 = sadd.s32 %s11, 1
    %s19 = ssub.s32 %s11, %s18
    %p20 = scmp.eq.s32.totalorder %s19, 0
    %s22 = sadd.s32 %s21, 1
    %s23 = scalar_select %p20, %s21, %s22
    %p26 = pneg %p20
    %p27 = scmp.eq.s32.totalorder %s11, 1
    %p28 = por %p26, %p27
    %p29 = scmp.ne.s32.totalorder %s21, %s24
    %p30 = scmp.eq.s32.totalorder %s11, 0
    %p31 = por %p29, %p30
    %p32 = scmp.ne.s32.totalorder %s21, %s24
    %p33 = scmp.eq.s32.totalorder %s16, 1
    %p34 = por %p32, %p33
    %p35 = scmp.ne.s32.totalorder %s24, %s25
    %p36 = scmp.eq.s32.totalorder %s16, 0
    %p37 = por %p35, %p36
    %p38 = scmp.ne.s32.totalorder %s24, %s25
    %p39 = scmp.eq.s32.totalorder %s17, 1
    %p40 = por %p38, %p39
    %p42 = scmp.ne.s32.totalorder %s25, %s41
    %p43 = scmp.eq.s32.totalorder %s17, 0
    %p44 = por %p42, %p43
    %s46 = sadd.s32 %s45, 1
    %p49 = scmp.eq.s32.totalorder %s11, 1
    %p50 = scmp.ne.s32.totalorder %s45, %s47
    %p51 = scmp.eq.s32.totalorder %s11, 0
    %p52 = por %p50, %p51
    %p53 = scmp.ne.s32.totalorder %s45, %s47
    %p54 = scmp.eq.s32.totalorder %s16, 1
    %p55 = por %p53, %p54
    %p56 = scmp.ne.s32.totalorder %s47, %s48
    %p57 = scmp.eq.s32.totalorder %s16, 0
    %p58 = por %p56, %p57
    %p59 = scmp.ne.s32.totalorder %s47, %s48
    %p60 = scmp.eq.s32.totalorder %s17, 1
    %p61 = por %p59, %p60
    %p63 = scmp.ne.s32.totalorder %s48, %s62
    %p64 = scmp.eq.s32.totalorder %s17, 0
    %p65 = por %p63, %p64
    %s67 = sadd.s32 %s66, 1
    %p70 = scmp.eq.s32.totalorder %s11, 1
    %p71 = scmp.ne.s32.totalorder %s66, %s68
    %p72 = scmp.eq.s32.totalorder %s11, 0
    %p73 = por %p71, %p72
    %p74 = scmp.ne.s32.totalorder %s66, %s68
    %p75 = scmp.eq.s32.totalorder %s16, 1
    %p76 = por %p74, %p75
    %p77 = scmp.ne.s32.totalorder %s68, %s69
    %p78 = scmp.eq.s32.totalorder %s16, 0
    %p79 = por %p77, %p78
    %p80 = scmp.ne.s32.totalorder %s68, %s69
    %p81 = scmp.eq.s32.totalorder %s17, 1
    %p82 = por %p80, %p81
    %p84 = scmp.ne.s32.totalorder %s69, %s83
    %p85 = scmp.eq.s32.totalorder %s17, 0
    %p86 = por %p84, %p85
    %s88 = sadd.s32 %s87, 1
    %p91 = scmp.eq.s32.totalorder %s11, 1
    %p92 = scmp.ne.s32.totalorder %s87, %s89
    %p93 = scmp.eq.s32.totalorder %s11, 0
    %p94 = por %p92, %p93
    %p95 = scmp.ne.s32.totalorder %s87, %s89
    %p96 = scmp.eq.s32.totalorder %s16, 1
    %p97 = por %p95, %p96
    %p98 = scmp.ne.s32.totalorder %s89, %s90
    %p99 = scmp.eq.s32.totalorder %s16, 0
    %p100 = por %p98, %p99
    %p101 = scmp.ne.s32.totalorder %s89, %s90
    %p102 = scmp.eq.s32.totalorder %s17, 1
    %p103 = por %p101, %p102
    %p105 = scmp.ne.s32.totalorder %s90, %s104
    %p106 = scmp.eq.s32.totalorder %s17, 0
    %p107 = por %p105, %p106
    %s109 = sadd.s32 %s108, 1
    %p112 = scmp.eq.s32.totalorder %s11, 1
    %p113 = scmp.ne.s32.totalorder %s108, %s110
    %p114 = scmp.eq.s32.totalorder %s11, 0
    %p115 = por %p113, %p114
    %p116 = scmp.ne.s32.totalorder %s108, %s110
    %p117 = scmp.eq.s32.totalorder %s16, 1
    %p118 = por %p116, %p117
    %p119 = scmp.ne.s32.totalorder %s110, %s111
    %p120 = scmp.eq.s32.totalorder %s16, 0
    %p121 = por %p119, %p120
    %p122 = scmp.ne.s32.totalorder %s110, %s111
    %p123 = scmp.eq.s32.totalorder %s17, 1
    %p124 = por %p122, %p123
    %p126 = scmp.ne.s32.totalorder %s111, %s125
    %p127 = scmp.eq.s32.totalorder %s17, 0
    %p128 = por %p126, %p127
    %s129 = ssub.s32 %s11, %s18
    %p130 = scmp.eq.s32.totalorder %s129, 0
    %s132 = sadd.s32 %s131, 1
    %s133 = scalar_select %p130, %s131, %s132
    %p136 = pneg %p130
    %p137 = scmp.eq.s32.totalorder %s11, 1
    %p138 = por %p136, %p137
    %p139 = scmp.ne.s32.totalorder %s131, %s134
    %p140 = scmp.eq.s32.totalorder %s11, 0
    %p141 = por %p139, %p140
    %p142 = scmp.ne.s32.totalorder %s131, %s134
    %p143 = scmp.eq.s32.totalorder %s16, 1
    %p144 = por %p142, %p143
    %p145 = scmp.ne.s32.totalorder %s134, %s135
    %p146 = scmp.eq.s32.totalorder %s16, 0
    %p147 = por %p145, %p146
    %p148 = scmp.ne.s32.totalorder %s134, %s135
    %p149 = scmp.eq.s32.totalorder %s17, 1
    %p150 = por %p148, %p149
    %p152 = scmp.ne.s32.totalorder %s135, %s151
    %p153 = scmp.eq.s32.totalorder %s17, 0
    %p154 = por %p152, %p153
    %p155 = scmp.le.s32.totalorder 1, %s11
    %p156 = scmp.lt.s32.totalorder %s11, 3
    %p157 = pnand %p155, %p156
    %p158 = pneg %p157
    // Predicated region
    $region9: #{tpu_custom_call.1} parent=5 // pred_check
      _
    $region10: #{tpu_custom_call.1} parent=5 // pred_check_branch
      %160 = sbr.rel (%p157) target = $region12
    $region11: #{tpu_custom_call.1} parent=5 // pred_region
      %s161 = ssub.s32 %s11, 1
      // Predicated region
      $region13: #{tpu_custom_call.1} parent=11 // pred_check
        %p162 = pneg %p58
      $region14: #{tpu_custom_call.1} parent=11 // pred_check_branch
        %164 = sbr.rel (%p162) target = $region16
      $region15: #{tpu_custom_call.1} parent=11 // pred_region
        _
      $region16: #{tpu_custom_call.1} parent=11 // pred_fallthru
        _
      // Predicated region
      $region17: #{tpu_custom_call.1} parent=11 // pred_check
        %p165 = pneg %p79
      $region18: #{tpu_custom_call.1} parent=11 // pred_check_branch
        %167 = sbr.rel (%p165) target = $region20
      $region19: #{tpu_custom_call.1} parent=11 // pred_region
        _
      $region20: #{tpu_custom_call.1} parent=11 // pred_fallthru
        _
      // Predicated region
      $region21: #{tpu_custom_call.1} parent=11 // pred_check
        %p168 = pneg %p100
      $region22: #{tpu_custom_call.1} parent=11 // pred_check_branch
        %170 = sbr.rel (%p168) target = $region24
      $region23: #{tpu_custom_call.1} parent=11 // pred_region
        _
      $region24: #{tpu_custom_call.1} parent=11 // pred_fallthru
        _
      // Predicated region
      $region25: #{tpu_custom_call.1} parent=11 // pred_check
        %p171 = pneg %p121
      $region26: #{tpu_custom_call.1} parent=11 // pred_check_branch
        %173 = sbr.rel (%p171) target = $region28
      $region27: #{tpu_custom_call.1} parent=11 // pred_region
        _
      $region28: #{tpu_custom_call.1} parent=11 // pred_fallthru
        _
    $region12: #{tpu_custom_call.1} parent=5 // pred_fallthru
      _
    %p174 = scmp.lt.s32.totalorder %s11, 2
    // Predicated region
    $region29: #{tpu_custom_call.1} parent=5 // pred_check
      %p175 = pneg %p174
    $region30: #{tpu_custom_call.1} parent=5 // pred_check_branch
      %177 = sbr.rel (%p175) target = $region32
    $region31: #{tpu_custom_call.1} parent=5 // pred_region
      // Predicated region
      $region33: #{tpu_custom_call.1} parent=31 // pred_check
        %p178 = pneg %p31
      $region34: #{tpu_custom_call.1} parent=31 // pred_check_branch
        %180 = sbr.rel (%p178) target = $region36
      $region35: #{tpu_custom_call.1} parent=31 // pred_region
        %s181 = smul.u32 33, %s11
        %p182 = scmp.lt.s32.totalorder %s181, 65
        %s183 = scalar_select %p182, %s181, 65
        %s184 = smul.addr %s183, 8
        %s185 = scalar_lea.vmem %s0, %s184
        %s186 = smul.u32 33, %s11
      $region36: #{tpu_custom_call.1} parent=31 // pred_fallthru
        _
    $region32: #{tpu_custom_call.1} parent=5 // pred_fallthru
      _
    %p187 = scmp.le.s32.totalorder 1, %s11
    %p188 = scmp.lt.s32.totalorder %s11, 3
    %p189 = pnand %p187, %p188
    %p190 = pneg %p189
    // Predicated region
    $region37: #{tpu_custom_call.1} parent=5 // pred_check
      _
    $region38: #{tpu_custom_call.1} parent=5 // pred_check_branch
      %192 = sbr.rel (%p189) target = $region40
    $region39: #{tpu_custom_call.1} parent=5 // pred_region
      %s193 = ssub.s32 %s11, 1
      %s194 = smul.u32 33, %s16
      %p195 = scmp.lt.s32.totalorder %s194, 65
      %s196 = scalar_select %p195, %s194, 65
      %s197 = smul.addr %s196, 8
      %s198 = scalar_lea.vmem %s0, %s197
      %p199 = pneg %p37
      %p200 = pneg %p34
      %p201 = pneg %p58
      %p202 = pneg %p55
      %p203 = pneg %p79
      %p204 = pneg %p76
      %p205 = pneg %p100
      %p206 = pneg %p97
      %p207 = pneg %p121
      %p208 = pneg %p118
      %p209 = pneg %p147
      %p210 = pneg %p144
      %p211 = scmp.lt.s32.totalorder %s16, 1
      %s212 = scalar_select %p211, %s16, 1
      %s213 = smul.addr %s212, 6
      %s214 = smul.addr %s213, 8
      %s215 = scalar_lea.vmem %s5, %s214
      %s216 = smul.u32 33, %s16
      %p217 = scmp.lt.s32.totalorder %s216, 65
      %s218 = scalar_select %p217, %s216, 65
      %s219 = smul.addr %s218, 8
      %s220 = scalar_lea.vmem %s0, %s219
      %s221 = smul.u32 33, %s16
      %p222 = scmp.lt.s32.totalorder %s16, 1
      %s223 = scalar_select %p222, %s16, 1
      %s224 = smul.addr %s223, 6
      %s225 = smul.addr %s224, 8
      %s226 = scalar_lea.vmem %s5, %s225
      %v227 = vld [vmem:[%s220] sm:$0xff]
      %v228 = vld [vmem:[%s220 + $0x8] sm:$0xff]
      %v229 = vld [vmem:[%s220 + $0x10] sm:$0xff]
      %v230 = vld [vmem:[%s220 + $0x18] sm:$0xff]
      %v231 = vld [vmem:[%s220 + $0x20] sm:$0xff]
      %v232 = vld [vmem:[%s220 + $0x28] sm:$0xff]
      %v233 = vld [vmem:[%s220 + $0x30] sm:$0xff]
      %v234 = vld [vmem:[%s220 + $0x38] sm:$0xff]
      %v235 = vld [vmem:[%s220 + $0x40] sm:$0xff]
      %v236 = vld [vmem:[%s220 + $0x48] sm:$0xff]
      %v237 = vld [vmem:[%s220 + $0x50] sm:$0xff]
      %v238 = vld [vmem:[%s220 + $0x58] sm:$0xff]
      %v239 = vld [vmem:[%s220 + $0x60] sm:$0xff]
      %v240 = vld [vmem:[%s220 + $0x68] sm:$0xff]
      %v241 = vld [vmem:[%s220 + $0x70] sm:$0xff]
      %v242 = vld [vmem:[%s220 + $0x78] sm:$0xff]
      %v243 = vld [vmem:[%s220 + $0x80] sm:$0xff]
      %v244 = vld [vmem:[%s220 + $0x88] sm:$0xff]
      %v245 = vld [vmem:[%s220 + $0x90] sm:$0xff]
      %v246 = vld [vmem:[%s220 + $0x98] sm:$0xff]
      %v247 = vld [vmem:[%s220 + $0xa0] sm:$0xff]
      %v248 = vld [vmem:[%s220 + $0xa8] sm:$0xff]
      %v249 = vld [vmem:[%s220 + $0xb0] sm:$0xff]
      %v250 = vld [vmem:[%s220 + $0xb8] sm:$0xff]
      %v251 = vld [vmem:[%s220 + $0xc0] sm:$0xff]
      %v252 = vld [vmem:[%s220 + $0xc8] sm:$0xff]
      %v253 = vld [vmem:[%s220 + $0xd0] sm:$0xff]
      %v254 = vld [vmem:[%s220 + $0xd8] sm:$0xff]
      %v255 = vld [vmem:[%s220 + $0xe0] sm:$0x3]
      %v256 = vld [vmem:[%s1] sm:$0xf]
      %v257 = vld [vmem:[%s220 + $0x1] sm:$0xff]
      %v258 = vld [vmem:[%s220 + $0x9] sm:$0xff]
      %v259 = vld [vmem:[%s220 + $0x11] sm:$0xff]
      %v260 = vld [vmem:[%s220 + $0x19] sm:$0xff]
      %v261 = vld [vmem:[%s220 + $0x21] sm:$0xff]
      %v262 = vld [vmem:[%s220 + $0x29] sm:$0xff]
      %v263 = vld [vmem:[%s220 + $0x31] sm:$0xff]
      %v264 = vld [vmem:[%s220 + $0x39] sm:$0xff]
      %v265 = vld [vmem:[%s220 + $0x41] sm:$0xff]
      %v266 = vld [vmem:[%s220 + $0x49] sm:$0xff]
      %v267 = vld [vmem:[%s220 + $0x51] sm:$0xff]
      %v268 = vld [vmem:[%s220 + $0x59] sm:$0xff]
      %v269 = vld [vmem:[%s220 + $0x61] sm:$0xff]
      %v270 = vld [vmem:[%s220 + $0x69] sm:$0xff]
      %v271 = vld [vmem:[%s220 + $0x71] sm:$0xff]
      %v272 = vld [vmem:[%s220 + $0x79] sm:$0xff]
      %v273 = vld [vmem:[%s220 + $0x81] sm:$0xff]
      %v274 = vld [vmem:[%s220 + $0x89] sm:$0xff]
      %v275 = vld [vmem:[%s220 + $0x91] sm:$0xff]
      %v276 = vld [vmem:[%s220 + $0x99] sm:$0xff]
      %v277 = vld [vmem:[%s220 + $0xa1] sm:$0xff]
      %v278 = vld [vmem:[%s220 + $0xa9] sm:$0xff]
      %v279 = vld [vmem:[%s220 + $0xb1] sm:$0xff]
      %v280 = vld [vmem:[%s220 + $0xb9] sm:$0xff]
      %v281 = vld [vmem:[%s220 + $0xc1] sm:$0xff]
      %v282 = vld [vmem:[%s220 + $0xc9] sm:$0xff]
      %v283 = vld [vmem:[%s220 + $0xd1] sm:$0xff]
      %v284 = vld [vmem:[%s220 + $0xd9] sm:$0xff]
      %v285 = vld [vmem:[%s220 + $0xe1] sm:$0x3]
      %v286 = vld [vmem:[%s1 + $0x4] sm:$0xf]
      %vm287 = vcmask 31744
      %v289 = vsel %vm287, %v257, 0
      %v292 = vsel %vm287, %v258, 0
      %v295 = vsel %vm287, %v259, 0
      %v298 = vsel %vm287, %v260, 0
      %v301 = vsel %vm287, %v261, 0
      %v304 = vsel %vm287, %v262, 0
      %v307 = vsel %vm287, %v263, 0
      %v310 = vsel %vm287, %v264, 0
      %v313 = vsel %vm287, %v265, 0
      %v316 = vsel %vm287, %v266, 0
      %v319 = vsel %vm287, %v267, 0
      %v322 = vsel %vm287, %v268, 0
      %v325 = vsel %vm287, %v269, 0
      %v328 = vsel %vm287, %v270, 0
      %v331 = vsel %vm287, %v271, 0
      %v334 = vsel %vm287, %v272, 0
      %v337 = vsel %vm287, %v273, 0
      %v340 = vsel %vm287, %v274, 0
      %v343 = vsel %vm287, %v275, 0
      %v346 = vsel %vm287, %v276, 0
      %v349 = vsel %vm287, %v277, 0
      %v352 = vsel %vm287, %v278, 0
      %v355 = vsel %vm287, %v279, 0
      %v358 = vsel %vm287, %v280, 0
      %v361 = vsel %vm287, %v281, 0
      %v364 = vsel %vm287, %v282, 0
      %v367 = vsel %vm287, %v283, 0
      %v370 = vsel %vm287, %v284, 0
      %v373 = vsel %vm287, %v285, 0
      %vm375 = vcmask 1043456
      %v377 = vsel %vm375, %v286, 0
      %379 = vmatprep.subr.mxu0 0.0
      %380 = vmatpush1.msra.mxu0 %v377
      %381 = vmatprep.subr.mxu0 0.0
      %382 = vmatpush1.msra.mxu0 0.0
      %383 = vmatprep.subr.mxu0 0.0
      %384 = vmatpush1.msra.mxu0 0.0
      %385 = vmatprep.subr.mxu0 0.0
      %386 = vmatpush1.msra.mxu0 0.0
      %387 = vmatprep.subr.mxu0 0.0
      %388 = vmatpush1.msra.mxu0 0.0
      %389 = vmatprep.subr.mxu0 0.0
      %390 = vmatpush1.msra.mxu0 0.0
      %391 = vmatprep.subr.mxu0 0.0
      %392 = vmatpush1.msra.mxu0 0.0
      %393 = vmatprep.subr.mxu0 0.0
      %394 = vmatpush1.msra.mxu0 0.0
      %395 = vmatprep.subr.mxu0 0.0
      %396 = vmatpush1.msra.mxu0 0.0
      %397 = vmatprep.subr.mxu0 0.0
      %398 = vmatpush1.msra.mxu0 0.0
      %399 = vmatprep.subr.mxu0 0.0
      %400 = vmatpush1.msra.mxu0 0.0
      %401 = vmatprep.subr.mxu0 0.0
      %402 = vmatpush1.msra.mxu0 0.0
      %403 = vmatprep.subr.mxu0 0.0
      %404 = vmatpush1.msra.mxu0 0.0
      %405 = vmatprep.subr.mxu0 0.0
      %406 = vmatpush1.msra.mxu0 0.0
      %407 = vmatprep.subr.mxu0 0.0
      %408 = vmatpush1.msra.mxu0 0.0
      %409 = vmatprep.subr.mxu0 0.0
      %410 = vmatpush1.msra.mxu0 0.0
      %411 = vmatprep.subr.mxu0 0.0
      %412 = vmatpush1.msra.mxu0 0.0
      %413 = vmatprep.subr.mxu0 0.0
      %414 = vmatpush1.msra.mxu0 0.0
      %415 = vmatprep.subr.mxu0 0.0
      %416 = vmatpush1.msra.mxu0 0.0
      %417 = vmatprep.subr.mxu0 0.0
      %418 = vmatpush1.msra.mxu0 0.0
      %419 = vmatprep.subr.mxu0 0.0
      %420 = vmatpush1.msra.mxu0 0.0
      %421 = vmatprep.subr.mxu0 0.0
      %422 = vmatpush1.msra.mxu0 0.0
      %423 = vmatprep.subr.mxu0 0.0
      %424 = vmatpush1.msra.mxu0 0.0
      %425 = vmatprep.subr.mxu0 0.0
      %426 = vmatpush1.msra.mxu0 0.0
      %427 = vmatprep.subr.mxu0 0.0
      %428 = vmatpush1.msra.mxu0 0.0
      %429 = vmatprep.subr.mxu0 0.0
      %430 = vmatpush1.msra.mxu0 0.0
      %431 = vmatprep.subr.mxu0 0.0
      %432 = vmatpush1.msra.mxu0 0.0
      %433 = vmatprep.subr.mxu0 0.0
      %434 = vmatpush1.msra.mxu0 0.0
      %435 = vmatprep.subr.mxu0 0.0
      %436 = vmatpush1.msra.mxu0 0.0
      %437 = vmatprep.subr.mxu0 0.0
      %438 = vmatpush1.msra.mxu0 0.0
      %439 = vmatprep.subr.mxu0 0.0
      %440 = vmatpush1.msra.mxu0 0.0
      %441 = vmatprep.subr.mxu0 0.0
      %442 = vmatpush1.msra.mxu0 0.0
      %443 = vmatprep.mubr.f32.mxu0 0.0
      %444 = vmatmul.mubr.f32.gmra.mrb[0].mxu0 %v289
      %v445 = vpop.f32.mrb[0].mxu0
      %v446 = vadd.f32 0.0, %v445
      %v447 = vpop.f32.mrb[0].mxu0
      %448 = vmatprep.mubr.f32.mxu0 0.0
      %449 = vmatmul.mubr.f32.gmra.mrb[0].mxu0 %v292
      %v450 = vpop.f32.mrb[0].mxu0
      %v451 = vadd.f32 0.0, %v450
      %v452 = vpop.f32.mrb[0].mxu0
      %453 = vmatprep.mubr.f32.mxu0 0.0
      %454 = vmatmul.mubr.f32.gmra.mrb[0].mxu0 %v295
      %v455 = vpop.f32.mrb[0].mxu0
      %v456 = vadd.f32 0.0, %v455
      %v457 = vpop.f32.mrb[0].mxu0
      %458 = vmatprep.mubr.f32.mxu0 0.0
      %459 = vmatmul.mubr.f32.gmra.mrb[0].mxu0 %v298
      %v460 = vpop.f32.mrb[0].mxu0
      %v461 = vadd.f32 0.0, %v460
      %v462 = vpop.f32.mrb[0].mxu0
      %463 = vmatprep.mubr.f32.mxu0 0.0
      %464 = vmatmul.mubr.f32.gmra.mrb[0].mxu0 %v301
      %v465 = vpop.f32.mrb[0].mxu0
      %v466 = vadd.f32 0.0, %v465
      %v467 = vpop.f32.mrb[0].mxu0
      %468 = vmatprep.mubr.f32.mxu0 0.0
      %469 = vmatmul.mubr.f32.gmra.mrb[0].mxu0 %v304
      %v470 = vpop.f32.mrb[0].mxu0
      %v471 = vadd.f32 0.0, %v470
      %v472 = vpop.f32.mrb[0].mxu0
      %473 = vmatprep.mubr.f32.mxu0 0.0
      %474 = vmatmul.mubr.f32.gmra.mrb[0].mxu0 %v307
      %v475 = vpop.f32.mrb[0].mxu0
      %v476 = vadd.f32 0.0, %v475
      %v477 = vpop.f32.mrb[0].mxu0
      %478 = vmatprep.mubr.f32.mxu0 0.0
      %479 = vmatmul.mubr.f32.gmra.mrb[0].mxu0 %v310
      %v480 = vpop.f32.mrb[0].mxu0
      %v481 = vadd.f32 0.0, %v480
      %v482 = vpop.f32.mrb[0].mxu0
      %483 = vmatprep.mubr.f32.mxu0 0.0
      %484 = vmatmul.mubr.f32.gmra.mrb[0].mxu0 %v313
      %v485 = vpop.f32.mrb[0].mxu0
      %v486 = vadd.f32 0.0, %v485
      %v487 = vpop.f32.mrb[0].mxu0
      %488 = vmatprep.mubr.f32.mxu0 0.0
      %489 = vmatmul.mubr.f32.gmra.mrb[0].mxu0 %v316
      %v490 = vpop.f32.mrb[0].mxu0
      %v491 = vadd.f32 0.0, %v490
      %v492 = vpop.f32.mrb[0].mxu0
      %493 = vmatprep.mubr.f32.mxu0 0.0
      %494 = vmatmul.mubr.f32.gmra.mrb[0].mxu0 %v319
      %v495 = vpop.f32.mrb[0].mxu0
      %v496 = vadd.f32 0.0, %v495
      %v497 = vpop.f32.mrb[0].mxu0
      %498 = vmatprep.mubr.f32.mxu0 0.0
      %499 = vmatmul.mubr.f32.gmra.mrb[0].mxu0 %v322
      %v500 = vpop.f32.mrb[0].mxu0
      %v501 = vadd.f32 0.0, %v500
      %v502 = vpop.f32.mrb[0].mxu0
      %503 = vmatprep.mubr.f32.mxu0 0.0
      %504 = vmatmul.mubr.f32.gmra.mrb[0].mxu0 %v325
      %v505 = vpop.f32.mrb[0].mxu0
      %v506 = vadd.f32 0.0, %v505
      %v507 = vpop.f32.mrb[0].mxu0
      %508 = vmatprep.mubr.f32.mxu0 0.0
      %509 = vmatmul.mubr.f32.gmra.mrb[0].mxu0 %v328
      %v510 = vpop.f32.mrb[0].mxu0
      %v511 = vadd.f32 0.0, %v510
      %v512 = vpop.f32.mrb[0].mxu0
      %513 = vmatprep.mubr.f32.mxu0 0.0
      %514 = vmatmul.mubr.f32.gmra.mrb[0].mxu0 %v331
      %v515 = vpop.f32.mrb[0].mxu0
      %v516 = vadd.f32 0.0, %v515
      %v517 = vpop.f32.mrb[0].mxu0
      %518 = vmatprep.mubr.f32.mxu0 0.0
      %519 = vmatmul.mubr.f32.gmra.mrb[0].mxu0 %v334
      %v520 = vpop.f32.mrb[0].mxu0
      %v521 = vadd.f32 0.0, %v520
      %v522 = vpop.f32.mrb[0].mxu0
      %523 = vmatprep.mubr.f32.mxu0 0.0
      %524 = vmatmul.mubr.f32.gmra.mrb[0].mxu0 %v337
      %v525 = vpop.f32.mrb[0].mxu0
      %v526 = vadd.f32 0.0, %v525
      %v527 = vpop.f32.mrb[0].mxu0
      %528 = vmatprep.mubr.f32.mxu0 0.0
      %529 = vmatmul.mubr.f32.gmra.mrb[0].mxu0 %v340
      %v530 = vpop.f32.mrb[0].mxu0
      %v531 = vadd.f32 0.0, %v530
      %v532 = vpop.f32.mrb[0].mxu0
      %533 = vmatprep.mubr.f32.mxu0 0.0
      %534 = vmatmul.mubr.f32.gmra.mrb[0].mxu0 %v343
      %v535 = vpop.f32.mrb[0].mxu0
      %v536 = vadd.f32 0.0, %v535
      %v537 = vpop.f32.mrb[0].mxu0
      %538 = vmatprep.mubr.f32.mxu0 0.0
      %539 = vmatmul.mubr.f32.gmra.mrb[0].mxu0 %v346
      %v540 = vpop.f32.mrb[0].mxu0
      %v541 = vadd.f32 0.0, %v540
      %v542 = vpop.f32.mrb[0].mxu0
      %543 = vmatprep.mubr.f32.mxu0 0.0
      %544 = vmatmul.mubr.f32.gmra.mrb[0].mxu0 %v349
      %v545 = vpop.f32.mrb[0].mxu0
      %v546 = vadd.f32 0.0, %v545
      %v547 = vpop.f32.mrb[0].mxu0
      %548 = vmatprep.mubr.f32.mxu0 0.0
      %549 = vmatmul.mubr.f32.gmra.mrb[0].mxu0 %v352
      %v550 = vpop.f32.mrb[0].mxu0
      %v551 = vadd.f32 0.0, %v550
      %v552 = vpop.f32.mrb[0].mxu0
      %553 = vmatprep.mubr.f32.mxu0 0.0
      %554 = vmatmul.mubr.f32.gmra.mrb[0].mxu0 %v355
      %v555 = vpop.f32.mrb[0].mxu0
      %v556 = vadd.f32 0.0, %v555
      %v557 = vpop.f32.mrb[0].mxu0
      %558 = vmatprep.mubr.f32.mxu0 0.0
      %559 = vmatmul.mubr.f32.gmra.mrb[0].mxu0 %v358
      %v560 = vpop.f32.mrb[0].mxu0
      %v561 = vadd.f32 0.0, %v560
      %v562 = vpop.f32.mrb[0].mxu0
      %563 = vmatprep.mubr.f32.mxu0 0.0
      %564 = vmatmul.mubr.f32.gmra.mrb[0].mxu0 %v361
      %v565 = vpop.f32.mrb[0].mxu0
      %v566 = vadd.f32 0.0, %v565
      %v567 = vpop.f32.mrb[0].mxu0
      %568 = vmatprep.mubr.f32.mxu0 0.0
      %569 = vmatmul.mubr.f32.gmra.mrb[0].mxu0 %v364
      %v570 = vpop.f32.mrb[0].mxu0
      %v571 = vadd.f32 0.0, %v570
      %v572 = vpop.f32.mrb[0].mxu0
      %573 = vmatprep.mubr.f32.mxu0 0.0
      %574 = vmatmul.mubr.f32.gmra.mrb[0].mxu0 %v367
      %v575 = vpop.f32.mrb[0].mxu0
      %v576 = vadd.f32 0.0, %v575
      %v577 = vpop.f32.mrb[0].mxu0
      %578 = vmatprep.mubr.f32.mxu0 0.0
      %579 = vmatmul.mubr.f32.gmra.mrb[0].mxu0 %v370
      %v580 = vpop.f32.mrb[0].mxu0
      %v581 = vadd.f32 0.0, %v580
      %v582 = vpop.f32.mrb[0].mxu0
      %583 = vmatprep.mubr.f32.mxu0 0.0
      %584 = vmatmul.mubr.f32.gmra.mrb[0].mxu0 %v373
      %v585 = vpop.f32.mrb[0].mxu0
      %v586 = vadd.f32 0.0, %v585
      %v587 = vpop.f32.mrb[0].mxu0
      %588 = vdwg.mxu0
      %v590 = vsel %vm287, %v227, 0
      %v593 = vsel %vm287, %v228, 0
      %v596 = vsel %vm287, %v229, 0
      %v599 = vsel %vm287, %v230, 0
      %v602 = vsel %vm287, %v231, 0
      %v605 = vsel %vm287, %v232, 0
      %v608 = vsel %vm287, %v233, 0
      %v611 = vsel %vm287, %v234, 0
      %v614 = vsel %vm287, %v235, 0
      %v617 = vsel %vm287, %v236, 0
      %v620 = vsel %vm287, %v237, 0
      %v623 = vsel %vm287, %v238, 0
      %v626 = vsel %vm287, %v239, 0
      %v629 = vsel %vm287, %v240, 0
      %v632 = vsel %vm287, %v241, 0
      %v635 = vsel %vm287, %v242, 0
      %v638 = vsel %vm287, %v243, 0
      %v641 = vsel %vm287, %v244, 0
      %v644 = vsel %vm287, %v245, 0
      %v647 = vsel %vm287, %v246, 0
      %v650 = vsel %vm287, %v247, 0
      %v653 = vsel %vm287, %v248, 0
      %v656 = vsel %vm287, %v249, 0
      %v659 = vsel %vm287, %v250, 0
      %v662 = vsel %vm287, %v251, 0
      %v665 = vsel %vm287, %v252, 0
      %v668 = vsel %vm287, %v253, 0
      %v671 = vsel %vm287, %v254, 0
      %v674 = vsel %vm287, %v255, 0
      %v677 = vsel %vm375, %v256, 0
      %679 = vmatprep.subr.mxu0 0.0
      %680 = vmatpush1.msra.mxu0 %v677
      %681 = vmatprep.subr.mxu0 0.0
      %682 = vmatpush1.msra.mxu0 0.0
      %683 = vmatprep.subr.mxu0 0.0
      %684 = vmatpush1.msra.mxu0 0.0
      %685 = vmatprep.subr.mxu0 0.0
      %686 = vmatpush1.msra.mxu0 0.0
      %687 = vmatprep.subr.mxu0 0.0
      %688 = vmatpush1.msra.mxu0 0.0
      %689 = vmatprep.subr.mxu0 0.0
      %690 = vmatpush1.msra.mxu0 0.0
      %691 = vmatprep.subr.mxu0 0.0
      %692 = vmatpush1.msra.mxu0 0.0
      %693 = vmatprep.subr.mxu0 0.0
      %694 = vmatpush1.msra.mxu0 0.0
      %695 = vmatprep.subr.mxu0 0.0
      %696 = vmatpush1.msra.mxu0 0.0
      %697 = vmatprep.subr.mxu0 0.0
      %698 = vmatpush1.msra.mxu0 0.0
      %699 = vmatprep.subr.mxu0 0.0
      %700 = vmatpush1.msra.mxu0 0.0
      %701 = vmatprep.subr.mxu0 0.0
      %702 = vmatpush1.msra.mxu0 0.0
      %703 = vmatprep.subr.mxu0 0.0
      %704 = vmatpush1.msra.mxu0 0.0
      %705 = vmatprep.subr.mxu0 0.0
      %706 = vmatpush1.msra.mxu0 0.0
      %707 = vmatprep.subr.mxu0 0.0
      %708 = vmatpush1.msra.mxu0 0.0
      %709 = vmatprep.subr.mxu0 0.0
      %710 = vmatpush1.msra.mxu0 0.0
      %711 = vmatprep.subr.mxu0 0.0
      %712 = vmatpush1.msra.mxu0 0.0
      %713 = vmatprep.subr.mxu0 0.0
      %714 = vmatpush1.msra.mxu0 0.0
      %715 = vmatprep.subr.mxu0 0.0
      %716 = vmatpush1.msra.mxu0 0.0
      %717 = vmatprep.subr.mxu0 0.0
      %718 = vmatpush1.msra.mxu0 0.0
      %719 = vmatprep.subr.mxu0 0.0
      %720 = vmatpush1.msra.mxu0 0.0
      %721 = vmatprep.subr.mxu0 0.0
      %722 = vmatpush1.msra.mxu0 0.0
      %723 = vmatprep.subr.mxu0 0.0
      %724 = vmatpush1.msra.mxu0 0.0
      %725 = vmatprep.subr.mxu0 0.0
      %726 = vmatpush1.msra.mxu0 0.0
      %727 = vmatprep.subr.mxu0 0.0
      %728 = vmatpush1.msra.mxu0 0.0
      %729 = vmatprep.subr.mxu0 0.0
      %730 = vmatpush1.msra.mxu0 0.0
      %731 = vmatprep.subr.mxu0 0.0
      %732 = vmatpush1.msra.mxu0 0.0
      %733 = vmatprep.subr.mxu0 0.0
      %734 = vmatpush1.msra.mxu0 0.0
      %735 = vmatprep.subr.mxu0 0.0
      %736 = vmatpush1.msra.mxu0 0.0
      %737 = vmatprep.subr.mxu0 0.0
      %738 = vmatpush1.msra.mxu0 0.0
      %739 = vmatprep.subr.mxu0 0.0
      %740 = vmatpush1.msra.mxu0 0.0
      %741 = vmatprep.subr.mxu0 0.0
      %742 = vmatpush1.msra.mxu0 0.0
      %743 = vmatprep.mubr.f32.mxu0 0.0
      %744 = vmatmul.mubr.f32.gmra.mrb[0].mxu0 %v590
      %v745 = vpop.f32.mrb[0].mxu0
      %v746 = vadd.f32 %v446, %v745
      %v747 = vpop.f32.mrb[0].mxu0
      %748 = vmatprep.mubr.f32.mxu0 0.0
      %749 = vmatmul.mubr.f32.gmra.mrb[0].mxu0 %v593
      %v750 = vpop.f32.mrb[0].mxu0
      %v751 = vadd.f32 %v451, %v750
      %v752 = vpop.f32.mrb[0].mxu0
      %753 = vmatprep.mubr.f32.mxu0 0.0
      %754 = vmatmul.mubr.f32.gmra.mrb[0].mxu0 %v596
      %v755 = vpop.f32.mrb[0].mxu0
      %v756 = vadd.f32 %v456, %v755
      %v757 = vpop.f32.mrb[0].mxu0
      %758 = vmatprep.mubr.f32.mxu0 0.0
      %759 = vmatmul.mubr.f32.gmra.mrb[0].mxu0 %v599
      %v760 = vpop.f32.mrb[0].mxu0
      %v761 = vadd.f32 %v461, %v760
      %v762 = vpop.f32.mrb[0].mxu0
      %763 = vmatprep.mubr.f32.mxu0 0.0
      %764 = vmatmul.mubr.f32.gmra.mrb[0].mxu0 %v602
      %v765 = vpop.f32.mrb[0].mxu0
      %v766 = vadd.f32 %v466, %v765
      %v767 = vpop.f32.mrb[0].mxu0
      %768 = vmatprep.mubr.f32.mxu0 0.0
      %769 = vmatmul.mubr.f32.gmra.mrb[0].mxu0 %v605
      %v770 = vpop.f32.mrb[0].mxu0
      %v771 = vadd.f32 %v471, %v770
      %v772 = vpop.f32.mrb[0].mxu0
      %773 = vmatprep.mubr.f32.mxu0 0.0
      %774 = vmatmul.mubr.f32.gmra.mrb[0].mxu0 %v608
      %v775 = vpop.f32.mrb[0].mxu0
      %v776 = vadd.f32 %v476, %v775
      %v777 = vpop.f32.mrb[0].mxu0
      %778 = vmatprep.mubr.f32.mxu0 0.0
      %779 = vmatmul.mubr.f32.gmra.mrb[0].mxu0 %v611
      %v780 = vpop.f32.mrb[0].mxu0
      %v781 = vadd.f32 %v481, %v780
      %v782 = vpop.f32.mrb[0].mxu0
      %783 = vmatprep.mubr.f32.mxu0 0.0
      %784 = vmatmul.mubr.f32.gmra.mrb[0].mxu0 %v614
      %v785 = vpop.f32.mrb[0].mxu0
      %v786 = vadd.f32 %v486, %v785
      %v787 = vpop.f32.mrb[0].mxu0
      %788 = vmatprep.mubr.f32.mxu0 0.0
      %789 = vmatmul.mubr.f32.gmra.mrb[0].mxu0 %v617
      %v790 = vpop.f32.mrb[0].mxu0
      %v791 = vadd.f32 %v491, %v790
      %v792 = vpop.f32.mrb[0].mxu0
      %793 = vmatprep.mubr.f32.mxu0 0.0
      %794 = vmatmul.mubr.f32.gmra.mrb[0].mxu0 %v620
      %v795 = vpop.f32.mrb[0].mxu0
      %v796 = vadd.f32 %v496, %v795
      %v797 = vpop.f32.mrb[0].mxu0
      %798 = vmatprep.mubr.f32.mxu0 0.0
      %799 = vmatmul.mubr.f32.gmra.mrb[0].mxu0 %v623
      %v800 = vpop.f32.mrb[0].mxu0
      %v801 = vadd.f32 %v501, %v800
      %v802 = vpop.f32.mrb[0].mxu0
      %803 = vmatprep.mubr.f32.mxu0 0.0
      %804 = vmatmul.mubr.f32.gmra.mrb[0].mxu0 %v626
      %v805 = vpop.f32.mrb[0].mxu0
      %v806 = vadd.f32 %v506, %v805
      %v807 = vpop.f32.mrb[0].mxu0
      %808 = vmatprep.mubr.f32.mxu0 0.0
      %809 = vmatmul.mubr.f32.gmra.mrb[0].mxu0 %v629
      %v810 = vpop.f32.mrb[0].mxu0
      %v811 = vadd.f32 %v511, %v810
      %v812 = vpop.f32.mrb[0].mxu0
      %813 = vmatprep.mubr.f32.mxu0 0.0
      %814 = vmatmul.mubr.f32.gmra.mrb[0].mxu0 %v632
      %v815 = vpop.f32.mrb[0].mxu0
      %v816 = vadd.f32 %v516, %v815
      %v817 = vpop.f32.mrb[0].mxu0
      %818 = vmatprep.mubr.f32.mxu0 0.0
      %819 = vmatmul.mubr.f32.gmra.mrb[0].mxu0 %v635
      %v820 = vpop.f32.mrb[0].mxu0
      %v821 = vadd.f32 %v521, %v820
      %v822 = vpop.f32.mrb[0].mxu0
      %823 = vmatprep.mubr.f32.mxu0 0.0
      %824 = vmatmul.mubr.f32.gmra.mrb[0].mxu0 %v638
      %v825 = vpop.f32.mrb[0].mxu0
      %v826 = vadd.f32 %v526, %v825
      %v827 = vpop.f32.mrb[0].mxu0
      %828 = vmatprep.mubr.f32.mxu0 0.0
      %829 = vmatmul.mubr.f32.gmra.mrb[0].mxu0 %v641
      %v830 = vpop.f32.mrb[0].mxu0
      %v831 = vadd.f32 %v531, %v830
      %v832 = vpop.f32.mrb[0].mxu0
      %833 = vmatprep.mubr.f32.mxu0 0.0
      %834 = vmatmul.mubr.f32.gmra.mrb[0].mxu0 %v644
      %v835 = vpop.f32.mrb[0].mxu0
      %v836 = vadd.f32 %v536, %v835
      %v837 = vpop.f32.mrb[0].mxu0
      %838 = vmatprep.mubr.f32.mxu0 0.0
      %839 = vmatmul.mubr.f32.gmra.mrb[0].mxu0 %v647
      %v840 = vpop.f32.mrb[0].mxu0
      %v841 = vadd.f32 %v541, %v840
      %v842 = vpop.f32.mrb[0].mxu0
      %843 = vmatprep.mubr.f32.mxu0 0.0
      %844 = vmatmul.mubr.f32.gmra.mrb[0].mxu0 %v650
      %v845 = vpop.f32.mrb[0].mxu0
      %v846 = vadd.f32 %v546, %v845
      %v847 = vpop.f32.mrb[0].mxu0
      %848 = vmatprep.mubr.f32.mxu0 0.0
      %849 = vmatmul.mubr.f32.gmra.mrb[0].mxu0 %v653
      %v850 = vpop.f32.mrb[0].mxu0
      %v851 = vadd.f32 %v551, %v850
      %v852 = vpop.f32.mrb[0].mxu0
      %853 = vmatprep.mubr.f32.mxu0 0.0
      %854 = vmatmul.mubr.f32.gmra.mrb[0].mxu0 %v656
      %v855 = vpop.f32.mrb[0].mxu0
      %v856 = vadd.f32 %v556, %v855
      %v857 = vpop.f32.mrb[0].mxu0
      %858 = vmatprep.mubr.f32.mxu0 0.0
      %859 = vmatmul.mubr.f32.gmra.mrb[0].mxu0 %v659
      %v860 = vpop.f32.mrb[0].mxu0
      %v861 = vadd.f32 %v561, %v860
      %v862 = vpop.f32.mrb[0].mxu0
      %863 = vmatprep.mubr.f32.mxu0 0.0
      %864 = vmatmul.mubr.f32.gmra.mrb[0].mxu0 %v662
      %v865 = vpop.f32.mrb[0].mxu0
      %v866 = vadd.f32 %v566, %v865
      %v867 = vpop.f32.mrb[0].mxu0
      %868 = vmatprep.mubr.f32.mxu0 0.0
      %869 = vmatmul.mubr.f32.gmra.mrb[0].mxu0 %v665
      %v870 = vpop.f32.mrb[0].mxu0
      %v871 = vadd.f32 %v571, %v870
      %v872 = vpop.f32.mrb[0].mxu0
      %873 = vmatprep.mubr.f32.mxu0 0.0
      %874 = vmatmul.mubr.f32.gmra.mrb[0].mxu0 %v668
      %v875 = vpop.f32.mrb[0].mxu0
      %v876 = vadd.f32 %v576, %v875
      %v877 = vpop.f32.mrb[0].mxu0
      %878 = vmatprep.mubr.f32.mxu0 0.0
      %879 = vmatmul.mubr.f32.gmra.mrb[0].mxu0 %v671
      %v880 = vpop.f32.mrb[0].mxu0
      %v881 = vadd.f32 %v581, %v880
      %v882 = vpop.f32.mrb[0].mxu0
      %883 = vmatprep.mubr.f32.mxu0 0.0
      %884 = vmatmul.mubr.f32.gmra.mrb[0].mxu0 %v674
      %v885 = vpop.f32.mrb[0].mxu0
      %v886 = vadd.f32 %v586, %v885
      %v887 = vpop.f32.mrb[0].mxu0
      %888 = vdwg.mxu0
      %v889 = vld [vmem:[%s220 + $0x2] sm:$0xff]
      %v890 = vld [vmem:[%s220 + $0xa] sm:$0xff]
      %v891 = vld [vmem:[%s220 + $0x12] sm:$0xff]
      %v892 = vld [vmem:[%s220 + $0x1a] sm:$0xff]
      %v893 = vld [vmem:[%s220 + $0x22] sm:$0xff]
      %v894 = vld [vmem:[%s220 + $0x2a] sm:$0xff]
      %v895 = vld [vmem:[%s220 + $0x32] sm:$0xff]
      %v896 = vld [vmem:[%s220 + $0x3a] sm:$0xff]
      %v897 = vld [vmem:[%s220 + $0x42] sm:$0xff]
      %v898 = vld [vmem:[%s220 + $0x4a] sm:$0xff]
      %v899 = vld [vmem:[%s220 + $0x52] sm:$0xff]
      %v900 = vld [vmem:[%s220 + $0x5a] sm:$0xff]
      %v901 = vld [vmem:[%s220 + $0x62] sm:$0xff]
      %v902 = vld [vmem:[%s220 + $0x6a] sm:$0xff]
      %v903 = vld [vmem:[%s220 + $0x72] sm:$0xff]
      %v904 = vld [vmem:[%s220 + $0x7a] sm:$0xff]
      %v905 = vld [vmem:[%s220 + $0x82] sm:$0xff]
      %v906 = vld [vmem:[%s220 + $0x8a] sm:$0xff]
      %v907 = vld [vmem:[%s220 + $0x92] sm:$0xff]
      %v908 = vld [vmem:[%s220 + $0x9a] sm:$0xff]
      %v909 = vld [vmem:[%s220 + $0xa2] sm:$0xff]
      %v910 = vld [vmem:[%s220 + $0xaa] sm:$0xff]
      %v911 = vld [vmem:[%s220 + $0xb2] sm:$0xff]
      %v912 = vld [vmem:[%s220 + $0xba] sm:$0xff]
      %v913 = vld [vmem:[%s220 + $0xc2] sm:$0xff]
      %v914 = vld [vmem:[%s220 + $0xca] sm:$0xff]
      %v915 = vld [vmem:[%s220 + $0xd2] sm:$0xff]
      %v916 = vld [vmem:[%s220 + $0xda] sm:$0xff]
      %v917 = vld [vmem:[%s220 + $0xe2] sm:$0x3]
      %v918 = vld [vmem:[%s1 + $0x8] sm:$0xf]
      %v920 = vsel %vm287, %v889, 0
      %v923 = vsel %vm287, %v890, 0
      %v926 = vsel %vm287, %v891, 0
      %v929 = vsel %vm287, %v892, 0
      %v932 = vsel %vm287, %v893, 0
      %v935 = vsel %vm287, %v894, 0
      %v938 = vsel %vm287, %v895, 0
      %v941 = vsel %vm287, %v896, 0
      %v944 = vsel %vm287, %v897, 0
      %v947 = vsel %vm287, %v898, 0
      %v950 = vsel %vm287, %v899, 0
      %v953 = vsel %vm287, %v900, 0
      %v956 = vsel %vm287, %v901, 0
      %v959 = vsel %vm287, %v902, 0
      %v962 = vsel %vm287, %v903, 0
      %v965 = vsel %vm287, %v904, 0
      %v968 = vsel %vm287, %v905, 0
      %v971 = vsel %vm287, %v906, 0
      %v974 = vsel %vm287, %v907, 0
      %v977 = vsel %vm287, %v908, 0
      %v980 = vsel %vm287, %v909, 0
      %v983 = vsel %vm287, %v910, 0
      %v986 = vsel %vm287, %v911, 0
      %v989 = vsel %vm287, %v912, 0
      %v992 = vsel %vm287, %v913, 0
      %v995 = vsel %vm287, %v914, 0
      %v998 = vsel %vm287, %v915, 0
      %v1001 = vsel %vm287, %v916, 0
      %v1004 = vsel %vm287, %v917, 0
      %v1007 = vsel %vm375, %v918, 0
      %1009 = vmatprep.subr.mxu0 0.0
      %1010 = vmatpush1.msra.mxu0 %v1007
      %1011 = vmatprep.subr.mxu0 0.0
      %1012 = vmatpush1.msra.mxu0 0.0
      %1013 = vmatprep.subr.mxu0 0.0
      %1014 = vmatpush1.msra.mxu0 0.0
      %1015 = vmatprep.subr.mxu0 0.0
      %1016 = vmatpush1.msra.mxu0 0.0
      %1017 = vmatprep.subr.mxu0 0.0
      %1018 = vmatpush1.msra.mxu0 0.0
      %1019 = vmatprep.subr.mxu0 0.0
      %1020 = vmatpush1.msra.mxu0 0.0
      %1021 = vmatprep.subr.mxu0 0.0
      %1022 = vmatpush1.msra.mxu0 0.0
      %1023 = vmatprep.subr.mxu0 0.0
      %1024 = vmatpush1.msra.mxu0 0.0
      %1025 = vmatprep.subr.mxu0 0.0
      %1026 = vmatpush1.msra.mxu0 0.0
      %1027 = vmatprep.subr.mxu0 0.0
      %1028 = vmatpush1.msra.mxu0 0.0
      %1029 = vmatprep.subr.mxu0 0.0
      %1030 = vmatpush1.msra.mxu0 0.0
      %1031 = vmatprep.subr.mxu0 0.0
      %1032 = vmatpush1.msra.mxu0 0.0
      %1033 = vmatprep.subr.mxu0 0.0
      %1034 = vmatpush1.msra.mxu0 0.0
      %1035 = vmatprep.subr.mxu0 0.0
      %1036 = vmatpush1.msra.mxu0 0.0
      %1037 = vmatprep.subr.mxu0 0.0
      %1038 = vmatpush1.msra.mxu0 0.0
      %1039 = vmatprep.subr.mxu0 0.0
      %1040 = vmatpush1.msra.mxu0 0.0
      %1041 = vmatprep.subr.mxu0 0.0
      %1042 = vmatpush1.msra.mxu0 0.0
      %1043 = vmatprep.subr.mxu0 0.0
      %1044 = vmatpush1.msra.mxu0 0.0
      %1045 = vmatprep.subr.mxu0 0.0
      %1046 = vmatpush1.msra.mxu0 0.0
      %1047 = vmatprep.subr.mxu0 0.0
      %1048 = vmatpush1.msra.mxu0 0.0
      %1049 = vmatprep.subr.mxu0 0.0
      %1050 = vmatpush1.msra.mxu0 0.0
      %1051 = vmatprep.subr.mxu0 0.0
      %1052 = vmatpush1.msra.mxu0 0.0
      %1053 = vmatprep.subr.mxu0 0.0
      %1054 = vmatpush1.msra.mxu0 0.0
      %1055 = vmatprep.subr.mxu0 0.0
      %1056 = vmatpush1.msra.mxu0 0.0
      %1057 = vmatprep.subr.mxu0 0.0
      %1058 = vmatpush1.msra.mxu0 0.0
      %1059 = vmatprep.subr.mxu0 0.0
      %1060 = vmatpush1.msra.mxu0 0.0
      %1061 = vmatprep.subr.mxu0 0.0
      %1062 = vmatpush1.msra.mxu0 0.0
      %1063 = vmatprep.subr.mxu0 0.0
      %1064 = vmatpush1.msra.mxu0 0.0
      %1065 = vmatprep.subr.mxu0 0.0
      %1066 = vmatpush1.msra.mxu0 0.0
      %1067 = vmatprep.subr.mxu0 0.0
      %1068 = vmatpush1.msra.mxu0 0.0
      %1069 = vmatprep.subr.mxu0 0.0
      %1070 = vmatpush1.msra.mxu0 0.0
      %1071 = vmatprep.subr.mxu0 0.0
      %1072 = vmatpush1.msra.mxu0 0.0
      %1073 = vmatprep.mubr.f32.mxu0 0.0
      %1074 = vmatmul.mubr.f32.gmra.mrb[0].mxu0 %v920
      %v1075 = vpop.f32.mrb[0].mxu0
      %v1076 = vadd.f32 0.0, %v1075
      %v1077 = vpop.f32.mrb[0].mxu0
      %1078 = vmatprep.mubr.f32.mxu0 0.0
      %1079 = vmatmul.mubr.f32.gmra.mrb[0].mxu0 %v923
      %v1080 = vpop.f32.mrb[0].mxu0
      %v1081 = vadd.f32 0.0, %v1080
      %v1082 = vpop.f32.mrb[0].mxu0
      %1083 = vmatprep.mubr.f32.mxu0 0.0
      %1084 = vmatmul.mubr.f32.gmra.mrb[0].mxu0 %v926
      %v1085 = vpop.f32.mrb[0].mxu0
      %v1086 = vadd.f32 0.0, %v1085
      %v1087 = vpop.f32.mrb[0].mxu0
      %1088 = vmatprep.mubr.f32.mxu0 0.0
      %1089 = vmatmul.mubr.f32.gmra.mrb[0].mxu0 %v929
      %v1090 = vpop.f32.mrb[0].mxu0
      %v1091 = vadd.f32 0.0, %v1090
      %v1092 = vpop.f32.mrb[0].mxu0
      %1093 = vmatprep.mubr.f32.mxu0 0.0
      %1094 = vmatmul.mubr.f32.gmra.mrb[0].mxu0 %v932
      %v1095 = vpop.f32.mrb[0].mxu0
      %v1096 = vadd.f32 0.0, %v1095
      %v1097 = vpop.f32.mrb[0].mxu0
      %1098 = vmatprep.mubr.f32.mxu0 0.0
      %1099 = vmatmul.mubr.f32.gmra.mrb[0].mxu0 %v935
      %v1100 = vpop.f32.mrb[0].mxu0
      %v1101 = vadd.f32 0.0, %v1100
      %v1102 = vpop.f32.mrb[0].mxu0
      %1103 = vmatprep.mubr.f32.mxu0 0.0
      %1104 = vmatmul.mubr.f32.gmra.mrb[0].mxu0 %v938
      %v1105 = vpop.f32.mrb[0].mxu0
      %v1106 = vadd.f32 0.0, %v1105
      %v1107 = vpop.f32.mrb[0].mxu0
      %1108 = vmatprep.mubr.f32.mxu0 0.0
      %1109 = vmatmul.mubr.f32.gmra.mrb[0].mxu0 %v941
      %v1110 = vpop.f32.mrb[0].mxu0
      %v1111 = vadd.f32 0.0, %v1110
      %v1112 = vpop.f32.mrb[0].mxu0
      %1113 = vmatprep.mubr.f32.mxu0 0.0
      %1114 = vmatmul.mubr.f32.gmra.mrb[0].mxu0 %v944
      %v1115 = vpop.f32.mrb[0].mxu0
      %v1116 = vadd.f32 0.0, %v1115
      %v1117 = vpop.f32.mrb[0].mxu0
      %1118 = vmatprep.mubr.f32.mxu0 0.0
      %1119 = vmatmul.mubr.f32.gmra.mrb[0].mxu0 %v947
      %v1120 = vpop.f32.mrb[0].mxu0
      %v1121 = vadd.f32 0.0, %v1120
      %v1122 = vpop.f32.mrb[0].mxu0
      %1123 = vmatprep.mubr.f32.mxu0 0.0
      %1124 = vmatmul.mubr.f32.gmra.mrb[0].mxu0 %v950
      %v1125 = vpop.f32.mrb[0].mxu0
      %v1126 = vadd.f32 0.0, %v1125
      %v1127 = vpop.f32.mrb[0].mxu0
      %1128 = vmatprep.mubr.f32.mxu0 0.0
      %1129 = vmatmul.mubr.f32.gmra.mrb[0].mxu0 %v953
      %v1130 = vpop.f32.mrb[0].mxu0
      %v1131 = vadd.f32 0.0, %v1130
      %v1132 = vpop.f32.mrb[0].mxu0
      %1133 = vmatprep.mubr.f32.mxu0 0.0
      %1134 = vmatmul.mubr.f32.gmra.mrb[0].mxu0 %v956
      %v1135 = vpop.f32.mrb[0].mxu0
      %v1136 = vadd.f32 0.0, %v1135
      %v1137 = vpop.f32.mrb[0].mxu0
      %1138 = vmatprep.mubr.f32.mxu0 0.0
      %1139 = vmatmul.mubr.f32.gmra.mrb[0].mxu0 %v959
      %v1140 = vpop.f32.mrb[0].mxu0
      %v1141 = vadd.f32 0.0, %v1140
      %v1142 = vpop.f32.mrb[0].mxu0
      %1143 = vmatprep.mubr.f32.mxu0 0.0
      %1144 = vmatmul.mubr.f32.gmra.mrb[0].mxu0 %v962
      %v1145 = vpop.f32.mrb[0].mxu0
      %v1146 = vadd.f32 0.0, %v1145
      %v1147 = vpop.f32.mrb[0].mxu0
      %1148 = vmatprep.mubr.f32.mxu0 0.0
      %1149 = vmatmul.mubr.f32.gmra.mrb[0].mxu0 %v965
      %v1150 = vpop.f32.mrb[0].mxu0
      %v1151 = vadd.f32 0.0, %v1150
      %v1152 = vpop.f32.mrb[0].mxu0
      %1153 = vmatprep.mubr.f32.mxu0 0.0
      %1154 = vmatmul.mubr.f32.gmra.mrb[0].mxu0 %v968
      %v1155 = vpop.f32.mrb[0].mxu0
      %v1156 = vadd.f32 0.0, %v1155
      %v1157 = vpop.f32.mrb[0].mxu0
      %1158 = vmatprep.mubr.f32.mxu0 0.0
      %1159 = vmatmul.mubr.f32.gmra.mrb[0].mxu0 %v971
      %v1160 = vpop.f32.mrb[0].mxu0
      %v1161 = vadd.f32 0.0, %v1160
      %v1162 = vpop.f32.mrb[0].mxu0
      %1163 = vmatprep.mubr.f32.mxu0 0.0
      %1164 = vmatmul.mubr.f32.gmra.mrb[0].mxu0 %v974
      %v1165 = vpop.f32.mrb[0].mxu0
      %v1166 = vadd.f32 0.0, %v1165
      %v1167 = vpop.f32.mrb[0].mxu0
      %1168 = vmatprep.mubr.f32.mxu0 0.0
      %1169 = vmatmul.mubr.f32.gmra.mrb[0].mxu0 %v977
      %v1170 = vpop.f32.mrb[0].mxu0
      %v1171 = vadd.f32 0.0, %v1170
      %v1172 = vpop.f32.mrb[0].mxu0
      %1173 = vmatprep.mubr.f32.mxu0 0.0
      %1174 = vmatmul.mubr.f32.gmra.mrb[0].mxu0 %v980
      %v1175 = vpop.f32.mrb[0].mxu0
      %v1176 = vadd.f32 0.0, %v1175
      %v1177 = vpop.f32.mrb[0].mxu0
      %1178 = vmatprep.mubr.f32.mxu0 0.0
      %1179 = vmatmul.mubr.f32.gmra.mrb[0].mxu0 %v983
      %v1180 = vpop.f32.mrb[0].mxu0
      %v1181 = vadd.f32 0.0, %v1180
      %v1182 = vpop.f32.mrb[0].mxu0
      %1183 = vmatprep.mubr.f32.mxu0 0.0
      %1184 = vmatmul.mubr.f32.gmra.mrb[0].mxu0 %v986
      %v1185 = vpop.f32.mrb[0].mxu0
      %v1186 = vadd.f32 0.0, %v1185
      %v1187 = vpop.f32.mrb[0].mxu0
      %1188 = vmatprep.mubr.f32.mxu0 0.0
      %1189 = vmatmul.mubr.f32.gmra.mrb[0].mxu0 %v989
      %v1190 = vpop.f32.mrb[0].mxu0
      %v1191 = vadd.f32 0.0, %v1190
      %v1192 = vpop.f32.mrb[0].mxu0
      %1193 = vmatprep.mubr.f32.mxu0 0.0
      %1194 = vmatmul.mubr.f32.gmra.mrb[0].mxu0 %v992
      %v1195 = vpop.f32.mrb[0].mxu0
      %v1196 = vadd.f32 0.0, %v1195
      %v1197 = vpop.f32.mrb[0].mxu0
      %1198 = vmatprep.mubr.f32.mxu0 0.0
      %1199 = vmatmul.mubr.f32.gmra.mrb[0].mxu0 %v995
      %v1200 = vpop.f32.mrb[0].mxu0
      %v1201 = vadd.f32 0.0, %v1200
      %v1202 = vpop.f32.mrb[0].mxu0
      %1203 = vmatprep.mubr.f32.mxu0 0.0
      %1204 = vmatmul.mubr.f32.gmra.mrb[0].mxu0 %v998
      %v1205 = vpop.f32.mrb[0].mxu0
      %v1206 = vadd.f32 0.0, %v1205
      %v1207 = vpop.f32.mrb[0].mxu0
      %1208 = vmatprep.mubr.f32.mxu0 0.0
      %1209 = vmatmul.mubr.f32.gmra.mrb[0].mxu0 %v1001
      %v1210 = vpop.f32.mrb[0].mxu0
      %v1211 = vadd.f32 0.0, %v1210
      %v1212 = vpop.f32.mrb[0].mxu0
      %1213 = vmatprep.mubr.f32.mxu0 0.0
      %1214 = vmatmul.mubr.f32.gmra.mrb[0].mxu0 %v1004
      %v1215 = vpop.f32.mrb[0].mxu0
      %v1216 = vadd.f32 0.0, %v1215
      %v1217 = vpop.f32.mrb[0].mxu0
      %1218 = vdwg.mxu0
      %v1219 = vadd.f32 %v746, %v1076
      %v1220 = vadd.f32 %v751, %v1081
      %v1221 = vadd.f32 %v756, %v1086
      %v1222 = vadd.f32 %v761, %v1091
      %v1223 = vadd.f32 %v766, %v1096
      %v1224 = vadd.f32 %v771, %v1101
      %v1225 = vadd.f32 %v776, %v1106
      %v1226 = vadd.f32 %v781, %v1111
      %v1227 = vadd.f32 %v786, %v1116
      %v1228 = vadd.f32 %v791, %v1121
      %v1229 = vadd.f32 %v796, %v1126
      %v1230 = vadd.f32 %v801, %v1131
      %v1231 = vadd.f32 %v806, %v1136
      %v1232 = vadd.f32 %v811, %v1141
      %v1233 = vadd.f32 %v816, %v1146
      %v1234 = vadd.f32 %v821, %v1151
      %v1235 = vadd.f32 %v826, %v1156
      %v1236 = vadd.f32 %v831, %v1161
      %v1237 = vadd.f32 %v836, %v1166
      %v1238 = vadd.f32 %v841, %v1171
      %v1239 = vadd.f32 %v846, %v1176
      %v1240 = vadd.f32 %v851, %v1181
      %v1241 = vadd.f32 %v856, %v1186
      %v1242 = vadd.f32 %v861, %v1191
      %v1243 = vadd.f32 %v866, %v1196
      %v1244 = vadd.f32 %v871, %v1201
      %v1245 = vadd.f32 %v876, %v1206
      %v1246 = vadd.f32 %v881, %v1211
      %v1247 = vadd.f32 %v886, %v1216
      %v1248 = vld [vmem:[%s220 + $0x10] sm:$0xff]
      %v1249 = vld [vmem:[%s220 + $0x18] sm:$0xff]
      %v1250 = vld [vmem:[%s220 + $0x20] sm:$0xff]
      %v1251 = vld [vmem:[%s220 + $0x28] sm:$0xff]
      %v1252 = vld [vmem:[%s220 + $0x30] sm:$0xff]
      %v1253 = vld [vmem:[%s220 + $0x38] sm:$0xff]
      %v1254 = vld [vmem:[%s220 + $0x40] sm:$0xff]
      %v1255 = vld [vmem:[%s220 + $0x48] sm:$0xff]
      %v1256 = vld [vmem:[%s220 + $0x50] sm:$0xff]
      %v1257 = vld [vmem:[%s220 + $0x58] sm:$0xff]
      %v1258 = vld [vmem:[%s220 + $0x60] sm:$0xff]
      %v1259 = vld [vmem:[%s220 + $0x68] sm:$0xff]
      %v1260 = vld [vmem:[%s220 + $0x70] sm:$0xff]
      %v1261 = vld [vmem:[%s220 + $0x78] sm:$0xff]
      %v1262 = vld [vmem:[%s220 + $0x80] sm:$0xff]
      %v1263 = vld [vmem:[%s220 + $0x88] sm:$0xff]
      %v1264 = vld [vmem:[%s220 + $0x90] sm:$0xff]
      %v1265 = vld [vmem:[%s220 + $0x98] sm:$0xff]
      %v1266 = vld [vmem:[%s220 + $0xa0] sm:$0xff]
      %v1267 = vld [vmem:[%s220 + $0xa8] sm:$0xff]
      %v1268 = vld [vmem:[%s220 + $0xb0] sm:$0xff]
      %v1269 = vld [vmem:[%s220 + $0xb8] sm:$0xff]
      %v1270 = vld [vmem:[%s220 + $0xc0] sm:$0xff]
      %v1271 = vld [vmem:[%s220 + $0xc8] sm:$0xff]
      %v1272 = vld [vmem:[%s220 + $0xd0] sm:$0xff]
      %v1273 = vld [vmem:[%s220 + $0xd8] sm:$0xff]
      %v1274 = vld [vmem:[%s220 + $0xe0] sm:$0xff]
      %v1275 = vld [vmem:[%s220 + $0xe8] sm:$0xff]
      %v1276 = vld [vmem:[%s220 + $0xf0] sm:$0x3]
      %v1277 = vld [vmem:[%s1 + $0xc] sm:$0xf]
      %v1279 = vsel %vm287, %v1248, 0
      %v1282 = vsel %vm287, %v1249, 0
      %v1285 = vsel %vm287, %v1250, 0
      %v1288 = vsel %vm287, %v1251, 0
      %v1291 = vsel %vm287, %v1252, 0
      %v1294 = vsel %vm287, %v1253, 0
      %v1297 = vsel %vm287, %v1254, 0
      %v1300 = vsel %vm287, %v1255, 0
      %v1303 = vsel %vm287, %v1256, 0
      %v1306 = vsel %vm287, %v1257, 0
      %v1309 = vsel %vm287, %v1258, 0
      %v1312 = vsel %vm287, %v1259, 0
      %v1315 = vsel %vm287, %v1260, 0
      %v1318 = vsel %vm287, %v1261, 0
      %v1321 = vsel %vm287, %v1262, 0
      %v1324 = vsel %vm287, %v1263, 0
      %v1327 = vsel %vm287, %v1264, 0
      %v1330 = vsel %vm287, %v1265, 0
      %v1333 = vsel %vm287, %v1266, 0
      %v1336 = vsel %vm287, %v1267, 0
      %v1339 = vsel %vm287, %v1268, 0
      %v1342 = vsel %vm287, %v1269, 0
      %v1345 = vsel %vm287, %v1270, 0
      %v1348 = vsel %vm287, %v1271, 0
      %v1351 = vsel %vm287, %v1272, 0
      %v1354 = vsel %vm287, %v1273, 0
      %v1357 = vsel %vm287, %v1274, 0
      %v1360 = vsel %vm287, %v1275, 0
      %v1363 = vsel %vm287, %v1276, 0
      %v1366 = vsel %vm375, %v1277, 0
      %1368 = vmatprep.subr.mxu0 0.0
      %1369 = vmatpush1.msra.mxu0 %v1366
      %1370 = vmatprep.subr.mxu0 0.0
      %1371 = vmatpush1.msra.mxu0 0.0
      %1372 = vmatprep.subr.mxu0 0.0
      %1373 = vmatpush1.msra.mxu0 0.0
      %1374 = vmatprep.subr.mxu0 0.0
      %1375 = vmatpush1.msra.mxu0 0.0
      %1376 = vmatprep.subr.mxu0 0.0
      %1377 = vmatpush1.msra.mxu0 0.0
      %1378 = vmatprep.subr.mxu0 0.0
      %1379 = vmatpush1.msra.mxu0 0.0
      %1380 = vmatprep.subr.mxu0 0.0
      %1381 = vmatpush1.msra.mxu0 0.0
      %1382 = vmatprep.subr.mxu0 0.0
      %1383 = vmatpush1.msra.mxu0 0.0
      %1384 = vmatprep.subr.mxu0 0.0
      %1385 = vmatpush1.msra.mxu0 0.0
      %1386 = vmatprep.subr.mxu0 0.0
      %1387 = vmatpush1.msra.mxu0 0.0
      %1388 = vmatprep.subr.mxu0 0.0
      %1389 = vmatpush1.msra.mxu0 0.0
      %1390 = vmatprep.subr.mxu0 0.0
      %1391 = vmatpush1.msra.mxu0 0.0
      %1392 = vmatprep.subr.mxu0 0.0
      %1393 = vmatpush1.msra.mxu0 0.0
      %1394 = vmatprep.subr.mxu0 0.0
      %1395 = vmatpush1.msra.mxu0 0.0
      %1396 = vmatprep.subr.mxu0 0.0
      %1397 = vmatpush1.msra.mxu0 0.0
      %1398 = vmatprep.subr.mxu0 0.0
      %1399 = vmatpush1.msra.mxu0 0.0
      %1400 = vmatprep.subr.mxu0 0.0
      %1401 = vmatpush1.msra.mxu0 0.0
      %1402 = vmatprep.subr.mxu0 0.0
      %1403 = vmatpush1.msra.mxu0 0.0
      %1404 = vmatprep.subr.mxu0 0.0
      %1405 = vmatpush1.msra.mxu0 0.0
      %1406 = vmatprep.subr.mxu0 0.0
      %1407 = vmatpush1.msra.mxu0 0.0
      %1408 = vmatprep.subr.mxu0 0.0
      %1409 = vmatpush1.msra.mxu0 0.0
      %1410 = vmatprep.subr.mxu0 0.0
      %1411 = vmatpush1.msra.mxu0 0.0
      %1412 = vmatprep.subr.mxu0 0.0
      %1413 = vmatpush1.msra.mxu0 0.0
      %1414 = vmatprep.subr.mxu0 0.0
      %1415 = vmatpush1.msra.mxu0 0.0
      %1416 = vmatprep.subr.mxu0 0.0
      %1417 = vmatpush1.msra.mxu0 0.0
      %1418 = vmatprep.subr.mxu0 0.0
      %1419 = vmatpush1.msra.mxu0 0.0
      %1420 = vmatprep.subr.mxu0 0.0
      %1421 = vmatpush1.msra.mxu0 0.0
      %1422 = vmatprep.subr.mxu0 0.0
      %1423 = vmatpush1.msra.mxu0 0.0
      %1424 = vmatprep.subr.mxu0 0.0
      %1425 = vmatpush1.msra.mxu0 0.0
      %1426 = vmatprep.subr.mxu0 0.0
      %1427 = vmatpush1.msra.mxu0 0.0
      %1428 = vmatprep.subr.mxu0 0.0
      %1429 = vmatpush1.msra.mxu0 0.0
      %1430 = vmatprep.subr.mxu0 0.0
      %1431 = vmatpush1.msra.mxu0 0.0
      %1432 = vmatprep.mubr.f32.mxu0 0.0
      %1433 = vmatmul.mubr.f32.gmra.mrb[0].mxu0 %v1279
      %v1434 = vpop.f32.mrb[0].mxu0
      %v1435 = vadd.f32 0.0, %v1434
      %v1436 = vpop.f32.mrb[0].mxu0
      %1437 = vmatprep.mubr.f32.mxu0 0.0
      %1438 = vmatmul.mubr.f32.gmra.mrb[0].mxu0 %v1282
      %v1439 = vpop.f32.mrb[0].mxu0
      %v1440 = vadd.f32 0.0, %v1439
      %v1441 = vpop.f32.mrb[0].mxu0
      %1442 = vmatprep.mubr.f32.mxu0 0.0
      %1443 = vmatmul.mubr.f32.gmra.mrb[0].mxu0 %v1285
      %v1444 = vpop.f32.mrb[0].mxu0
      %v1445 = vadd.f32 0.0, %v1444
      %v1446 = vpop.f32.mrb[0].mxu0
      %1447 = vmatprep.mubr.f32.mxu0 0.0
      %1448 = vmatmul.mubr.f32.gmra.mrb[0].mxu0 %v1288
      %v1449 = vpop.f32.mrb[0].mxu0
      %v1450 = vadd.f32 0.0, %v1449
      %v1451 = vpop.f32.mrb[0].mxu0
      %1452 = vmatprep.mubr.f32.mxu0 0.0
      %1453 = vmatmul.mubr.f32.gmra.mrb[0].mxu0 %v1291
      %v1454 = vpop.f32.mrb[0].mxu0
      %v1455 = vadd.f32 0.0, %v1454
      %v1456 = vpop.f32.mrb[0].mxu0
      %1457 = vmatprep.mubr.f32.mxu0 0.0
      %1458 = vmatmul.mubr.f32.gmra.mrb[0].mxu0 %v1294
      %v1459 = vpop.f32.mrb[0].mxu0
      %v1460 = vadd.f32 0.0, %v1459
      %v1461 = vpop.f32.mrb[0].mxu0
      %1462 = vmatprep.mubr.f32.mxu0 0.0
      %1463 = vmatmul.mubr.f32.gmra.mrb[0].mxu0 %v1297
      %v1464 = vpop.f32.mrb[0].mxu0
      %v1465 = vadd.f32 0.0, %v1464
      %v1466 = vpop.f32.mrb[0].mxu0
      %1467 = vmatprep.mubr.f32.mxu0 0.0
      %1468 = vmatmul.mubr.f32.gmra.mrb[0].mxu0 %v1300
      %v1469 = vpop.f32.mrb[0].mxu0
      %v1470 = vadd.f32 0.0, %v1469
      %v1471 = vpop.f32.mrb[0].mxu0
      %1472 = vmatprep.mubr.f32.mxu0 0.0
      %1473 = vmatmul.mubr.f32.gmra.mrb[0].mxu0 %v1303
      %v1474 = vpop.f32.mrb[0].mxu0
      %v1475 = vadd.f32 0.0, %v1474
      %v1476 = vpop.f32.mrb[0].mxu0
      %1477 = vmatprep.mubr.f32.mxu0 0.0
      %1478 = vmatmul.mubr.f32.gmra.mrb[0].mxu0 %v1306
      %v1479 = vpop.f32.mrb[0].mxu0
      %v1480 = vadd.f32 0.0, %v1479
      %v1481 = vpop.f32.mrb[0].mxu0
      %1482 = vmatprep.mubr.f32.mxu0 0.0
      %1483 = vmatmul.mubr.f32.gmra.mrb[0].mxu0 %v1309
      %v1484 = vpop.f32.mrb[0].mxu0
      %v1485 = vadd.f32 0.0, %v1484
      %v1486 = vpop.f32.mrb[0].mxu0
      %1487 = vmatprep.mubr.f32.mxu0 0.0
      %1488 = vmatmul.mubr.f32.gmra.mrb[0].mxu0 %v1312
      %v1489 = vpop.f32.mrb[0].mxu0
      %v1490 = vadd.f32 0.0, %v1489
      %v1491 = vpop.f32.mrb[0].mxu0
      %1492 = vmatprep.mubr.f32.mxu0 0.0
      %1493 = vmatmul.mubr.f32.gmra.mrb[0].mxu0 %v1315
      %v1494 = vpop.f32.mrb[0].mxu0
      %v1495 = vadd.f32 0.0, %v1494
      %v1496 = vpop.f32.mrb[0].mxu0
      %1497 = vmatprep.mubr.f32.mxu0 0.0
      %1498 = vmatmul.mubr.f32.gmra.mrb[0].mxu0 %v1318
      %v1499 = vpop.f32.mrb[0].mxu0
      %v1500 = vadd.f32 0.0, %v1499
      %v1501 = vpop.f32.mrb[0].mxu0
      %1502 = vmatprep.mubr.f32.mxu0 0.0
      %1503 = vmatmul.mubr.f32.gmra.mrb[0].mxu0 %v1321
      %v1504 = vpop.f32.mrb[0].mxu0
      %v1505 = vadd.f32 0.0, %v1504
      %v1506 = vpop.f32.mrb[0].mxu0
      %1507 = vmatprep.mubr.f32.mxu0 0.0
      %1508 = vmatmul.mubr.f32.gmra.mrb[0].mxu0 %v1324
      %v1509 = vpop.f32.mrb[0].mxu0
      %v1510 = vadd.f32 0.0, %v1509
      %v1511 = vpop.f32.mrb[0].mxu0
      %1512 = vmatprep.mubr.f32.mxu0 0.0
      %1513 = vmatmul.mubr.f32.gmra.mrb[0].mxu0 %v1327
      %v1514 = vpop.f32.mrb[0].mxu0
      %v1515 = vadd.f32 0.0, %v1514
      %v1516 = vpop.f32.mrb[0].mxu0
      %1517 = vmatprep.mubr.f32.mxu0 0.0
      %1518 = vmatmul.mubr.f32.gmra.mrb[0].mxu0 %v1330
      %v1519 = vpop.f32.mrb[0].mxu0
      %v1520 = vadd.f32 0.0, %v1519
      %v1521 = vpop.f32.mrb[0].mxu0
      %1522 = vmatprep.mubr.f32.mxu0 0.0
      %1523 = vmatmul.mubr.f32.gmra.mrb[0].mxu0 %v1333
      %v1524 = vpop.f32.mrb[0].mxu0
      %v1525 = vadd.f32 0.0, %v1524
      %v1526 = vpop.f32.mrb[0].mxu0
      %1527 = vmatprep.mubr.f32.mxu0 0.0
      %1528 = vmatmul.mubr.f32.gmra.mrb[0].mxu0 %v1336
      %v1529 = vpop.f32.mrb[0].mxu0
      %v1530 = vadd.f32 0.0, %v1529
      %v1531 = vpop.f32.mrb[0].mxu0
      %1532 = vmatprep.mubr.f32.mxu0 0.0
      %1533 = vmatmul.mubr.f32.gmra.mrb[0].mxu0 %v1339
      %v1534 = vpop.f32.mrb[0].mxu0
      %v1535 = vadd.f32 0.0, %v1534
      %v1536 = vpop.f32.mrb[0].mxu0
      %1537 = vmatprep.mubr.f32.mxu0 0.0
      %1538 = vmatmul.mubr.f32.gmra.mrb[0].mxu0 %v1342
      %v1539 = vpop.f32.mrb[0].mxu0
      %v1540 = vadd.f32 0.0, %v1539
      %v1541 = vpop.f32.mrb[0].mxu0
      %1542 = vmatprep.mubr.f32.mxu0 0.0
      %1543 = vmatmul.mubr.f32.gmra.mrb[0].mxu0 %v1345
      %v1544 = vpop.f32.mrb[0].mxu0
      %v1545 = vadd.f32 0.0, %v1544
      %v1546 = vpop.f32.mrb[0].mxu0
      %1547 = vmatprep.mubr.f32.mxu0 0.0
      %1548 = vmatmul.mubr.f32.gmra.mrb[0].mxu0 %v1348
      %v1549 = vpop.f32.mrb[0].mxu0
      %v1550 = vadd.f32 0.0, %v1549
      %v1551 = vpop.f32.mrb[0].mxu0
      %1552 = vmatprep.mubr.f32.mxu0 0.0
      %1553 = vmatmul.mubr.f32.gmra.mrb[0].mxu0 %v1351
      %v1554 = vpop.f32.mrb[0].mxu0
      %v1555 = vadd.f32 0.0, %v1554
      %v1556 = vpop.f32.mrb[0].mxu0
      %1557 = vmatprep.mubr.f32.mxu0 0.0
      %1558 = vmatmul.mubr.f32.gmra.mrb[0].mxu0 %v1354
      %v1559 = vpop.f32.mrb[0].mxu0
      %v1560 = vadd.f32 0.0, %v1559
      %v1561 = vpop.f32.mrb[0].mxu0
      %1562 = vmatprep.mubr.f32.mxu0 0.0
      %1563 = vmatmul.mubr.f32.gmra.mrb[0].mxu0 %v1357
      %v1564 = vpop.f32.mrb[0].mxu0
      %v1565 = vadd.f32 0.0, %v1564
      %v1566 = vpop.f32.mrb[0].mxu0
      %1567 = vmatprep.mubr.f32.mxu0 0.0
      %1568 = vmatmul.mubr.f32.gmra.mrb[0].mxu0 %v1360
      %v1569 = vpop.f32.mrb[0].mxu0
      %v1570 = vadd.f32 0.0, %v1569
      %v1571 = vpop.f32.mrb[0].mxu0
      %1572 = vmatprep.mubr.f32.mxu0 0.0
      %1573 = vmatmul.mubr.f32.gmra.mrb[0].mxu0 %v1363
      %v1574 = vpop.f32.mrb[0].mxu0
      %v1575 = vadd.f32 0.0, %v1574
      %v1576 = vpop.f32.mrb[0].mxu0
      %1577 = vdwg.mxu0
      %v1578 = vadd.f32 %v1219, %v1435
      %v1579 = vadd.f32 %v1220, %v1440
      %v1580 = vadd.f32 %v1221, %v1445
      %v1581 = vadd.f32 %v1222, %v1450
      %v1582 = vadd.f32 %v1223, %v1455
      %v1583 = vadd.f32 %v1224, %v1460
      %v1584 = vadd.f32 %v1225, %v1465
      %v1585 = vadd.f32 %v1226, %v1470
      %v1586 = vadd.f32 %v1227, %v1475
      %v1587 = vadd.f32 %v1228, %v1480
      %v1588 = vadd.f32 %v1229, %v1485
      %v1589 = vadd.f32 %v1230, %v1490
      %v1590 = vadd.f32 %v1231, %v1495
      %v1591 = vadd.f32 %v1232, %v1500
      %v1592 = vadd.f32 %v1233, %v1505
      %v1593 = vadd.f32 %v1234, %v1510
      %v1594 = vadd.f32 %v1235, %v1515
      %v1595 = vadd.f32 %v1236, %v1520
      %v1596 = vadd.f32 %v1237, %v1525
      %v1597 = vadd.f32 %v1238, %v1530
      %v1598 = vadd.f32 %v1239, %v1535
      %v1599 = vadd.f32 %v1240, %v1540
      %v1600 = vadd.f32 %v1241, %v1545
      %v1601 = vadd.f32 %v1242, %v1550
      %v1602 = vadd.f32 %v1243, %v1555
      %v1603 = vadd.f32 %v1244, %v1560
      %v1604 = vadd.f32 %v1245, %v1565
      %v1605 = vadd.f32 %v1246, %v1570
      %v1606 = vadd.f32 %v1247, %v1575
      %v1607 = vld [vmem:[%s220 + $0x11] sm:$0xff]
      %v1608 = vld [vmem:[%s220 + $0x19] sm:$0xff]
      %v1609 = vld [vmem:[%s220 + $0x21] sm:$0xff]
      %v1610 = vld [vmem:[%s220 + $0x29] sm:$0xff]
      %v1611 = vld [vmem:[%s220 + $0x31] sm:$0xff]
      %v1612 = vld [vmem:[%s220 + $0x39] sm:$0xff]
      %v1613 = vld [vmem:[%s220 + $0x41] sm:$0xff]
      %v1614 = vld [vmem:[%s220 + $0x49] sm:$0xff]
      %v1615 = vld [vmem:[%s220 + $0x51] sm:$0xff]
      %v1616 = vld [vmem:[%s220 + $0x59] sm:$0xff]
      %v1617 = vld [vmem:[%s220 + $0x61] sm:$0xff]
      %v1618 = vld [vmem:[%s220 + $0x69] sm:$0xff]
      %v1619 = vld [vmem:[%s220 + $0x71] sm:$0xff]
      %v1620 = vld [vmem:[%s220 + $0x79] sm:$0xff]
      %v1621 = vld [vmem:[%s220 + $0x81] sm:$0xff]
      %v1622 = vld [vmem:[%s220 + $0x89] sm:$0xff]
      %v1623 = vld [vmem:[%s220 + $0x91] sm:$0xff]
      %v1624 = vld [vmem:[%s220 + $0x99] sm:$0xff]
      %v1625 = vld [vmem:[%s220 + $0xa1] sm:$0xff]
      %v1626 = vld [vmem:[%s220 + $0xa9] sm:$0xff]
      %v1627 = vld [vmem:[%s220 + $0xb1] sm:$0xff]
      %v1628 = vld [vmem:[%s220 + $0xb9] sm:$0xff]
      %v1629 = vld [vmem:[%s220 + $0xc1] sm:$0xff]
      %v1630 = vld [vmem:[%s220 + $0xc9] sm:$0xff]
      %v1631 = vld [vmem:[%s220 + $0xd1] sm:$0xff]
      %v1632 = vld [vmem:[%s220 + $0xd9] sm:$0xff]
      %v1633 = vld [vmem:[%s220 + $0xe1] sm:$0xff]
      %v1634 = vld [vmem:[%s220 + $0xe9] sm:$0xff]
      %v1635 = vld [vmem:[%s220 + $0xf1] sm:$0x3]
      %v1636 = vld [vmem:[%s1 + $0x10] sm:$0xf]
      %v1638 = vsel %vm287, %v1607, 0
      %v1641 = vsel %vm287, %v1608, 0
      %v1644 = vsel %vm287, %v1609, 0
      %v1647 = vsel %vm287, %v1610, 0
      %v1650 = vsel %vm287, %v1611, 0
      %v1653 = vsel %vm287, %v1612, 0
      %v1656 = vsel %vm287, %v1613, 0
      %v1659 = vsel %vm287, %v1614, 0
      %v1662 = vsel %vm287, %v1615, 0
      %v1665 = vsel %vm287, %v1616, 0
      %v1668 = vsel %vm287, %v1617, 0
      %v1671 = vsel %vm287, %v1618, 0
      %v1674 = vsel %vm287, %v1619, 0
      %v1677 = vsel %vm287, %v1620, 0
      %v1680 = vsel %vm287, %v1621, 0
      %v1683 = vsel %vm287, %v1622, 0
      %v1686 = vsel %vm287, %v1623, 0
      %v1689 = vsel %vm287, %v1624, 0
      %v1692 = vsel %vm287, %v1625, 0
      %v1695 = vsel %vm287, %v1626, 0
      %v1698 = vsel %vm287, %v1627, 0
      %v1701 = vsel %vm287, %v1628, 0
      %v1704 = vsel %vm287, %v1629, 0
      %v1707 = vsel %vm287, %v1630, 0
      %v1710 = vsel %vm287, %v1631, 0
      %v1713 = vsel %vm287, %v1632, 0
      %v1716 = vsel %vm287, %v1633, 0
      %v1719 = vsel %vm287, %v1634, 0
      %v1722 = vsel %vm287, %v1635, 0
      %v1725 = vsel %vm375, %v1636, 0
      %1727 = vmatprep.subr.mxu0 0.0
      %1728 = vmatpush1.msra.mxu0 %v1725
      %1729 = vmatprep.subr.mxu0 0.0
      %1730 = vmatpush1.msra.mxu0 0.0
      %1731 = vmatprep.subr.mxu0 0.0
      %1732 = vmatpush1.msra.mxu0 0.0
      %1733 = vmatprep.subr.mxu0 0.0
      %1734 = vmatpush1.msra.mxu0 0.0
      %1735 = vmatprep.subr.mxu0 0.0
      %1736 = vmatpush1.msra.mxu0 0.0
      %1737 = vmatprep.subr.mxu0 0.0
      %1738 = vmatpush1.msra.mxu0 0.0
      %1739 = vmatprep.subr.mxu0 0.0
      %1740 = vmatpush1.msra.mxu0 0.0
      %1741 = vmatprep.subr.mxu0 0.0
      %1742 = vmatpush1.msra.mxu0 0.0
      %1743 = vmatprep.subr.mxu0 0.0
      %1744 = vmatpush1.msra.mxu0 0.0
      %1745 = vmatprep.subr.mxu0 0.0
      %1746 = vmatpush1.msra.mxu0 0.0
      %1747 = vmatprep.subr.mxu0 0.0
      %1748 = vmatpush1.msra.mxu0 0.0
      %1749 = vmatprep.subr.mxu0 0.0
      %1750 = vmatpush1.msra.mxu0 0.0
      %1751 = vmatprep.subr.mxu0 0.0
      %1752 = vmatpush1.msra.mxu0 0.0
      %1753 = vmatprep.subr.mxu0 0.0
      %1754 = vmatpush1.msra.mxu0 0.0
      %1755 = vmatprep.subr.mxu0 0.0
      %1756 = vmatpush1.msra.mxu0 0.0
      %1757 = vmatprep.subr.mxu0 0.0
      %1758 = vmatpush1.msra.mxu0 0.0
      %1759 = vmatprep.subr.mxu0 0.0
      %1760 = vmatpush1.msra.mxu0 0.0
      %1761 = vmatprep.subr.mxu0 0.0
      %1762 = vmatpush1.msra.mxu0 0.0
      %1763 = vmatprep.subr.mxu0 0.0
      %1764 = vmatpush1.msra.mxu0 0.0
      %1765 = vmatprep.subr.mxu0 0.0
      %1766 = vmatpush1.msra.mxu0 0.0
      %1767 = vmatprep.subr.mxu0 0.0
      %1768 = vmatpush1.msra.mxu0 0.0
      %1769 = vmatprep.subr.mxu0 0.0
      %1770 = vmatpush1.msra.mxu0 0.0
      %1771 = vmatprep.subr.mxu0 0.0
      %1772 = vmatpush1.msra.mxu0 0.0
      %1773 = vmatprep.subr.mxu0 0.0
      %1774 = vmatpush1.msra.mxu0 0.0
      %1775 = vmatprep.subr.mxu0 0.0
      %1776 = vmatpush1.msra.mxu0 0.0
      %1777 = vmatprep.subr.mxu0 0.0
      %1778 = vmatpush1.msra.mxu0 0.0
      %1779 = vmatprep.subr.mxu0 0.0
      %1780 = vmatpush1.msra.mxu0 0.0
      %1781 = vmatprep.subr.mxu0 0.0
      %1782 = vmatpush1.msra.mxu0 0.0
      %1783 = vmatprep.subr.mxu0 0.0
      %1784 = vmatpush1.msra.mxu0 0.0
      %1785 = vmatprep.subr.mxu0 0.0
      %1786 = vmatpush1.msra.mxu0 0.0
      %1787 = vmatprep.subr.mxu0 0.0
      %1788 = vmatpush1.msra.mxu0 0.0
      %1789 = vmatprep.subr.mxu0 0.0
      %1790 = vmatpush1.msra.mxu0 0.0
      %1791 = vmatprep.mubr.f32.mxu0 0.0
      %1792 = vmatmul.mubr.f32.gmra.mrb[0].mxu0 %v1638
      %v1793 = vpop.f32.mrb[0].mxu0
      %v1794 = vadd.f32 0.0, %v1793
      %v1795 = vpop.f32.mrb[0].mxu0
      %1796 = vmatprep.mubr.f32.mxu0 0.0
      %1797 = vmatmul.mubr.f32.gmra.mrb[0].mxu0 %v1641
      %v1798 = vpop.f32.mrb[0].mxu0
      %v1799 = vadd.f32 0.0, %v1798
      %v1800 = vpop.f32.mrb[0].mxu0
      %1801 = vmatprep.mubr.f32.mxu0 0.0
      %1802 = vmatmul.mubr.f32.gmra.mrb[0].mxu0 %v1644
      %v1803 = vpop.f32.mrb[0].mxu0
      %v1804 = vadd.f32 0.0, %v1803
      %v1805 = vpop.f32.mrb[0].mxu0
      %1806 = vmatprep.mubr.f32.mxu0 0.0
      %1807 = vmatmul.mubr.f32.gmra.mrb[0].mxu0 %v1647
      %v1808 = vpop.f32.mrb[0].mxu0
      %v1809 = vadd.f32 0.0, %v1808
      %v1810 = vpop.f32.mrb[0].mxu0
      %1811 = vmatprep.mubr.f32.mxu0 0.0
      %1812 = vmatmul.mubr.f32.gmra.mrb[0].mxu0 %v1650
      %v1813 = vpop.f32.mrb[0].mxu0
      %v1814 = vadd.f32 0.0, %v1813
      %v1815 = vpop.f32.mrb[0].mxu0
      %1816 = vmatprep.mubr.f32.mxu0 0.0
      %1817 = vmatmul.mubr.f32.gmra.mrb[0].mxu0 %v1653
      %v1818 = vpop.f32.mrb[0].mxu0
      %v1819 = vadd.f32 0.0, %v1818
      %v1820 = vpop.f32.mrb[0].mxu0
      %1821 = vmatprep.mubr.f32.mxu0 0.0
      %1822 = vmatmul.mubr.f32.gmra.mrb[0].mxu0 %v1656
      %v1823 = vpop.f32.mrb[0].mxu0
      %v1824 = vadd.f32 0.0, %v1823
      %v1825 = vpop.f32.mrb[0].mxu0
      %1826 = vmatprep.mubr.f32.mxu0 0.0
      %1827 = vmatmul.mubr.f32.gmra.mrb[0].mxu0 %v1659
      %v1828 = vpop.f32.mrb[0].mxu0
      %v1829 = vadd.f32 0.0, %v1828
      %v1830 = vpop.f32.mrb[0].mxu0
      %1831 = vmatprep.mubr.f32.mxu0 0.0
      %1832 = vmatmul.mubr.f32.gmra.mrb[0].mxu0 %v1662
      %v1833 = vpop.f32.mrb[0].mxu0
      %v1834 = vadd.f32 0.0, %v1833
      %v1835 = vpop.f32.mrb[0].mxu0
      %1836 = vmatprep.mubr.f32.mxu0 0.0
      %1837 = vmatmul.mubr.f32.gmra.mrb[0].mxu0 %v1665
      %v1838 = vpop.f32.mrb[0].mxu0
      %v1839 = vadd.f32 0.0, %v1838
      %v1840 = vpop.f32.mrb[0].mxu0
      %1841 = vmatprep.mubr.f32.mxu0 0.0
      %1842 = vmatmul.mubr.f32.gmra.mrb[0].mxu0 %v1668
      %v1843 = vpop.f32.mrb[0].mxu0
      %v1844 = vadd.f32 0.0, %v1843
      %v1845 = vpop.f32.mrb[0].mxu0
      %1846 = vmatprep.mubr.f32.mxu0 0.0
      %1847 = vmatmul.mubr.f32.gmra.mrb[0].mxu0 %v1671
      %v1848 = vpop.f32.mrb[0].mxu0
      %v1849 = vadd.f32 0.0, %v1848
      %v1850 = vpop.f32.mrb[0].mxu0
      %1851 = vmatprep.mubr.f32.mxu0 0.0
      %1852 = vmatmul.mubr.f32.gmra.mrb[0].mxu0 %v1674
      %v1853 = vpop.f32.mrb[0].mxu0
      %v1854 = vadd.f32 0.0, %v1853
      %v1855 = vpop.f32.mrb[0].mxu0
      %1856 = vmatprep.mubr.f32.mxu0 0.0
      %1857 = vmatmul.mubr.f32.gmra.mrb[0].mxu0 %v1677
      %v1858 = vpop.f32.mrb[0].mxu0
      %v1859 = vadd.f32 0.0, %v1858
      %v1860 = vpop.f32.mrb[0].mxu0
      %1861 = vmatprep.mubr.f32.mxu0 0.0
      %1862 = vmatmul.mubr.f32.gmra.mrb[0].mxu0 %v1680
      %v1863 = vpop.f32.mrb[0].mxu0
      %v1864 = vadd.f32 0.0, %v1863
      %v1865 = vpop.f32.mrb[0].mxu0
      %1866 = vmatprep.mubr.f32.mxu0 0.0
      %1867 = vmatmul.mubr.f32.gmra.mrb[0].mxu0 %v1683
      %v1868 = vpop.f32.mrb[0].mxu0
      %v1869 = vadd.f32 0.0, %v1868
      %v1870 = vpop.f32.mrb[0].mxu0
      %1871 = vmatprep.mubr.f32.mxu0 0.0
      %1872 = vmatmul.mubr.f32.gmra.mrb[0].mxu0 %v1686
      %v1873 = vpop.f32.mrb[0].mxu0
      %v1874 = vadd.f32 0.0, %v1873
      %v1875 = vpop.f32.mrb[0].mxu0
      %1876 = vmatprep.mubr.f32.mxu0 0.0
      %1877 = vmatmul.mubr.f32.gmra.mrb[0].mxu0 %v1689
      %v1878 = vpop.f32.mrb[0].mxu0
      %v1879 = vadd.f32 0.0, %v1878
      %v1880 = vpop.f32.mrb[0].mxu0
      %1881 = vmatprep.mubr.f32.mxu0 0.0
      %1882 = vmatmul.mubr.f32.gmra.mrb[0].mxu0 %v1692
      %v1883 = vpop.f32.mrb[0].mxu0
      %v1884 = vadd.f32 0.0, %v1883
      %v1885 = vpop.f32.mrb[0].mxu0
      %1886 = vmatprep.mubr.f32.mxu0 0.0
      %1887 = vmatmul.mubr.f32.gmra.mrb[0].mxu0 %v1695
      %v1888 = vpop.f32.mrb[0].mxu0
      %v1889 = vadd.f32 0.0, %v1888
      %v1890 = vpop.f32.mrb[0].mxu0
      %1891 = vmatprep.mubr.f32.mxu0 0.0
      %1892 = vmatmul.mubr.f32.gmra.mrb[0].mxu0 %v1698
      %v1893 = vpop.f32.mrb[0].mxu0
      %v1894 = vadd.f32 0.0, %v1893
      %v1895 = vpop.f32.mrb[0].mxu0
      %1896 = vmatprep.mubr.f32.mxu0 0.0
      %1897 = vmatmul.mubr.f32.gmra.mrb[0].mxu0 %v1701
      %v1898 = vpop.f32.mrb[0].mxu0
      %v1899 = vadd.f32 0.0, %v1898
      %v1900 = vpop.f32.mrb[0].mxu0
      %1901 = vmatprep.mubr.f32.mxu0 0.0
      %1902 = vmatmul.mubr.f32.gmra.mrb[0].mxu0 %v1704
      %v1903 = vpop.f32.mrb[0].mxu0
      %v1904 = vadd.f32 0.0, %v1903
      %v1905 = vpop.f32.mrb[0].mxu0
      %1906 = vmatprep.mubr.f32.mxu0 0.0
      %1907 = vmatmul.mubr.f32.gmra.mrb[0].mxu0 %v1707
      %v1908 = vpop.f32.mrb[0].mxu0
      %v1909 = vadd.f32 0.0, %v1908
      %v1910 = vpop.f32.mrb[0].mxu0
      %1911 = vmatprep.mubr.f32.mxu0 0.0
      %1912 = vmatmul.mubr.f32.gmra.mrb[0].mxu0 %v1710
      %v1913 = vpop.f32.mrb[0].mxu0
      %v1914 = vadd.f32 0.0, %v1913
      %v1915 = vpop.f32.mrb[0].mxu0
      %1916 = vmatprep.mubr.f32.mxu0 0.0
      %1917 = vmatmul.mubr.f32.gmra.mrb[0].mxu0 %v1713
      %v1918 = vpop.f32.mrb[0].mxu0
      %v1919 = vadd.f32 0.0, %v1918
      %v1920 = vpop.f32.mrb[0].mxu0
      %1921 = vmatprep.mubr.f32.mxu0 0.0
      %1922 = vmatmul.mubr.f32.gmra.mrb[0].mxu0 %v1716
      %v1923 = vpop.f32.mrb[0].mxu0
      %v1924 = vadd.f32 0.0, %v1923
      %v1925 = vpop.f32.mrb[0].mxu0
      %1926 = vmatprep.mubr.f32.mxu0 0.0
      %1927 = vmatmul.mubr.f32.gmra.mrb[0].mxu0 %v1719
      %v1928 = vpop.f32.mrb[0].mxu0
      %v1929 = vadd.f32 0.0, %v1928
      %v1930 = vpop.f32.mrb[0].mxu0
      %1931 = vmatprep.mubr.f32.mxu0 0.0
      %1932 = vmatmul.mubr.f32.gmra.mrb[0].mxu0 %v1722
      %v1933 = vpop.f32.mrb[0].mxu0
      %v1934 = vadd.f32 0.0, %v1933
      %v1935 = vpop.f32.mrb[0].mxu0
      %1936 = vdwg.mxu0
      %v1937 = vadd.f32 %v1578, %v1794
      %v1938 = vadd.f32 %v1579, %v1799
      %v1939 = vadd.f32 %v1580, %v1804
      %v1940 = vadd.f32 %v1581, %v1809
      %v1941 = vadd.f32 %v1582, %v1814
      %v1942 = vadd.f32 %v1583, %v1819
      %v1943 = vadd.f32 %v1584, %v1824
      %v1944 = vadd.f32 %v1585, %v1829
      %v1945 = vadd.f32 %v1586, %v1834
      %v1946 = vadd.f32 %v1587, %v1839
      %v1947 = vadd.f32 %v1588, %v1844
      %v1948 = vadd.f32 %v1589, %v1849
      %v1949 = vadd.f32 %v1590, %v1854
      %v1950 = vadd.f32 %v1591, %v1859
      %v1951 = vadd.f32 %v1592, %v1864
      %v1952 = vadd.f32 %v1593, %v1869
      %v1953 = vadd.f32 %v1594, %v1874
      %v1954 = vadd.f32 %v1595, %v1879
      %v1955 = vadd.f32 %v1596, %v1884
      %v1956 = vadd.f32 %v1597, %v1889
      %v1957 = vadd.f32 %v1598, %v1894
      %v1958 = vadd.f32 %v1599, %v1899
      %v1959 = vadd.f32 %v1600, %v1904
      %v1960 = vadd.f32 %v1601, %v1909
      %v1961 = vadd.f32 %v1602, %v1914
      %v1962 = vadd.f32 %v1603, %v1919
      %v1963 = vadd.f32 %v1604, %v1924
      %v1964 = vadd.f32 %v1605, %v1929
      %v1965 = vadd.f32 %v1606, %v1934
      %v1966 = vld [vmem:[%s220 + $0x12] sm:$0xff]
      %v1967 = vld [vmem:[%s220 + $0x1a] sm:$0xff]
      %v1968 = vld [vmem:[%s220 + $0x22] sm:$0xff]
      %v1969 = vld [vmem:[%s220 + $0x2a] sm:$0xff]
      %v1970 = vld [vmem:[%s220 + $0x32] sm:$0xff]
      %v1971 = vld [vmem:[%s220 + $0x3a] sm:$0xff]
      %v1972 = vld [vmem:[%s220 + $0x42] sm:$0xff]
      %v1973 = vld [vmem:[%s220 + $0x4a] sm:$0xff]
      %v1974 = vld [vmem:[%s220 + $0x52] sm:$0xff]
      %v1975 = vld [vmem:[%s220 + $0x5a] sm:$0xff]
      %v1976 = vld [vmem:[%s220 + $0x62] sm:$0xff]
      %v1977 = vld [vmem:[%s220 + $0x6a] sm:$0xff]
      %v1978 = vld [vmem:[%s220 + $0x72] sm:$0xff]
      %v1979 = vld [vmem:[%s220 + $0x7a] sm:$0xff]
      %v1980 = vld [vmem:[%s220 + $0x82] sm:$0xff]
      %v1981 = vld [vmem:[%s220 + $0x8a] sm:$0xff]
      %v1982 = vld [vmem:[%s220 + $0x92] sm:$0xff]
      %v1983 = vld [vmem:[%s220 + $0x9a] sm:$0xff]
      %v1984 = vld [vmem:[%s220 + $0xa2] sm:$0xff]
      %v1985 = vld [vmem:[%s220 + $0xaa] sm:$0xff]
      %v1986 = vld [vmem:[%s220 + $0xb2] sm:$0xff]
      %v1987 = vld [vmem:[%s220 + $0xba] sm:$0xff]
      %v1988 = vld [vmem:[%s220 + $0xc2] sm:$0xff]
      %v1989 = vld [vmem:[%s220 + $0xca] sm:$0xff]
      %v1990 = vld [vmem:[%s220 + $0xd2] sm:$0xff]
      %v1991 = vld [vmem:[%s220 + $0xda] sm:$0xff]
      %v1992 = vld [vmem:[%s220 + $0xe2] sm:$0xff]
      %v1993 = vld [vmem:[%s220 + $0xea] sm:$0xff]
      %v1994 = vld [vmem:[%s220 + $0xf2] sm:$0x3]
      %v1995 = vld [vmem:[%s1 + $0x14] sm:$0xf]
      %v1997 = vsel %vm287, %v1966, 0
      %v2000 = vsel %vm287, %v1967, 0
      %v2003 = vsel %vm287, %v1968, 0
      %v2006 = vsel %vm287, %v1969, 0
      %v2009 = vsel %vm287, %v1970, 0
      %v2012 = vsel %vm287, %v1971, 0
      %v2015 = vsel %vm287, %v1972, 0
      %v2018 = vsel %vm287, %v1973, 0
      %v2021 = vsel %vm287, %v1974, 0
      %v2024 = vsel %vm287, %v1975, 0
      %v2027 = vsel %vm287, %v1976, 0
      %v2030 = vsel %vm287, %v1977, 0
      %v2033 = vsel %vm287, %v1978, 0
      %v2036 = vsel %vm287, %v1979, 0
      %v2039 = vsel %vm287, %v1980, 0
      %v2042 = vsel %vm287, %v1981, 0
      %v2045 = vsel %vm287, %v1982, 0
      %v2048 = vsel %vm287, %v1983, 0
      %v2051 = vsel %vm287, %v1984, 0
      %v2054 = vsel %vm287, %v1985, 0
      %v2057 = vsel %vm287, %v1986, 0
      %v2060 = vsel %vm287, %v1987, 0
      %v2063 = vsel %vm287, %v1988, 0
      %v2066 = vsel %vm287, %v1989, 0
      %v2069 = vsel %vm287, %v1990, 0
      %v2072 = vsel %vm287, %v1991, 0
      %v2075 = vsel %vm287, %v1992, 0
      %v2078 = vsel %vm287, %v1993, 0
      %v2081 = vsel %vm287, %v1994, 0
      %v2084 = vsel %vm375, %v1995, 0
      %2086 = vmatprep.subr.mxu0 0.0
      %2087 = vmatpush1.msra.mxu0 %v2084
      %2088 = vmatprep.subr.mxu0 0.0
      %2089 = vmatpush1.msra.mxu0 0.0
      %2090 = vmatprep.subr.mxu0 0.0
      %2091 = vmatpush1.msra.mxu0 0.0
      %2092 = vmatprep.subr.mxu0 0.0
      %2093 = vmatpush1.msra.mxu0 0.0
      %2094 = vmatprep.subr.mxu0 0.0
      %2095 = vmatpush1.msra.mxu0 0.0
      %2096 = vmatprep.subr.mxu0 0.0
      %2097 = vmatpush1.msra.mxu0 0.0
      %2098 = vmatprep.subr.mxu0 0.0
      %2099 = vmatpush1.msra.mxu0 0.0
      %2100 = vmatprep.subr.mxu0 0.0
      %2101 = vmatpush1.msra.mxu0 0.0
      %2102 = vmatprep.subr.mxu0 0.0
      %2103 = vmatpush1.msra.mxu0 0.0
      %2104 = vmatprep.subr.mxu0 0.0
      %2105 = vmatpush1.msra.mxu0 0.0
      %2106 = vmatprep.subr.mxu0 0.0
      %2107 = vmatpush1.msra.mxu0 0.0
      %2108 = vmatprep.subr.mxu0 0.0
      %2109 = vmatpush1.msra.mxu0 0.0
      %2110 = vmatprep.subr.mxu0 0.0
      %2111 = vmatpush1.msra.mxu0 0.0
      %2112 = vmatprep.subr.mxu0 0.0
      %2113 = vmatpush1.msra.mxu0 0.0
      %2114 = vmatprep.subr.mxu0 0.0
      %2115 = vmatpush1.msra.mxu0 0.0
      %2116 = vmatprep.subr.mxu0 0.0
      %2117 = vmatpush1.msra.mxu0 0.0
      %2118 = vmatprep.subr.mxu0 0.0
      %2119 = vmatpush1.msra.mxu0 0.0
      %2120 = vmatprep.subr.mxu0 0.0
      %2121 = vmatpush1.msra.mxu0 0.0
      %2122 = vmatprep.subr.mxu0 0.0
      %2123 = vmatpush1.msra.mxu0 0.0
      %2124 = vmatprep.subr.mxu0 0.0
      %2125 = vmatpush1.msra.mxu0 0.0
      %2126 = vmatprep.subr.mxu0 0.0
      %2127 = vmatpush1.msra.mxu0 0.0
      %2128 = vmatprep.subr.mxu0 0.0
      %2129 = vmatpush1.msra.mxu0 0.0
      %2130 = vmatprep.subr.mxu0 0.0
      %2131 = vmatpush1.msra.mxu0 0.0
      %2132 = vmatprep.subr.mxu0 0.0
      %2133 = vmatpush1.msra.mxu0 0.0
      %2134 = vmatprep.subr.mxu0 0.0
      %2135 = vmatpush1.msra.mxu0 0.0
      %2136 = vmatprep.subr.mxu0 0.0
      %2137 = vmatpush1.msra.mxu0 0.0
      %2138 = vmatprep.subr.mxu0 0.0
      %2139 = vmatpush1.msra.mxu0 0.0
      %2140 = vmatprep.subr.mxu0 0.0
      %2141 = vmatpush1.msra.mxu0 0.0
      %2142 = vmatprep.subr.mxu0 0.0
      %2143 = vmatpush1.msra.mxu0 0.0
      %2144 = vmatprep.subr.mxu0 0.0
      %2145 = vmatpush1.msra.mxu0 0.0
      %2146 = vmatprep.subr.mxu0 0.0
      %2147 = vmatpush1.msra.mxu0 0.0
      %2148 = vmatprep.subr.mxu0 0.0
      %2149 = vmatpush1.msra.mxu0 0.0
      %2150 = vmatprep.mubr.f32.mxu0 0.0
      %2151 = vmatmul.mubr.f32.gmra.mrb[0].mxu0 %v1997
      %v2152 = vpop.f32.mrb[0].mxu0
      %v2153 = vadd.f32 0.0, %v2152
      %v2154 = vpop.f32.mrb[0].mxu0
      %2155 = vmatprep.mubr.f32.mxu0 0.0
      %2156 = vmatmul.mubr.f32.gmra.mrb[0].mxu0 %v2000
      %v2157 = vpop.f32.mrb[0].mxu0
      %v2158 = vadd.f32 0.0, %v2157
      %v2159 = vpop.f32.mrb[0].mxu0
      %2160 = vmatprep.mubr.f32.mxu0 0.0
      %2161 = vmatmul.mubr.f32.gmra.mrb[0].mxu0 %v2003
      %v2162 = vpop.f32.mrb[0].mxu0
      %v2163 = vadd.f32 0.0, %v2162
      %v2164 = vpop.f32.mrb[0].mxu0
      %2165 = vmatprep.mubr.f32.mxu0 0.0
      %2166 = vmatmul.mubr.f32.gmra.mrb[0].mxu0 %v2006
      %v2167 = vpop.f32.mrb[0].mxu0
      %v2168 = vadd.f32 0.0, %v2167
      %v2169 = vpop.f32.mrb[0].mxu0
      %2170 = vmatprep.mubr.f32.mxu0 0.0
      %2171 = vmatmul.mubr.f32.gmra.mrb[0].mxu0 %v2009
      %v2172 = vpop.f32.mrb[0].mxu0
      %v2173 = vadd.f32 0.0, %v2172
      %v2174 = vpop.f32.mrb[0].mxu0
      %2175 = vmatprep.mubr.f32.mxu0 0.0
      %2176 = vmatmul.mubr.f32.gmra.mrb[0].mxu0 %v2012
      %v2177 = vpop.f32.mrb[0].mxu0
      %v2178 = vadd.f32 0.0, %v2177
      %v2179 = vpop.f32.mrb[0].mxu0
      %2180 = vmatprep.mubr.f32.mxu0 0.0
      %2181 = vmatmul.mubr.f32.gmra.mrb[0].mxu0 %v2015
      %v2182 = vpop.f32.mrb[0].mxu0
      %v2183 = vadd.f32 0.0, %v2182
      %v2184 = vpop.f32.mrb[0].mxu0
      %2185 = vmatprep.mubr.f32.mxu0 0.0
      %2186 = vmatmul.mubr.f32.gmra.mrb[0].mxu0 %v2018
      %v2187 = vpop.f32.mrb[0].mxu0
      %v2188 = vadd.f32 0.0, %v2187
      %v2189 = vpop.f32.mrb[0].mxu0
      %2190 = vmatprep.mubr.f32.mxu0 0.0
      %2191 = vmatmul.mubr.f32.gmra.mrb[0].mxu0 %v2021
      %v2192 = vpop.f32.mrb[0].mxu0
      %v2193 = vadd.f32 0.0, %v2192
      %v2194 = vpop.f32.mrb[0].mxu0
      %2195 = vmatprep.mubr.f32.mxu0 0.0
      %2196 = vmatmul.mubr.f32.gmra.mrb[0].mxu0 %v2024
      %v2197 = vpop.f32.mrb[0].mxu0
      %v2198 = vadd.f32 0.0, %v2197
      %v2199 = vpop.f32.mrb[0].mxu0
      %2200 = vmatprep.mubr.f32.mxu0 0.0
      %2201 = vmatmul.mubr.f32.gmra.mrb[0].mxu0 %v2027
      %v2202 = vpop.f32.mrb[0].mxu0
      %v2203 = vadd.f32 0.0, %v2202
      %v2204 = vpop.f32.mrb[0].mxu0
      %2205 = vmatprep.mubr.f32.mxu0 0.0
      %2206 = vmatmul.mubr.f32.gmra.mrb[0].mxu0 %v2030
      %v2207 = vpop.f32.mrb[0].mxu0
      %v2208 = vadd.f32 0.0, %v2207
      %v2209 = vpop.f32.mrb[0].mxu0
      %2210 = vmatprep.mubr.f32.mxu0 0.0
      %2211 = vmatmul.mubr.f32.gmra.mrb[0].mxu0 %v2033
      %v2212 = vpop.f32.mrb[0].mxu0
      %v2213 = vadd.f32 0.0, %v2212
      %v2214 = vpop.f32.mrb[0].mxu0
      %2215 = vmatprep.mubr.f32.mxu0 0.0
      %2216 = vmatmul.mubr.f32.gmra.mrb[0].mxu0 %v2036
      %v2217 = vpop.f32.mrb[0].mxu0
      %v2218 = vadd.f32 0.0, %v2217
      %v2219 = vpop.f32.mrb[0].mxu0
      %2220 = vmatprep.mubr.f32.mxu0 0.0
      %2221 = vmatmul.mubr.f32.gmra.mrb[0].mxu0 %v2039
      %v2222 = vpop.f32.mrb[0].mxu0
      %v2223 = vadd.f32 0.0, %v2222
      %v2224 = vpop.f32.mrb[0].mxu0
      %2225 = vmatprep.mubr.f32.mxu0 0.0
      %2226 = vmatmul.mubr.f32.gmra.mrb[0].mxu0 %v2042
      %v2227 = vpop.f32.mrb[0].mxu0
      %v2228 = vadd.f32 0.0, %v2227
      %v2229 = vpop.f32.mrb[0].mxu0
      %2230 = vmatprep.mubr.f32.mxu0 0.0
      %2231 = vmatmul.mubr.f32.gmra.mrb[0].mxu0 %v2045
      %v2232 = vpop.f32.mrb[0].mxu0
      %v2233 = vadd.f32 0.0, %v2232
      %v2234 = vpop.f32.mrb[0].mxu0
      %2235 = vmatprep.mubr.f32.mxu0 0.0
      %2236 = vmatmul.mubr.f32.gmra.mrb[0].mxu0 %v2048
      %v2237 = vpop.f32.mrb[0].mxu0
      %v2238 = vadd.f32 0.0, %v2237
      %v2239 = vpop.f32.mrb[0].mxu0
      %2240 = vmatprep.mubr.f32.mxu0 0.0
      %2241 = vmatmul.mubr.f32.gmra.mrb[0].mxu0 %v2051
      %v2242 = vpop.f32.mrb[0].mxu0
      %v2243 = vadd.f32 0.0, %v2242
      %v2244 = vpop.f32.mrb[0].mxu0
      %2245 = vmatprep.mubr.f32.mxu0 0.0
      %2246 = vmatmul.mubr.f32.gmra.mrb[0].mxu0 %v2054
      %v2247 = vpop.f32.mrb[0].mxu0
      %v2248 = vadd.f32 0.0, %v2247
      %v2249 = vpop.f32.mrb[0].mxu0
      %2250 = vmatprep.mubr.f32.mxu0 0.0
      %2251 = vmatmul.mubr.f32.gmra.mrb[0].mxu0 %v2057
      %v2252 = vpop.f32.mrb[0].mxu0
      %v2253 = vadd.f32 0.0, %v2252
      %v2254 = vpop.f32.mrb[0].mxu0
      %2255 = vmatprep.mubr.f32.mxu0 0.0
      %2256 = vmatmul.mubr.f32.gmra.mrb[0].mxu0 %v2060
      %v2257 = vpop.f32.mrb[0].mxu0
      %v2258 = vadd.f32 0.0, %v2257
      %v2259 = vpop.f32.mrb[0].mxu0
      %2260 = vmatprep.mubr.f32.mxu0 0.0
      %2261 = vmatmul.mubr.f32.gmra.mrb[0].mxu0 %v2063
      %v2262 = vpop.f32.mrb[0].mxu0
      %v2263 = vadd.f32 0.0, %v2262
      %v2264 = vpop.f32.mrb[0].mxu0
      %2265 = vmatprep.mubr.f32.mxu0 0.0
      %2266 = vmatmul.mubr.f32.gmra.mrb[0].mxu0 %v2066
      %v2267 = vpop.f32.mrb[0].mxu0
      %v2268 = vadd.f32 0.0, %v2267
      %v2269 = vpop.f32.mrb[0].mxu0
      %2270 = vmatprep.mubr.f32.mxu0 0.0
      %2271 = vmatmul.mubr.f32.gmra.mrb[0].mxu0 %v2069
      %v2272 = vpop.f32.mrb[0].mxu0
      %v2273 = vadd.f32 0.0, %v2272
      %v2274 = vpop.f32.mrb[0].mxu0
      %2275 = vmatprep.mubr.f32.mxu0 0.0
      %2276 = vmatmul.mubr.f32.gmra.mrb[0].mxu0 %v2072
      %v2277 = vpop.f32.mrb[0].mxu0
      %v2278 = vadd.f32 0.0, %v2277
      %v2279 = vpop.f32.mrb[0].mxu0
      %2280 = vmatprep.mubr.f32.mxu0 0.0
      %2281 = vmatmul.mubr.f32.gmra.mrb[0].mxu0 %v2075
      %v2282 = vpop.f32.mrb[0].mxu0
      %v2283 = vadd.f32 0.0, %v2282
      %v2284 = vpop.f32.mrb[0].mxu0
      %2285 = vmatprep.mubr.f32.mxu0 0.0
      %2286 = vmatmul.mubr.f32.gmra.mrb[0].mxu0 %v2078
      %v2287 = vpop.f32.mrb[0].mxu0
      %v2288 = vadd.f32 0.0, %v2287
      %v2289 = vpop.f32.mrb[0].mxu0
      %2290 = vmatprep.mubr.f32.mxu0 0.0
      %2291 = vmatmul.mubr.f32.gmra.mrb[0].mxu0 %v2081
      %v2292 = vpop.f32.mrb[0].mxu0
      %v2293 = vadd.f32 0.0, %v2292
      %v2294 = vpop.f32.mrb[0].mxu0
      %2295 = vdwg.mxu0
      %v2296 = vadd.f32 %v1937, %v2153
      %v2297 = vadd.f32 %v1938, %v2158
      %v2298 = vadd.f32 %v1939, %v2163
      %v2299 = vadd.f32 %v1940, %v2168
      %v2300 = vadd.f32 %v1941, %v2173
      %v2301 = vadd.f32 %v1942, %v2178
      %v2302 = vadd.f32 %v1943, %v2183
      %v2303 = vadd.f32 %v1944, %v2188
      %v2304 = vadd.f32 %v1945, %v2193
      %v2305 = vadd.f32 %v1946, %v2198
      %v2306 = vadd.f32 %v1947, %v2203
      %v2307 = vadd.f32 %v1948, %v2208
      %v2308 = vadd.f32 %v1949, %v2213
      %v2309 = vadd.f32 %v1950, %v2218
      %v2310 = vadd.f32 %v1951, %v2223
      %v2311 = vadd.f32 %v1952, %v2228
      %v2312 = vadd.f32 %v1953, %v2233
      %v2313 = vadd.f32 %v1954, %v2238
      %v2314 = vadd.f32 %v1955, %v2243
      %v2315 = vadd.f32 %v1956, %v2248
      %v2316 = vadd.f32 %v1957, %v2253
      %v2317 = vadd.f32 %v1958, %v2258
      %v2318 = vadd.f32 %v1959, %v2263
      %v2319 = vadd.f32 %v1960, %v2268
      %v2320 = vadd.f32 %v1961, %v2273
      %v2321 = vadd.f32 %v1962, %v2278
      %v2322 = vadd.f32 %v1963, %v2283
      %v2323 = vadd.f32 %v1964, %v2288
      %v2324 = vadd.f32 %v1965, %v2293
      %v2325 = vld [vmem:[%s220 + $0x20] sm:$0xff]
      %v2326 = vld [vmem:[%s220 + $0x28] sm:$0xff]
      %v2327 = vld [vmem:[%s220 + $0x30] sm:$0xff]
      %v2328 = vld [vmem:[%s220 + $0x38] sm:$0xff]
      %v2329 = vld [vmem:[%s220 + $0x40] sm:$0xff]
      %v2330 = vld [vmem:[%s220 + $0x48] sm:$0xff]
      %v2331 = vld [vmem:[%s220 + $0x50] sm:$0xff]
      %v2332 = vld [vmem:[%s220 + $0x58] sm:$0xff]
      %v2333 = vld [vmem:[%s220 + $0x60] sm:$0xff]
      %v2334 = vld [vmem:[%s220 + $0x68] sm:$0xff]
      %v2335 = vld [vmem:[%s220 + $0x70] sm:$0xff]
      %v2336 = vld [vmem:[%s220 + $0x78] sm:$0xff]
      %v2337 = vld [vmem:[%s220 + $0x80] sm:$0xff]
      %v2338 = vld [vmem:[%s220 + $0x88] sm:$0xff]
      %v2339 = vld [vmem:[%s220 + $0x90] sm:$0xff]
      %v2340 = vld [vmem:[%s220 + $0x98] sm:$0xff]
      %v2341 = vld [vmem:[%s220 + $0xa0] sm:$0xff]
      %v2342 = vld [vmem:[%s220 + $0xa8] sm:$0xff]
      %v2343 = vld [vmem:[%s220 + $0xb0] sm:$0xff]
      %v2344 = vld [vmem:[%s220 + $0xb8] sm:$0xff]
      %v2345 = vld [vmem:[%s220 + $0xc0] sm:$0xff]
      %v2346 = vld [vmem:[%s220 + $0xc8] sm:$0xff]
      %v2347 = vld [vmem:[%s220 + $0xd0] sm:$0xff]
      %v2348 = vld [vmem:[%s220 + $0xd8] sm:$0xff]
      %v2349 = vld [vmem:[%s220 + $0xe0] sm:$0xff]
      %v2350 = vld [vmem:[%s220 + $0xe8] sm:$0xff]
      %v2351 = vld [vmem:[%s220 + $0xf0] sm:$0xff]
      %v2352 = vld [vmem:[%s220 + $0xf8] sm:$0xff]
      %v2353 = vld [vmem:[%s220 + $0x100] sm:$0x3]
      %v2354 = vld [vmem:[%s1 + $0x18] sm:$0xf]
      %v2356 = vsel %vm287, %v2325, 0
      %v2359 = vsel %vm287, %v2326, 0
      %v2362 = vsel %vm287, %v2327, 0
      %v2365 = vsel %vm287, %v2328, 0
      %v2368 = vsel %vm287, %v2329, 0
      %v2371 = vsel %vm287, %v2330, 0
      %v2374 = vsel %vm287, %v2331, 0
      %v2377 = vsel %vm287, %v2332, 0
      %v2380 = vsel %vm287, %v2333, 0
      %v2383 = vsel %vm287, %v2334, 0
      %v2386 = vsel %vm287, %v2335, 0
      %v2389 = vsel %vm287, %v2336, 0
      %v2392 = vsel %vm287, %v2337, 0
      %v2395 = vsel %vm287, %v2338, 0
      %v2398 = vsel %vm287, %v2339, 0
      %v2401 = vsel %vm287, %v2340, 0
      %v2404 = vsel %vm287, %v2341, 0
      %v2407 = vsel %vm287, %v2342, 0
      %v2410 = vsel %vm287, %v2343, 0
      %v2413 = vsel %vm287, %v2344, 0
      %v2416 = vsel %vm287, %v2345, 0
      %v2419 = vsel %vm287, %v2346, 0
      %v2422 = vsel %vm287, %v2347, 0
      %v2425 = vsel %vm287, %v2348, 0
      %v2428 = vsel %vm287, %v2349, 0
      %v2431 = vsel %vm287, %v2350, 0
      %v2434 = vsel %vm287, %v2351, 0
      %v2437 = vsel %vm287, %v2352, 0
      %v2440 = vsel %vm287, %v2353, 0
      %v2443 = vsel %vm375, %v2354, 0
      %2445 = vmatprep.subr.mxu0 0.0
      %2446 = vmatpush1.msra.mxu0 %v2443
      %2447 = vmatprep.subr.mxu0 0.0
      %2448 = vmatpush1.msra.mxu0 0.0
      %2449 = vmatprep.subr.mxu0 0.0
      %2450 = vmatpush1.msra.mxu0 0.0
      %2451 = vmatprep.subr.mxu0 0.0
      %2452 = vmatpush1.msra.mxu0 0.0
      %2453 = vmatprep.subr.mxu0 0.0
      %2454 = vmatpush1.msra.mxu0 0.0
      %2455 = vmatprep.subr.mxu0 0.0
      %2456 = vmatpush1.msra.mxu0 0.0
      %2457 = vmatprep.subr.mxu0 0.0
      %2458 = vmatpush1.msra.mxu0 0.0
      %2459 = vmatprep.subr.mxu0 0.0
      %2460 = vmatpush1.msra.mxu0 0.0
      %2461 = vmatprep.subr.mxu0 0.0
      %2462 = vmatpush1.msra.mxu0 0.0
      %2463 = vmatprep.subr.mxu0 0.0
      %2464 = vmatpush1.msra.mxu0 0.0
      %2465 = vmatprep.subr.mxu0 0.0
      %2466 = vmatpush1.msra.mxu0 0.0
      %2467 = vmatprep.subr.mxu0 0.0
      %2468 = vmatpush1.msra.mxu0 0.0
      %2469 = vmatprep.subr.mxu0 0.0
      %2470 = vmatpush1.msra.mxu0 0.0
      %2471 = vmatprep.subr.mxu0 0.0
      %2472 = vmatpush1.msra.mxu0 0.0
      %2473 = vmatprep.subr.mxu0 0.0
      %2474 = vmatpush1.msra.mxu0 0.0
      %2475 = vmatprep.subr.mxu0 0.0
      %2476 = vmatpush1.msra.mxu0 0.0
      %2477 = vmatprep.subr.mxu0 0.0
      %2478 = vmatpush1.msra.mxu0 0.0
      %2479 = vmatprep.subr.mxu0 0.0
      %2480 = vmatpush1.msra.mxu0 0.0
      %2481 = vmatprep.subr.mxu0 0.0
      %2482 = vmatpush1.msra.mxu0 0.0
      %2483 = vmatprep.subr.mxu0 0.0
      %2484 = vmatpush1.msra.mxu0 0.0
      %2485 = vmatprep.subr.mxu0 0.0
      %2486 = vmatpush1.msra.mxu0 0.0
      %2487 = vmatprep.subr.mxu0 0.0
      %2488 = vmatpush1.msra.mxu0 0.0
      %2489 = vmatprep.subr.mxu0 0.0
      %2490 = vmatpush1.msra.mxu0 0.0
      %2491 = vmatprep.subr.mxu0 0.0
      %2492 = vmatpush1.msra.mxu0 0.0
      %2493 = vmatprep.subr.mxu0 0.0
      %2494 = vmatpush1.msra.mxu0 0.0
      %2495 = vmatprep.subr.mxu0 0.0
      %2496 = vmatpush1.msra.mxu0 0.0
      %2497 = vmatprep.subr.mxu0 0.0
      %2498 = vmatpush1.msra.mxu0 0.0
      %2499 = vmatprep.subr.mxu0 0.0
      %2500 = vmatpush1.msra.mxu0 0.0
      %2501 = vmatprep.subr.mxu0 0.0
      %2502 = vmatpush1.msra.mxu0 0.0
      %2503 = vmatprep.subr.mxu0 0.0
      %2504 = vmatpush1.msra.mxu0 0.0
      %2505 = vmatprep.subr.mxu0 0.0
      %2506 = vmatpush1.msra.mxu0 0.0
      %2507 = vmatprep.subr.mxu0 0.0
      %2508 = vmatpush1.msra.mxu0 0.0
      %2509 = vmatprep.mubr.f32.mxu0 0.0
      %2510 = vmatmul.mubr.f32.gmra.mrb[0].mxu0 %v2356
      %v2511 = vpop.f32.mrb[0].mxu0
      %v2512 = vadd.f32 0.0, %v2511
      %v2513 = vpop.f32.mrb[0].mxu0
      %2514 = vmatprep.mubr.f32.mxu0 0.0
      %2515 = vmatmul.mubr.f32.gmra.mrb[0].mxu0 %v2359
      %v2516 = vpop.f32.mrb[0].mxu0
      %v2517 = vadd.f32 0.0, %v2516
      %v2518 = vpop.f32.mrb[0].mxu0
      %2519 = vmatprep.mubr.f32.mxu0 0.0
      %2520 = vmatmul.mubr.f32.gmra.mrb[0].mxu0 %v2362
      %v2521 = vpop.f32.mrb[0].mxu0
      %v2522 = vadd.f32 0.0, %v2521
      %v2523 = vpop.f32.mrb[0].mxu0
      %2524 = vmatprep.mubr.f32.mxu0 0.0
      %2525 = vmatmul.mubr.f32.gmra.mrb[0].mxu0 %v2365
      %v2526 = vpop.f32.mrb[0].mxu0
      %v2527 = vadd.f32 0.0, %v2526
      %v2528 = vpop.f32.mrb[0].mxu0
      %2529 = vmatprep.mubr.f32.mxu0 0.0
      %2530 = vmatmul.mubr.f32.gmra.mrb[0].mxu0 %v2368
      %v2531 = vpop.f32.mrb[0].mxu0
      %v2532 = vadd.f32 0.0, %v2531
      %v2533 = vpop.f32.mrb[0].mxu0
      %2534 = vmatprep.mubr.f32.mxu0 0.0
      %2535 = vmatmul.mubr.f32.gmra.mrb[0].mxu0 %v2371
      %v2536 = vpop.f32.mrb[0].mxu0
      %v2537 = vadd.f32 0.0, %v2536
      %v2538 = vpop.f32.mrb[0].mxu0
      %2539 = vmatprep.mubr.f32.mxu0 0.0
      %2540 = vmatmul.mubr.f32.gmra.mrb[0].mxu0 %v2374
      %v2541 = vpop.f32.mrb[0].mxu0
      %v2542 = vadd.f32 0.0, %v2541
      %v2543 = vpop.f32.mrb[0].mxu0
      %2544 = vmatprep.mubr.f32.mxu0 0.0
      %2545 = vmatmul.mubr.f32.gmra.mrb[0].mxu0 %v2377
      %v2546 = vpop.f32.mrb[0].mxu0
      %v2547 = vadd.f32 0.0, %v2546
      %v2548 = vpop.f32.mrb[0].mxu0
      %2549 = vmatprep.mubr.f32.mxu0 0.0
      %2550 = vmatmul.mubr.f32.gmra.mrb[0].mxu0 %v2380
      %v2551 = vpop.f32.mrb[0].mxu0
      %v2552 = vadd.f32 0.0, %v2551
      %v2553 = vpop.f32.mrb[0].mxu0
      %2554 = vmatprep.mubr.f32.mxu0 0.0
      %2555 = vmatmul.mubr.f32.gmra.mrb[0].mxu0 %v2383
      %v2556 = vpop.f32.mrb[0].mxu0
      %v2557 = vadd.f32 0.0, %v2556
      %v2558 = vpop.f32.mrb[0].mxu0
      %2559 = vmatprep.mubr.f32.mxu0 0.0
      %2560 = vmatmul.mubr.f32.gmra.mrb[0].mxu0 %v2386
      %v2561 = vpop.f32.mrb[0].mxu0
      %v2562 = vadd.f32 0.0, %v2561
      %v2563 = vpop.f32.mrb[0].mxu0
      %2564 = vmatprep.mubr.f32.mxu0 0.0
      %2565 = vmatmul.mubr.f32.gmra.mrb[0].mxu0 %v2389
      %v2566 = vpop.f32.mrb[0].mxu0
      %v2567 = vadd.f32 0.0, %v2566
      %v2568 = vpop.f32.mrb[0].mxu0
      %2569 = vmatprep.mubr.f32.mxu0 0.0
      %2570 = vmatmul.mubr.f32.gmra.mrb[0].mxu0 %v2392
      %v2571 = vpop.f32.mrb[0].mxu0
      %v2572 = vadd.f32 0.0, %v2571
      %v2573 = vpop.f32.mrb[0].mxu0
      %2574 = vmatprep.mubr.f32.mxu0 0.0
      %2575 = vmatmul.mubr.f32.gmra.mrb[0].mxu0 %v2395
      %v2576 = vpop.f32.mrb[0].mxu0
      %v2577 = vadd.f32 0.0, %v2576
      %v2578 = vpop.f32.mrb[0].mxu0
      %2579 = vmatprep.mubr.f32.mxu0 0.0
      %2580 = vmatmul.mubr.f32.gmra.mrb[0].mxu0 %v2398
      %v2581 = vpop.f32.mrb[0].mxu0
      %v2582 = vadd.f32 0.0, %v2581
      %v2583 = vpop.f32.mrb[0].mxu0
      %2584 = vmatprep.mubr.f32.mxu0 0.0
      %2585 = vmatmul.mubr.f32.gmra.mrb[0].mxu0 %v2401
      %v2586 = vpop.f32.mrb[0].mxu0
      %v2587 = vadd.f32 0.0, %v2586
      %v2588 = vpop.f32.mrb[0].mxu0
      %2589 = vmatprep.mubr.f32.mxu0 0.0
      %2590 = vmatmul.mubr.f32.gmra.mrb[0].mxu0 %v2404
      %v2591 = vpop.f32.mrb[0].mxu0
      %v2592 = vadd.f32 0.0, %v2591
      %v2593 = vpop.f32.mrb[0].mxu0
      %2594 = vmatprep.mubr.f32.mxu0 0.0
      %2595 = vmatmul.mubr.f32.gmra.mrb[0].mxu0 %v2407
      %v2596 = vpop.f32.mrb[0].mxu0
      %v2597 = vadd.f32 0.0, %v2596
      %v2598 = vpop.f32.mrb[0].mxu0
      %2599 = vmatprep.mubr.f32.mxu0 0.0
      %2600 = vmatmul.mubr.f32.gmra.mrb[0].mxu0 %v2410
      %v2601 = vpop.f32.mrb[0].mxu0
      %v2602 = vadd.f32 0.0, %v2601
      %v2603 = vpop.f32.mrb[0].mxu0
      %2604 = vmatprep.mubr.f32.mxu0 0.0
      %2605 = vmatmul.mubr.f32.gmra.mrb[0].mxu0 %v2413
      %v2606 = vpop.f32.mrb[0].mxu0
      %v2607 = vadd.f32 0.0, %v2606
      %v2608 = vpop.f32.mrb[0].mxu0
      %2609 = vmatprep.mubr.f32.mxu0 0.0
      %2610 = vmatmul.mubr.f32.gmra.mrb[0].mxu0 %v2416
      %v2611 = vpop.f32.mrb[0].mxu0
      %v2612 = vadd.f32 0.0, %v2611
      %v2613 = vpop.f32.mrb[0].mxu0
      %2614 = vmatprep.mubr.f32.mxu0 0.0
      %2615 = vmatmul.mubr.f32.gmra.mrb[0].mxu0 %v2419
      %v2616 = vpop.f32.mrb[0].mxu0
      %v2617 = vadd.f32 0.0, %v2616
      %v2618 = vpop.f32.mrb[0].mxu0
      %2619 = vmatprep.mubr.f32.mxu0 0.0
      %2620 = vmatmul.mubr.f32.gmra.mrb[0].mxu0 %v2422
      %v2621 = vpop.f32.mrb[0].mxu0
      %v2622 = vadd.f32 0.0, %v2621
      %v2623 = vpop.f32.mrb[0].mxu0
      %2624 = vmatprep.mubr.f32.mxu0 0.0
      %2625 = vmatmul.mubr.f32.gmra.mrb[0].mxu0 %v2425
      %v2626 = vpop.f32.mrb[0].mxu0
      %v2627 = vadd.f32 0.0, %v2626
      %v2628 = vpop.f32.mrb[0].mxu0
      %2629 = vmatprep.mubr.f32.mxu0 0.0
      %2630 = vmatmul.mubr.f32.gmra.mrb[0].mxu0 %v2428
      %v2631 = vpop.f32.mrb[0].mxu0
      %v2632 = vadd.f32 0.0, %v2631
      %v2633 = vpop.f32.mrb[0].mxu0
      %2634 = vmatprep.mubr.f32.mxu0 0.0
      %2635 = vmatmul.mubr.f32.gmra.mrb[0].mxu0 %v2431
      %v2636 = vpop.f32.mrb[0].mxu0
      %v2637 = vadd.f32 0.0, %v2636
      %v2638 = vpop.f32.mrb[0].mxu0
      %2639 = vmatprep.mubr.f32.mxu0 0.0
      %2640 = vmatmul.mubr.f32.gmra.mrb[0].mxu0 %v2434
      %v2641 = vpop.f32.mrb[0].mxu0
      %v2642 = vadd.f32 0.0, %v2641
      %v2643 = vpop.f32.mrb[0].mxu0
      %2644 = vmatprep.mubr.f32.mxu0 0.0
      %2645 = vmatmul.mubr.f32.gmra.mrb[0].mxu0 %v2437
      %v2646 = vpop.f32.mrb[0].mxu0
      %v2647 = vadd.f32 0.0, %v2646
      %v2648 = vpop.f32.mrb[0].mxu0
      %2649 = vmatprep.mubr.f32.mxu0 0.0
      %2650 = vmatmul.mubr.f32.gmra.mrb[0].mxu0 %v2440
      %v2651 = vpop.f32.mrb[0].mxu0
      %v2652 = vadd.f32 0.0, %v2651
      %v2653 = vpop.f32.mrb[0].mxu0
      %2654 = vdwg.mxu0
      %v2655 = vadd.f32 %v2296, %v2512
      %v2656 = vadd.f32 %v2297, %v2517
      %v2657 = vadd.f32 %v2298, %v2522
      %v2658 = vadd.f32 %v2299, %v2527
      %v2659 = vadd.f32 %v2300, %v2532
      %v2660 = vadd.f32 %v2301, %v2537
      %v2661 = vadd.f32 %v2302, %v2542
      %v2662 = vadd.f32 %v2303, %v2547
      %v2663 = vadd.f32 %v2304, %v2552
      %v2664 = vadd.f32 %v2305, %v2557
      %v2665 = vadd.f32 %v2306, %v2562
      %v2666 = vadd.f32 %v2307, %v2567
      %v2667 = vadd.f32 %v2308, %v2572
      %v2668 = vadd.f32 %v2309, %v2577
      %v2669 = vadd.f32 %v2310, %v2582
      %v2670 = vadd.f32 %v2311, %v2587
      %v2671 = vadd.f32 %v2312, %v2592
      %v2672 = vadd.f32 %v2313, %v2597
      %v2673 = vadd.f32 %v2314, %v2602
      %v2674 = vadd.f32 %v2315, %v2607
      %v2675 = vadd.f32 %v2316, %v2612
      %v2676 = vadd.f32 %v2317, %v2617
      %v2677 = vadd.f32 %v2318, %v2622
      %v2678 = vadd.f32 %v2319, %v2627
      %v2679 = vadd.f32 %v2320, %v2632
      %v2680 = vadd.f32 %v2321, %v2637
      %v2681 = vadd.f32 %v2322, %v2642
      %v2682 = vadd.f32 %v2323, %v2647
      %v2683 = vadd.f32 %v2324, %v2652
      %v2684 = vld [vmem:[%s220 + $0x21] sm:$0xff]
      %v2685 = vld [vmem:[%s220 + $0x29] sm:$0xff]
      %v2686 = vld [vmem:[%s220 + $0x31] sm:$0xff]
      %v2687 = vld [vmem:[%s220 + $0x39] sm:$0xff]
      %v2688 = vld [vmem:[%s220 + $0x41] sm:$0xff]
      %v2689 = vld [vmem:[%s220 + $0x49] sm:$0xff]
      %v2690 = vld [vmem:[%s220 + $0x51] sm:$0xff]
      %v2691 = vld [vmem:[%s220 + $0x59] sm:$0xff]
      %v2692 = vld [vmem:[%s220 + $0x61] sm:$0xff]
      %v2693 = vld [vmem:[%s220 + $0x69] sm:$0xff]
      %v2694 = vld [vmem:[%s220 + $0x71] sm:$0xff]
      %v2695 = vld [vmem:[%s220 + $0x79] sm:$0xff]
      %v2696 = vld [vmem:[%s220 + $0x81] sm:$0xff]
      %v2697 = vld [vmem:[%s220 + $0x89] sm:$0xff]
      %v2698 = vld [vmem:[%s220 + $0x91] sm:$0xff]
      %v2699 = vld [vmem:[%s220 + $0x99] sm:$0xff]
      %v2700 = vld [vmem:[%s220 + $0xa1] sm:$0xff]
      %v2701 = vld [vmem:[%s220 + $0xa9] sm:$0xff]
      %v2702 = vld [vmem:[%s220 + $0xb1] sm:$0xff]
      %v2703 = vld [vmem:[%s220 + $0xb9] sm:$0xff]
      %v2704 = vld [vmem:[%s220 + $0xc1] sm:$0xff]
      %v2705 = vld [vmem:[%s220 + $0xc9] sm:$0xff]
      %v2706 = vld [vmem:[%s220 + $0xd1] sm:$0xff]
      %v2707 = vld [vmem:[%s220 + $0xd9] sm:$0xff]
      %v2708 = vld [vmem:[%s220 + $0xe1] sm:$0xff]
      %v2709 = vld [vmem:[%s220 + $0xe9] sm:$0xff]
      %v2710 = vld [vmem:[%s220 + $0xf1] sm:$0xff]
      %v2711 = vld [vmem:[%s220 + $0xf9] sm:$0xff]
      %v2712 = vld [vmem:[%s220 + $0x101] sm:$0x3]
      %v2713 = vld [vmem:[%s1 + $0x1c] sm:$0xf]
      %v2715 = vsel %vm287, %v2684, 0
      %v2718 = vsel %vm287, %v2685, 0
      %v2721 = vsel %vm287, %v2686, 0
      %v2724 = vsel %vm287, %v2687, 0
      %v2727 = vsel %vm287, %v2688, 0
      %v2730 = vsel %vm287, %v2689, 0
      %v2733 = vsel %vm287, %v2690, 0
      %v2736 = vsel %vm287, %v2691, 0
      %v2739 = vsel %vm287, %v2692, 0
      %v2742 = vsel %vm287, %v2693, 0
      %v2745 = vsel %vm287, %v2694, 0
      %v2748 = vsel %vm287, %v2695, 0
      %v2751 = vsel %vm287, %v2696, 0
      %v2754 = vsel %vm287, %v2697, 0
      %v2757 = vsel %vm287, %v2698, 0
      %v2760 = vsel %vm287, %v2699, 0
      %v2763 = vsel %vm287, %v2700, 0
      %v2766 = vsel %vm287, %v2701, 0
      %v2769 = vsel %vm287, %v2702, 0
      %v2772 = vsel %vm287, %v2703, 0
      %v2775 = vsel %vm287, %v2704, 0
      %v2778 = vsel %vm287, %v2705, 0
      %v2781 = vsel %vm287, %v2706, 0
      %v2784 = vsel %vm287, %v2707, 0
      %v2787 = vsel %vm287, %v2708, 0
      %v2790 = vsel %vm287, %v2709, 0
      %v2793 = vsel %vm287, %v2710, 0
      %v2796 = vsel %vm287, %v2711, 0
      %v2799 = vsel %vm287, %v2712, 0
      %v2802 = vsel %vm375, %v2713, 0
      %2804 = vmatprep.subr.mxu0 0.0
      %2805 = vmatpush1.msra.mxu0 %v2802
      %2806 = vmatprep.subr.mxu0 0.0
      %2807 = vmatpush1.msra.mxu0 0.0
      %2808 = vmatprep.subr.mxu0 0.0
      %2809 = vmatpush1.msra.mxu0 0.0
      %2810 = vmatprep.subr.mxu0 0.0
      %2811 = vmatpush1.msra.mxu0 0.0
      %2812 = vmatprep.subr.mxu0 0.0
      %2813 = vmatpush1.msra.mxu0 0.0
      %2814 = vmatprep.subr.mxu0 0.0
      %2815 = vmatpush1.msra.mxu0 0.0
      %2816 = vmatprep.subr.mxu0 0.0
      %2817 = vmatpush1.msra.mxu0 0.0
      %2818 = vmatprep.subr.mxu0 0.0
      %2819 = vmatpush1.msra.mxu0 0.0
      %2820 = vmatprep.subr.mxu0 0.0
      %2821 = vmatpush1.msra.mxu0 0.0
      %2822 = vmatprep.subr.mxu0 0.0
      %2823 = vmatpush1.msra.mxu0 0.0
      %2824 = vmatprep.subr.mxu0 0.0
      %2825 = vmatpush1.msra.mxu0 0.0
      %2826 = vmatprep.subr.mxu0 0.0
      %2827 = vmatpush1.msra.mxu0 0.0
      %2828 = vmatprep.subr.mxu0 0.0
      %2829 = vmatpush1.msra.mxu0 0.0
      %2830 = vmatprep.subr.mxu0 0.0
      %2831 = vmatpush1.msra.mxu0 0.0
      %2832 = vmatprep.subr.mxu0 0.0
      %2833 = vmatpush1.msra.mxu0 0.0
      %2834 = vmatprep.subr.mxu0 0.0
      %2835 = vmatpush1.msra.mxu0 0.0
      %2836 = vmatprep.subr.mxu0 0.0
      %2837 = vmatpush1.msra.mxu0 0.0
      %2838 = vmatprep.subr.mxu0 0.0
      %2839 = vmatpush1.msra.mxu0 0.0
      %2840 = vmatprep.subr.mxu0 0.0
      %2841 = vmatpush1.msra.mxu0 0.0
      %2842 = vmatprep.subr.mxu0 0.0
      %2843 = vmatpush1.msra.mxu0 0.0
      %2844 = vmatprep.subr.mxu0 0.0
      %2845 = vmatpush1.msra.mxu0 0.0
      %2846 = vmatprep.subr.mxu0 0.0
      %2847 = vmatpush1.msra.mxu0 0.0
      %2848 = vmatprep.subr.mxu0 0.0
      %2849 = vmatpush1.msra.mxu0 0.0
      %2850 = vmatprep.subr.mxu0 0.0
      %2851 = vmatpush1.msra.mxu0 0.0
      %2852 = vmatprep.subr.mxu0 0.0
      %2853 = vmatpush1.msra.mxu0 0.0
      %2854 = vmatprep.subr.mxu0 0.0
      %2855 = vmatpush1.msra.mxu0 0.0
      %2856 = vmatprep.subr.mxu0 0.0
      %2857 = vmatpush1.msra.mxu0 0.0
      %2858 = vmatprep.subr.mxu0 0.0
      %2859 = vmatpush1.msra.mxu0 0.0
      %2860 = vmatprep.subr.mxu0 0.0
      %2861 = vmatpush1.msra.mxu0 0.0
      %2862 = vmatprep.subr.mxu0 0.0
      %2863 = vmatpush1.msra.mxu0 0.0
      %2864 = vmatprep.subr.mxu0 0.0
      %2865 = vmatpush1.msra.mxu0 0.0
      %2866 = vmatprep.subr.mxu0 0.0
      %2867 = vmatpush1.msra.mxu0 0.0
      %2868 = vmatprep.mubr.f32.mxu0 0.0
      %2869 = vmatmul.mubr.f32.gmra.mrb[0].mxu0 %v2715
      %v2870 = vpop.f32.mrb[0].mxu0
      %v2871 = vadd.f32 0.0, %v2870
      %v2872 = vpop.f32.mrb[0].mxu0
      %2873 = vmatprep.mubr.f32.mxu0 0.0
      %2874 = vmatmul.mubr.f32.gmra.mrb[0].mxu0 %v2718
      %v2875 = vpop.f32.mrb[0].mxu0
      %v2876 = vadd.f32 0.0, %v2875
      %v2877 = vpop.f32.mrb[0].mxu0
      %2878 = vmatprep.mubr.f32.mxu0 0.0
      %2879 = vmatmul.mubr.f32.gmra.mrb[0].mxu0 %v2721
      %v2880 = vpop.f32.mrb[0].mxu0
      %v2881 = vadd.f32 0.0, %v2880
      %v2882 = vpop.f32.mrb[0].mxu0
      %2883 = vmatprep.mubr.f32.mxu0 0.0
      %2884 = vmatmul.mubr.f32.gmra.mrb[0].mxu0 %v2724
      %v2885 = vpop.f32.mrb[0].mxu0
      %v2886 = vadd.f32 0.0, %v2885
      %v2887 = vpop.f32.mrb[0].mxu0
      %2888 = vmatprep.mubr.f32.mxu0 0.0
      %2889 = vmatmul.mubr.f32.gmra.mrb[0].mxu0 %v2727
      %v2890 = vpop.f32.mrb[0].mxu0
      %v2891 = vadd.f32 0.0, %v2890
      %v2892 = vpop.f32.mrb[0].mxu0
      %2893 = vmatprep.mubr.f32.mxu0 0.0
      %2894 = vmatmul.mubr.f32.gmra.mrb[0].mxu0 %v2730
      %v2895 = vpop.f32.mrb[0].mxu0
      %v2896 = vadd.f32 0.0, %v2895
      %v2897 = vpop.f32.mrb[0].mxu0
      %2898 = vmatprep.mubr.f32.mxu0 0.0
      %2899 = vmatmul.mubr.f32.gmra.mrb[0].mxu0 %v2733
      %v2900 = vpop.f32.mrb[0].mxu0
      %v2901 = vadd.f32 0.0, %v2900
      %v2902 = vpop.f32.mrb[0].mxu0
      %2903 = vmatprep.mubr.f32.mxu0 0.0
      %2904 = vmatmul.mubr.f32.gmra.mrb[0].mxu0 %v2736
      %v2905 = vpop.f32.mrb[0].mxu0
      %v2906 = vadd.f32 0.0, %v2905
      %v2907 = vpop.f32.mrb[0].mxu0
      %2908 = vmatprep.mubr.f32.mxu0 0.0
      %2909 = vmatmul.mubr.f32.gmra.mrb[0].mxu0 %v2739
      %v2910 = vpop.f32.mrb[0].mxu0
      %v2911 = vadd.f32 0.0, %v2910
      %v2912 = vpop.f32.mrb[0].mxu0
      %2913 = vmatprep.mubr.f32.mxu0 0.0
      %2914 = vmatmul.mubr.f32.gmra.mrb[0].mxu0 %v2742
      %v2915 = vpop.f32.mrb[0].mxu0
      %v2916 = vadd.f32 0.0, %v2915
      %v2917 = vpop.f32.mrb[0].mxu0
      %2918 = vmatprep.mubr.f32.mxu0 0.0
      %2919 = vmatmul.mubr.f32.gmra.mrb[0].mxu0 %v2745
      %v2920 = vpop.f32.mrb[0].mxu0
      %v2921 = vadd.f32 0.0, %v2920
      %v2922 = vpop.f32.mrb[0].mxu0
      %2923 = vmatprep.mubr.f32.mxu0 0.0
      %2924 = vmatmul.mubr.f32.gmra.mrb[0].mxu0 %v2748
      %v2925 = vpop.f32.mrb[0].mxu0
      %v2926 = vadd.f32 0.0, %v2925
      %v2927 = vpop.f32.mrb[0].mxu0
      %2928 = vmatprep.mubr.f32.mxu0 0.0
      %2929 = vmatmul.mubr.f32.gmra.mrb[0].mxu0 %v2751
      %v2930 = vpop.f32.mrb[0].mxu0
      %v2931 = vadd.f32 0.0, %v2930
      %v2932 = vpop.f32.mrb[0].mxu0
      %2933 = vmatprep.mubr.f32.mxu0 0.0
      %2934 = vmatmul.mubr.f32.gmra.mrb[0].mxu0 %v2754
      %v2935 = vpop.f32.mrb[0].mxu0
      %v2936 = vadd.f32 0.0, %v2935
      %v2937 = vpop.f32.mrb[0].mxu0
      %2938 = vmatprep.mubr.f32.mxu0 0.0
      %2939 = vmatmul.mubr.f32.gmra.mrb[0].mxu0 %v2757
      %v2940 = vpop.f32.mrb[0].mxu0
      %v2941 = vadd.f32 0.0, %v2940
      %v2942 = vpop.f32.mrb[0].mxu0
      %2943 = vmatprep.mubr.f32.mxu0 0.0
      %2944 = vmatmul.mubr.f32.gmra.mrb[0].mxu0 %v2760
      %v2945 = vpop.f32.mrb[0].mxu0
      %v2946 = vadd.f32 0.0, %v2945
      %v2947 = vpop.f32.mrb[0].mxu0
      %2948 = vmatprep.mubr.f32.mxu0 0.0
      %2949 = vmatmul.mubr.f32.gmra.mrb[0].mxu0 %v2763
      %v2950 = vpop.f32.mrb[0].mxu0
      %v2951 = vadd.f32 0.0, %v2950
      %v2952 = vpop.f32.mrb[0].mxu0
      %2953 = vmatprep.mubr.f32.mxu0 0.0
      %2954 = vmatmul.mubr.f32.gmra.mrb[0].mxu0 %v2766
      %v2955 = vpop.f32.mrb[0].mxu0
      %v2956 = vadd.f32 0.0, %v2955
      %v2957 = vpop.f32.mrb[0].mxu0
      %2958 = vmatprep.mubr.f32.mxu0 0.0
      %2959 = vmatmul.mubr.f32.gmra.mrb[0].mxu0 %v2769
      %v2960 = vpop.f32.mrb[0].mxu0
      %v2961 = vadd.f32 0.0, %v2960
      %v2962 = vpop.f32.mrb[0].mxu0
      %2963 = vmatprep.mubr.f32.mxu0 0.0
      %2964 = vmatmul.mubr.f32.gmra.mrb[0].mxu0 %v2772
      %v2965 = vpop.f32.mrb[0].mxu0
      %v2966 = vadd.f32 0.0, %v2965
      %v2967 = vpop.f32.mrb[0].mxu0
      %2968 = vmatprep.mubr.f32.mxu0 0.0
      %2969 = vmatmul.mubr.f32.gmra.mrb[0].mxu0 %v2775
      %v2970 = vpop.f32.mrb[0].mxu0
      %v2971 = vadd.f32 0.0, %v2970
      %v2972 = vpop.f32.mrb[0].mxu0
      %2973 = vmatprep.mubr.f32.mxu0 0.0
      %2974 = vmatmul.mubr.f32.gmra.mrb[0].mxu0 %v2778
      %v2975 = vpop.f32.mrb[0].mxu0
      %v2976 = vadd.f32 0.0, %v2975
      %v2977 = vpop.f32.mrb[0].mxu0
      %2978 = vmatprep.mubr.f32.mxu0 0.0
      %2979 = vmatmul.mubr.f32.gmra.mrb[0].mxu0 %v2781
      %v2980 = vpop.f32.mrb[0].mxu0
      %v2981 = vadd.f32 0.0, %v2980
      %v2982 = vpop.f32.mrb[0].mxu0
      %2983 = vmatprep.mubr.f32.mxu0 0.0
      %2984 = vmatmul.mubr.f32.gmra.mrb[0].mxu0 %v2784
      %v2985 = vpop.f32.mrb[0].mxu0
      %v2986 = vadd.f32 0.0, %v2985
      %v2987 = vpop.f32.mrb[0].mxu0
      %2988 = vmatprep.mubr.f32.mxu0 0.0
      %2989 = vmatmul.mubr.f32.gmra.mrb[0].mxu0 %v2787
      %v2990 = vpop.f32.mrb[0].mxu0
      %v2991 = vadd.f32 0.0, %v2990
      %v2992 = vpop.f32.mrb[0].mxu0
      %2993 = vmatprep.mubr.f32.mxu0 0.0
      %2994 = vmatmul.mubr.f32.gmra.mrb[0].mxu0 %v2790
      %v2995 = vpop.f32.mrb[0].mxu0
      %v2996 = vadd.f32 0.0, %v2995
      %v2997 = vpop.f32.mrb[0].mxu0
      %2998 = vmatprep.mubr.f32.mxu0 0.0
      %2999 = vmatmul.mubr.f32.gmra.mrb[0].mxu0 %v2793
      %v3000 = vpop.f32.mrb[0].mxu0
      %v3001 = vadd.f32 0.0, %v3000
      %v3002 = vpop.f32.mrb[0].mxu0
      %3003 = vmatprep.mubr.f32.mxu0 0.0
      %3004 = vmatmul.mubr.f32.gmra.mrb[0].mxu0 %v2796
      %v3005 = vpop.f32.mrb[0].mxu0
      %v3006 = vadd.f32 0.0, %v3005
      %v3007 = vpop.f32.mrb[0].mxu0
      %3008 = vmatprep.mubr.f32.mxu0 0.0
      %3009 = vmatmul.mubr.f32.gmra.mrb[0].mxu0 %v2799
      %v3010 = vpop.f32.mrb[0].mxu0
      %v3011 = vadd.f32 0.0, %v3010
      %v3012 = vpop.f32.mrb[0].mxu0
      %3013 = vdwg.mxu0
      %v3014 = vadd.f32 %v2655, %v2871
      %v3015 = vadd.f32 %v2656, %v2876
      %v3016 = vadd.f32 %v2657, %v2881
      %v3017 = vadd.f32 %v2658, %v2886
      %v3018 = vadd.f32 %v2659, %v2891
      %v3019 = vadd.f32 %v2660, %v2896
      %v3020 = vadd.f32 %v2661, %v2901
      %v3021 = vadd.f32 %v2662, %v2906
      %v3022 = vadd.f32 %v2663, %v2911
      %v3023 = vadd.f32 %v2664, %v2916
      %v3024 = vadd.f32 %v2665, %v2921
      %v3025 = vadd.f32 %v2666, %v2926
      %v3026 = vadd.f32 %v2667, %v2931
      %v3027 = vadd.f32 %v2668, %v2936
      %v3028 = vadd.f32 %v2669, %v2941
      %v3029 = vadd.f32 %v2670, %v2946
      %v3030 = vadd.f32 %v2671, %v2951
      %v3031 = vadd.f32 %v2672, %v2956
      %v3032 = vadd.f32 %v2673, %v2961
      %v3033 = vadd.f32 %v2674, %v2966
      %v3034 = vadd.f32 %v2675, %v2971
      %v3035 = vadd.f32 %v2676, %v2976
      %v3036 = vadd.f32 %v2677, %v2981
      %v3037 = vadd.f32 %v2678, %v2986
      %v3038 = vadd.f32 %v2679, %v2991
      %v3039 = vadd.f32 %v2680, %v2996
      %v3040 = vadd.f32 %v2681, %v3001
      %v3041 = vadd.f32 %v2682, %v3006
      %v3042 = vadd.f32 %v2683, %v3011
      %v3043 = vld [vmem:[%s220 + $0x22] sm:$0xff]
      %v3044 = vld [vmem:[%s220 + $0x2a] sm:$0xff]
      %v3045 = vld [vmem:[%s220 + $0x32] sm:$0xff]
      %v3046 = vld [vmem:[%s220 + $0x3a] sm:$0xff]
      %v3047 = vld [vmem:[%s220 + $0x42] sm:$0xff]
      %v3048 = vld [vmem:[%s220 + $0x4a] sm:$0xff]
      %v3049 = vld [vmem:[%s220 + $0x52] sm:$0xff]
      %v3050 = vld [vmem:[%s220 + $0x5a] sm:$0xff]
      %v3051 = vld [vmem:[%s220 + $0x62] sm:$0xff]
      %v3052 = vld [vmem:[%s220 + $0x6a] sm:$0xff]
      %v3053 = vld [vmem:[%s220 + $0x72] sm:$0xff]
      %v3054 = vld [vmem:[%s220 + $0x7a] sm:$0xff]
      %v3055 = vld [vmem:[%s220 + $0x82] sm:$0xff]
      %v3056 = vld [vmem:[%s220 + $0x8a] sm:$0xff]
      %v3057 = vld [vmem:[%s220 + $0x92] sm:$0xff]
      %v3058 = vld [vmem:[%s220 + $0x9a] sm:$0xff]
      %v3059 = vld [vmem:[%s220 + $0xa2] sm:$0xff]
      %v3060 = vld [vmem:[%s220 + $0xaa] sm:$0xff]
      %v3061 = vld [vmem:[%s220 + $0xb2] sm:$0xff]
      %v3062 = vld [vmem:[%s220 + $0xba] sm:$0xff]
      %v3063 = vld [vmem:[%s220 + $0xc2] sm:$0xff]
      %v3064 = vld [vmem:[%s220 + $0xca] sm:$0xff]
      %v3065 = vld [vmem:[%s220 + $0xd2] sm:$0xff]
      %v3066 = vld [vmem:[%s220 + $0xda] sm:$0xff]
      %v3067 = vld [vmem:[%s220 + $0xe2] sm:$0xff]
      %v3068 = vld [vmem:[%s220 + $0xea] sm:$0xff]
      %v3069 = vld [vmem:[%s220 + $0xf2] sm:$0xff]
      %v3070 = vld [vmem:[%s220 + $0xfa] sm:$0xff]
      %v3071 = vld [vmem:[%s220 + $0x102] sm:$0x3]
      %v3072 = vld [vmem:[%s1 + $0x20] sm:$0xf]
      %v3074 = vsel %vm287, %v3043, 0
      %v3077 = vsel %vm287, %v3044, 0
      %v3080 = vsel %vm287, %v3045, 0
      %v3083 = vsel %vm287, %v3046, 0
      %v3086 = vsel %vm287, %v3047, 0
      %v3089 = vsel %vm287, %v3048, 0
      %v3092 = vsel %vm287, %v3049, 0
      %v3095 = vsel %vm287, %v3050, 0
      %v3098 = vsel %vm287, %v3051, 0
      %v3101 = vsel %vm287, %v3052, 0
      %v3104 = vsel %vm287, %v3053, 0
      %v3107 = vsel %vm287, %v3054, 0
      %v3110 = vsel %vm287, %v3055, 0
      %v3113 = vsel %vm287, %v3056, 0
      %v3116 = vsel %vm287, %v3057, 0
      %v3119 = vsel %vm287, %v3058, 0
      %v3122 = vsel %vm287, %v3059, 0
      %v3125 = vsel %vm287, %v3060, 0
      %v3128 = vsel %vm287, %v3061, 0
      %v3131 = vsel %vm287, %v3062, 0
      %v3134 = vsel %vm287, %v3063, 0
      %v3137 = vsel %vm287, %v3064, 0
      %v3140 = vsel %vm287, %v3065, 0
      %v3143 = vsel %vm287, %v3066, 0
      %v3146 = vsel %vm287, %v3067, 0
      %v3149 = vsel %vm287, %v3068, 0
      %v3152 = vsel %vm287, %v3069, 0
      %v3155 = vsel %vm287, %v3070, 0
      %v3158 = vsel %vm287, %v3071, 0
      %v3161 = vsel %vm375, %v3072, 0
      %3163 = vmatprep.subr.mxu0 0.0
      %3164 = vmatpush1.msra.mxu0 %v3161
      %3165 = vmatprep.subr.mxu0 0.0
      %3166 = vmatpush1.msra.mxu0 0.0
      %3167 = vmatprep.subr.mxu0 0.0
      %3168 = vmatpush1.msra.mxu0 0.0
      %3169 = vmatprep.subr.mxu0 0.0
      %3170 = vmatpush1.msra.mxu0 0.0
      %3171 = vmatprep.subr.mxu0 0.0
      %3172 = vmatpush1.msra.mxu0 0.0
      %3173 = vmatprep.subr.mxu0 0.0
      %3174 = vmatpush1.msra.mxu0 0.0
      %3175 = vmatprep.subr.mxu0 0.0
      %3176 = vmatpush1.msra.mxu0 0.0
      %3177 = vmatprep.subr.mxu0 0.0
      %3178 = vmatpush1.msra.mxu0 0.0
      %3179 = vmatprep.subr.mxu0 0.0
      %3180 = vmatpush1.msra.mxu0 0.0
      %3181 = vmatprep.subr.mxu0 0.0
      %3182 = vmatpush1.msra.mxu0 0.0
      %3183 = vmatprep.subr.mxu0 0.0
      %3184 = vmatpush1.msra.mxu0 0.0
      %3185 = vmatprep.subr.mxu0 0.0
      %3186 = vmatpush1.msra.mxu0 0.0
      %3187 = vmatprep.subr.mxu0 0.0
      %3188 = vmatpush1.msra.mxu0 0.0
      %3189 = vmatprep.subr.mxu0 0.0
      %3190 = vmatpush1.msra.mxu0 0.0
      %3191 = vmatprep.subr.mxu0 0.0
      %3192 = vmatpush1.msra.mxu0 0.0
      %3193 = vmatprep.subr.mxu0 0.0
      %3194 = vmatpush1.msra.mxu0 0.0
      %3195 = vmatprep.subr.mxu0 0.0
      %3196 = vmatpush1.msra.mxu0 0.0
      %3197 = vmatprep.subr.mxu0 0.0
      %3198 = vmatpush1.msra.mxu0 0.0
      %3199 = vmatprep.subr.mxu0 0.0
      %3200 = vmatpush1.msra.mxu0 0.0
      %3201 = vmatprep.subr.mxu0 0.0
      %3202 = vmatpush1.msra.mxu0 0.0
      %3203 = vmatprep.subr.mxu0 0.0
      %3204 = vmatpush1.msra.mxu0 0.0
      %3205 = vmatprep.subr.mxu0 0.0
      %3206 = vmatpush1.msra.mxu0 0.0
      %3207 = vmatprep.subr.mxu0 0.0
      %3208 = vmatpush1.msra.mxu0 0.0
      %3209 = vmatprep.subr.mxu0 0.0
      %3210 = vmatpush1.msra.mxu0 0.0
      %3211 = vmatprep.subr.mxu0 0.0
      %3212 = vmatpush1.msra.mxu0 0.0
      %3213 = vmatprep.subr.mxu0 0.0
      %3214 = vmatpush1.msra.mxu0 0.0
      %3215 = vmatprep.subr.mxu0 0.0
      %3216 = vmatpush1.msra.mxu0 0.0
      %3217 = vmatprep.subr.mxu0 0.0
      %3218 = vmatpush1.msra.mxu0 0.0
      %3219 = vmatprep.subr.mxu0 0.0
      %3220 = vmatpush1.msra.mxu0 0.0
      %3221 = vmatprep.subr.mxu0 0.0
      %3222 = vmatpush1.msra.mxu0 0.0
      %3223 = vmatprep.subr.mxu0 0.0
      %3224 = vmatpush1.msra.mxu0 0.0
      %3225 = vmatprep.subr.mxu0 0.0
      %3226 = vmatpush1.msra.mxu0 0.0
      %3227 = vmatprep.mubr.f32.mxu0 0.0
      %3228 = vmatmul.mubr.f32.gmra.mrb[0].mxu0 %v3074
      %v3229 = vpop.f32.mrb[0].mxu0
      %v3230 = vadd.f32 0.0, %v3229
      %v3231 = vpop.f32.mrb[0].mxu0
      %3232 = vmatprep.mubr.f32.mxu0 0.0
      %3233 = vmatmul.mubr.f32.gmra.mrb[0].mxu0 %v3077
      %v3234 = vpop.f32.mrb[0].mxu0
      %v3235 = vadd.f32 0.0, %v3234
      %v3236 = vpop.f32.mrb[0].mxu0
      %3237 = vmatprep.mubr.f32.mxu0 0.0
      %3238 = vmatmul.mubr.f32.gmra.mrb[0].mxu0 %v3080
      %v3239 = vpop.f32.mrb[0].mxu0
      %v3240 = vadd.f32 0.0, %v3239
      %v3241 = vpop.f32.mrb[0].mxu0
      %3242 = vmatprep.mubr.f32.mxu0 0.0
      %3243 = vmatmul.mubr.f32.gmra.mrb[0].mxu0 %v3083
      %v3244 = vpop.f32.mrb[0].mxu0
      %v3245 = vadd.f32 0.0, %v3244
      %v3246 = vpop.f32.mrb[0].mxu0
      %3247 = vmatprep.mubr.f32.mxu0 0.0
      %3248 = vmatmul.mubr.f32.gmra.mrb[0].mxu0 %v3086
      %v3249 = vpop.f32.mrb[0].mxu0
      %v3250 = vadd.f32 0.0, %v3249
      %v3251 = vpop.f32.mrb[0].mxu0
      %3252 = vmatprep.mubr.f32.mxu0 0.0
      %3253 = vmatmul.mubr.f32.gmra.mrb[0].mxu0 %v3089
      %v3254 = vpop.f32.mrb[0].mxu0
      %v3255 = vadd.f32 0.0, %v3254
      %v3256 = vpop.f32.mrb[0].mxu0
      %3257 = vmatprep.mubr.f32.mxu0 0.0
      %3258 = vmatmul.mubr.f32.gmra.mrb[0].mxu0 %v3092
      %v3259 = vpop.f32.mrb[0].mxu0
      %v3260 = vadd.f32 0.0, %v3259
      %v3261 = vpop.f32.mrb[0].mxu0
      %3262 = vmatprep.mubr.f32.mxu0 0.0
      %3263 = vmatmul.mubr.f32.gmra.mrb[0].mxu0 %v3095
      %v3264 = vpop.f32.mrb[0].mxu0
      %v3265 = vadd.f32 0.0, %v3264
      %v3266 = vpop.f32.mrb[0].mxu0
      %3267 = vmatprep.mubr.f32.mxu0 0.0
      %3268 = vmatmul.mubr.f32.gmra.mrb[0].mxu0 %v3098
      %v3269 = vpop.f32.mrb[0].mxu0
      %v3270 = vadd.f32 0.0, %v3269
      %v3271 = vpop.f32.mrb[0].mxu0
      %3272 = vmatprep.mubr.f32.mxu0 0.0
      %3273 = vmatmul.mubr.f32.gmra.mrb[0].mxu0 %v3101
      %v3274 = vpop.f32.mrb[0].mxu0
      %v3275 = vadd.f32 0.0, %v3274
      %v3276 = vpop.f32.mrb[0].mxu0
      %3277 = vmatprep.mubr.f32.mxu0 0.0
      %3278 = vmatmul.mubr.f32.gmra.mrb[0].mxu0 %v3104
      %v3279 = vpop.f32.mrb[0].mxu0
      %v3280 = vadd.f32 0.0, %v3279
      %v3281 = vpop.f32.mrb[0].mxu0
      %3282 = vmatprep.mubr.f32.mxu0 0.0
      %3283 = vmatmul.mubr.f32.gmra.mrb[0].mxu0 %v3107
      %v3284 = vpop.f32.mrb[0].mxu0
      %v3285 = vadd.f32 0.0, %v3284
      %v3286 = vpop.f32.mrb[0].mxu0
      %3287 = vmatprep.mubr.f32.mxu0 0.0
      %3288 = vmatmul.mubr.f32.gmra.mrb[0].mxu0 %v3110
      %v3289 = vpop.f32.mrb[0].mxu0
      %v3290 = vadd.f32 0.0, %v3289
      %v3291 = vpop.f32.mrb[0].mxu0
      %3292 = vmatprep.mubr.f32.mxu0 0.0
      %3293 = vmatmul.mubr.f32.gmra.mrb[0].mxu0 %v3113
      %v3294 = vpop.f32.mrb[0].mxu0
      %v3295 = vadd.f32 0.0, %v3294
      %v3296 = vpop.f32.mrb[0].mxu0
      %3297 = vmatprep.mubr.f32.mxu0 0.0
      %3298 = vmatmul.mubr.f32.gmra.mrb[0].mxu0 %v3116
      %v3299 = vpop.f32.mrb[0].mxu0
      %v3300 = vadd.f32 0.0, %v3299
      %v3301 = vpop.f32.mrb[0].mxu0
      %3302 = vmatprep.mubr.f32.mxu0 0.0
      %3303 = vmatmul.mubr.f32.gmra.mrb[0].mxu0 %v3119
      %v3304 = vpop.f32.mrb[0].mxu0
      %v3305 = vadd.f32 0.0, %v3304
      %v3306 = vpop.f32.mrb[0].mxu0
      %3307 = vmatprep.mubr.f32.mxu0 0.0
      %3308 = vmatmul.mubr.f32.gmra.mrb[0].mxu0 %v3122
      %v3309 = vpop.f32.mrb[0].mxu0
      %v3310 = vadd.f32 0.0, %v3309
      %v3311 = vpop.f32.mrb[0].mxu0
      %3312 = vmatprep.mubr.f32.mxu0 0.0
      %3313 = vmatmul.mubr.f32.gmra.mrb[0].mxu0 %v3125
      %v3314 = vpop.f32.mrb[0].mxu0
      %v3315 = vadd.f32 0.0, %v3314
      %v3316 = vpop.f32.mrb[0].mxu0
      %3317 = vmatprep.mubr.f32.mxu0 0.0
      %3318 = vmatmul.mubr.f32.gmra.mrb[0].mxu0 %v3128
      %v3319 = vpop.f32.mrb[0].mxu0
      %v3320 = vadd.f32 0.0, %v3319
      %v3321 = vpop.f32.mrb[0].mxu0
      %3322 = vmatprep.mubr.f32.mxu0 0.0
      %3323 = vmatmul.mubr.f32.gmra.mrb[0].mxu0 %v3131
      %v3324 = vpop.f32.mrb[0].mxu0
      %v3325 = vadd.f32 0.0, %v3324
      %v3326 = vpop.f32.mrb[0].mxu0
      %3327 = vmatprep.mubr.f32.mxu0 0.0
      %3328 = vmatmul.mubr.f32.gmra.mrb[0].mxu0 %v3134
      %v3329 = vpop.f32.mrb[0].mxu0
      %v3330 = vadd.f32 0.0, %v3329
      %v3331 = vpop.f32.mrb[0].mxu0
      %3332 = vmatprep.mubr.f32.mxu0 0.0
      %3333 = vmatmul.mubr.f32.gmra.mrb[0].mxu0 %v3137
      %v3334 = vpop.f32.mrb[0].mxu0
      %v3335 = vadd.f32 0.0, %v3334
      %v3336 = vpop.f32.mrb[0].mxu0
      %3337 = vmatprep.mubr.f32.mxu0 0.0
      %3338 = vmatmul.mubr.f32.gmra.mrb[0].mxu0 %v3140
      %v3339 = vpop.f32.mrb[0].mxu0
      %v3340 = vadd.f32 0.0, %v3339
      %v3341 = vpop.f32.mrb[0].mxu0
      %3342 = vmatprep.mubr.f32.mxu0 0.0
      %3343 = vmatmul.mubr.f32.gmra.mrb[0].mxu0 %v3143
      %v3344 = vpop.f32.mrb[0].mxu0
      %v3345 = vadd.f32 0.0, %v3344
      %v3346 = vpop.f32.mrb[0].mxu0
      %3347 = vmatprep.mubr.f32.mxu0 0.0
      %3348 = vmatmul.mubr.f32.gmra.mrb[0].mxu0 %v3146
      %v3349 = vpop.f32.mrb[0].mxu0
      %v3350 = vadd.f32 0.0, %v3349
      %v3351 = vpop.f32.mrb[0].mxu0
      %3352 = vmatprep.mubr.f32.mxu0 0.0
      %3353 = vmatmul.mubr.f32.gmra.mrb[0].mxu0 %v3149
      %v3354 = vpop.f32.mrb[0].mxu0
      %v3355 = vadd.f32 0.0, %v3354
      %v3356 = vpop.f32.mrb[0].mxu0
      %3357 = vmatprep.mubr.f32.mxu0 0.0
      %3358 = vmatmul.mubr.f32.gmra.mrb[0].mxu0 %v3152
      %v3359 = vpop.f32.mrb[0].mxu0
      %v3360 = vadd.f32 0.0, %v3359
      %v3361 = vpop.f32.mrb[0].mxu0
      %3362 = vmatprep.mubr.f32.mxu0 0.0
      %3363 = vmatmul.mubr.f32.gmra.mrb[0].mxu0 %v3155
      %v3364 = vpop.f32.mrb[0].mxu0
      %v3365 = vadd.f32 0.0, %v3364
      %v3366 = vpop.f32.mrb[0].mxu0
      %3367 = vmatprep.mubr.f32.mxu0 0.0
      %3368 = vmatmul.mubr.f32.gmra.mrb[0].mxu0 %v3158
      %v3369 = vpop.f32.mrb[0].mxu0
      %v3370 = vadd.f32 0.0, %v3369
      %v3371 = vpop.f32.mrb[0].mxu0
      %3372 = vdwg.mxu0
      %v3373 = vadd.f32 %v3014, %v3230
      %v3374 = vadd.f32 %v3015, %v3235
      %v3375 = vadd.f32 %v3016, %v3240
      %v3376 = vadd.f32 %v3017, %v3245
      %v3377 = vadd.f32 %v3018, %v3250
      %v3378 = vadd.f32 %v3019, %v3255
      %v3379 = vadd.f32 %v3020, %v3260
      %v3380 = vadd.f32 %v3021, %v3265
      %v3381 = vadd.f32 %v3022, %v3270
      %v3382 = vadd.f32 %v3023, %v3275
      %v3383 = vadd.f32 %v3024, %v3280
      %v3384 = vadd.f32 %v3025, %v3285
      %v3385 = vadd.f32 %v3026, %v3290
      %v3386 = vadd.f32 %v3027, %v3295
      %v3387 = vadd.f32 %v3028, %v3300
      %v3388 = vadd.f32 %v3029, %v3305
      %v3389 = vadd.f32 %v3030, %v3310
      %v3390 = vadd.f32 %v3031, %v3315
      %v3391 = vadd.f32 %v3032, %v3320
      %v3392 = vadd.f32 %v3033, %v3325
      %v3393 = vadd.f32 %v3034, %v3330
      %v3394 = vadd.f32 %v3035, %v3335
      %v3395 = vadd.f32 %v3036, %v3340
      %v3396 = vadd.f32 %v3037, %v3345
      %v3397 = vadd.f32 %v3038, %v3350
      %v3398 = vadd.f32 %v3039, %v3355
      %v3399 = vadd.f32 %v3040, %v3360
      %v3400 = vadd.f32 %v3041, %v3365
      %v3401 = vadd.f32 %v3042, %v3370
      %v3402 = vld [vmem:[%s2] sm:$0x1]
      %v3404 = vlaneseq
      %v3405 = vshrl.u32 %v3404, 7
      %v3406 = vsub.s32 0, %v3405
      %v3407 = vrot.slane %v3402, %v3406
      %v3409 = vadd.f32 %v3373, %v3407
      %v3410 = vadd.f32 %v3374, %v3407
      %v3411 = vadd.f32 %v3375, %v3407
      %v3412 = vadd.f32 %v3376, %v3407
      %v3413 = vadd.f32 %v3377, %v3407
      %v3414 = vadd.f32 %v3378, %v3407
      %v3415 = vadd.f32 %v3379, %v3407
      %v3416 = vadd.f32 %v3380, %v3407
      %v3417 = vadd.f32 %v3381, %v3407
      %v3418 = vadd.f32 %v3382, %v3407
      %v3419 = vadd.f32 %v3383, %v3407
      %v3420 = vadd.f32 %v3384, %v3407
      %v3421 = vadd.f32 %v3385, %v3407
      %v3422 = vadd.f32 %v3386, %v3407
      %v3423 = vadd.f32 %v3387, %v3407
      %v3424 = vadd.f32 %v3388, %v3407
      %v3425 = vadd.f32 %v3389, %v3407
      %v3426 = vadd.f32 %v3390, %v3407
      %v3427 = vadd.f32 %v3391, %v3407
      %v3428 = vadd.f32 %v3392, %v3407
      %v3429 = vadd.f32 %v3393, %v3407
      %v3430 = vadd.f32 %v3394, %v3407
      %v3431 = vadd.f32 %v3395, %v3407
      %v3432 = vadd.f32 %v3396, %v3407
      %v3433 = vadd.f32 %v3397, %v3407
      %v3434 = vadd.f32 %v3398, %v3407
      %v3435 = vadd.f32 %v3399, %v3407
      %v3436 = vadd.f32 %v3400, %v3407
      %v3437 = vadd.f32 %v3401, %v3407
      %v3438 = vmax.f32 %v3409, 0.0
      %v3439 = vmax.f32 %v3410, 0.0
      %v3440 = vmax.f32 %v3411, 0.0
      %v3441 = vmax.f32 %v3412, 0.0
      %v3442 = vmax.f32 %v3413, 0.0
      %v3443 = vmax.f32 %v3414, 0.0
      %v3444 = vmax.f32 %v3415, 0.0
      %v3445 = vmax.f32 %v3416, 0.0
      %v3446 = vmax.f32 %v3417, 0.0
      %v3447 = vmax.f32 %v3418, 0.0
      %v3448 = vmax.f32 %v3419, 0.0
      %v3449 = vmax.f32 %v3420, 0.0
      %v3450 = vmax.f32 %v3421, 0.0
      %v3451 = vmax.f32 %v3422, 0.0
      %v3452 = vmax.f32 %v3423, 0.0
      %v3453 = vmax.f32 %v3424, 0.0
      %v3454 = vmax.f32 %v3425, 0.0
      %v3455 = vmax.f32 %v3426, 0.0
      %v3456 = vmax.f32 %v3427, 0.0
      %v3457 = vmax.f32 %v3428, 0.0
      %v3458 = vmax.f32 %v3429, 0.0
      %v3459 = vmax.f32 %v3430, 0.0
      %v3460 = vmax.f32 %v3431, 0.0
      %v3461 = vmax.f32 %v3432, 0.0
      %v3462 = vmax.f32 %v3433, 0.0
      %v3463 = vmax.f32 %v3434, 0.0
      %v3464 = vmax.f32 %v3435, 0.0
      %v3465 = vmax.f32 %v3436, 0.0
      %v3466 = vmax.f32 %v3437, 0.0
      %vm3467 = vcmask 64512
      %3468 = vst.msk [vmem:[#allocation2] sm:$0xff] %vm3467, %v3438
      %3469 = vst.msk [vmem:[#allocation2 + $0x8] sm:$0xff] %vm3467, %v3439
      %3470 = vst.msk [vmem:[#allocation2 + $0x10] sm:$0xff] %vm3467, %v3440
      %3471 = vst.msk [vmem:[#allocation2 + $0x18] sm:$0xff] %vm3467, %v3441
      %3472 = vst.msk [vmem:[#allocation2 + $0x20] sm:$0xff] %vm3467, %v3442
      %3473 = vst.msk [vmem:[#allocation2 + $0x28] sm:$0xff] %vm3467, %v3443
      %3474 = vst.msk [vmem:[#allocation2 + $0x30] sm:$0xff] %vm3467, %v3444
      %3475 = vst.msk [vmem:[#allocation2 + $0x38] sm:$0xff] %vm3467, %v3445
      %3476 = vst.msk [vmem:[#allocation2 + $0x40] sm:$0xff] %vm3467, %v3446
      %3477 = vst.msk [vmem:[#allocation2 + $0x48] sm:$0xff] %vm3467, %v3447
      %3478 = vst.msk [vmem:[#allocation2 + $0x50] sm:$0xff] %vm3467, %v3448
      %3479 = vst.msk [vmem:[#allocation2 + $0x58] sm:$0xff] %vm3467, %v3449
      %3480 = vst.msk [vmem:[#allocation2 + $0x60] sm:$0xff] %vm3467, %v3450
      %3481 = vst.msk [vmem:[#allocation2 + $0x68] sm:$0xff] %vm3467, %v3451
      %3482 = vst.msk [vmem:[#allocation2 + $0x70] sm:$0xff] %vm3467, %v3452
      %3483 = vst.msk [vmem:[#allocation2 + $0x78] sm:$0xff] %vm3467, %v3453
      %3484 = vst.msk [vmem:[#allocation2 + $0x80] sm:$0xff] %vm3467, %v3454
      %3485 = vst.msk [vmem:[#allocation2 + $0x88] sm:$0xff] %vm3467, %v3455
      %3486 = vst.msk [vmem:[#allocation2 + $0x90] sm:$0xff] %vm3467, %v3456
      %3487 = vst.msk [vmem:[#allocation2 + $0x98] sm:$0xff] %vm3467, %v3457
      %3488 = vst.msk [vmem:[#allocation2 + $0xa0] sm:$0xff] %vm3467, %v3458
      %3489 = vst.msk [vmem:[#allocation2 + $0xa8] sm:$0xff] %vm3467, %v3459
      %3490 = vst.msk [vmem:[#allocation2 + $0xb0] sm:$0xff] %vm3467, %v3460
      %3491 = vst.msk [vmem:[#allocation2 + $0xb8] sm:$0xff] %vm3467, %v3461
      %3492 = vst.msk [vmem:[#allocation2 + $0xc0] sm:$0xff] %vm3467, %v3462
      %3493 = vst.msk [vmem:[#allocation2 + $0xc8] sm:$0xff] %vm3467, %v3463
      %3494 = vst.msk [vmem:[#allocation2 + $0xd0] sm:$0xff] %vm3467, %v3464
      %3495 = vst.msk [vmem:[#allocation2 + $0xd8] sm:$0xff] %vm3467, %v3465
      %vm3496 = vcmask 58368
      %3497 = vst.msk [vmem:[#allocation2 + $0xe0] sm:$0x3] %vm3496, %v3466
      %v3498 = vld [vmem:[#allocation2] sm:$0xff]
      %v3499 = vld [vmem:[#allocation2 + $0x8] sm:$0xff]
      %v3500 = vld [vmem:[#allocation2 + $0x10] sm:$0xff]
      %v3501 = vld [vmem:[#allocation2 + $0x18] sm:$0xff]
      %v3502 = vld [vmem:[#allocation2 + $0x20] sm:$0xff]
      %v3503 = vld [vmem:[#allocation2 + $0x28] sm:$0xff]
      %v3504 = vld [vmem:[#allocation2 + $0x30] sm:$0xff]
      %v3505 = vld [vmem:[#allocation2 + $0x38] sm:$0xff]
      %v3506 = vld [vmem:[#allocation2 + $0x40] sm:$0xff]
      %v3507 = vld [vmem:[#allocation2 + $0x48] sm:$0xff]
      %v3508 = vld [vmem:[#allocation2 + $0x50] sm:$0xff]
      %v3509 = vld [vmem:[#allocation2 + $0x58] sm:$0xff]
      %v3510 = vld [vmem:[#allocation2 + $0x60] sm:$0xff]
      %v3511 = vld [vmem:[#allocation2 + $0x68] sm:$0xff]
      %v3512 = vld [vmem:[#allocation2 + $0x70] sm:$0xff]
      %v3513 = vld [vmem:[#allocation2 + $0x78] sm:$0xff]
      %v3514 = vld [vmem:[#allocation2 + $0x80] sm:$0xff]
      %v3515 = vld [vmem:[#allocation2 + $0x88] sm:$0xff]
      %v3516 = vld [vmem:[#allocation2 + $0x90] sm:$0xff]
      %v3517 = vld [vmem:[#allocation2 + $0x98] sm:$0xff]
      %v3518 = vld [vmem:[#allocation2 + $0xa0] sm:$0xff]
      %v3519 = vld [vmem:[#allocation2 + $0xa8] sm:$0xff]
      %v3520 = vld [vmem:[#allocation2 + $0xb0] sm:$0xff]
      %v3521 = vld [vmem:[#allocation2 + $0xb8] sm:$0xff]
      %v3522 = vld [vmem:[%s3] sm:$0xff]
      %v3523 = vld [vmem:[#allocation2 + $0x1] sm:$0xff]
      %v3524 = vld [vmem:[#allocation2 + $0x9] sm:$0xff]
      %v3525 = vld [vmem:[#allocation2 + $0x11] sm:$0xff]
      %v3526 = vld [vmem:[#allocation2 + $0x19] sm:$0xff]
      %v3527 = vld [vmem:[#allocation2 + $0x21] sm:$0xff]
      %v3528 = vld [vmem:[#allocation2 + $0x29] sm:$0xff]
      %v3529 = vld [vmem:[#allocation2 + $0x31] sm:$0xff]
      %v3530 = vld [vmem:[#allocation2 + $0x39] sm:$0xff]
      %v3531 = vld [vmem:[#allocation2 + $0x41] sm:$0xff]
      %v3532 = vld [vmem:[#allocation2 + $0x49] sm:$0xff]
      %v3533 = vld [vmem:[#allocation2 + $0x51] sm:$0xff]
      %v3534 = vld [vmem:[#allocation2 + $0x59] sm:$0xff]
      %v3535 = vld [vmem:[#allocation2 + $0x61] sm:$0xff]
      %v3536 = vld [vmem:[#allocation2 + $0x69] sm:$0xff]
      %v3537 = vld [vmem:[#allocation2 + $0x71] sm:$0xff]
      %v3538 = vld [vmem:[#allocation2 + $0x79] sm:$0xff]
      %v3539 = vld [vmem:[#allocation2 + $0x81] sm:$0xff]
      %v3540 = vld [vmem:[#allocation2 + $0x89] sm:$0xff]
      %v3541 = vld [vmem:[#allocation2 + $0x91] sm:$0xff]
      %v3542 = vld [vmem:[#allocation2 + $0x99] sm:$0xff]
      %v3543 = vld [vmem:[#allocation2 + $0xa1] sm:$0xff]
      %v3544 = vld [vmem:[#allocation2 + $0xa9] sm:$0xff]
      %v3545 = vld [vmem:[#allocation2 + $0xb1] sm:$0xff]
      %v3546 = vld [vmem:[#allocation2 + $0xb9] sm:$0xff]
      %v3547 = vld [vmem:[%s3 + $0x8] sm:$0xff]
      %v3549 = vsel %vm3467, %v3523, 0
      %v3552 = vsel %vm3467, %v3524, 0
      %v3555 = vsel %vm3467, %v3525, 0
      %v3558 = vsel %vm3467, %v3526, 0
      %v3561 = vsel %vm3467, %v3527, 0
      %v3564 = vsel %vm3467, %v3528, 0
      %v3567 = vsel %vm3467, %v3529, 0
      %v3570 = vsel %vm3467, %v3530, 0
      %v3573 = vsel %vm3467, %v3531, 0
      %v3576 = vsel %vm3467, %v3532, 0
      %v3579 = vsel %vm3467, %v3533, 0
      %v3582 = vsel %vm3467, %v3534, 0
      %v3585 = vsel %vm3467, %v3535, 0
      %v3588 = vsel %vm3467, %v3536, 0
      %v3591 = vsel %vm3467, %v3537, 0
      %v3594 = vsel %vm3467, %v3538, 0
      %v3597 = vsel %vm3467, %v3539, 0
      %v3600 = vsel %vm3467, %v3540, 0
      %v3603 = vsel %vm3467, %v3541, 0
      %v3606 = vsel %vm3467, %v3542, 0
      %v3609 = vsel %vm3467, %v3543, 0
      %v3612 = vsel %vm3467, %v3544, 0
      %v3615 = vsel %vm3467, %v3545, 0
      %v3618 = vsel %vm3467, %v3546, 0
      %3620 = vmatprep.subr.mxu0 0.0
      %3621 = vmatpush1.msra.mxu0 %v3547
      %3622 = vmatprep.subr.mxu0 0.0
      %3623 = vmatpush1.msra.mxu0 0.0
      %3624 = vmatprep.subr.mxu0 0.0
      %3625 = vmatpush1.msra.mxu0 0.0
      %3626 = vmatprep.subr.mxu0 0.0
      %3627 = vmatpush1.msra.mxu0 0.0
      %3628 = vmatprep.subr.mxu0 0.0
      %3629 = vmatpush1.msra.mxu0 0.0
      %3630 = vmatprep.subr.mxu0 0.0
      %3631 = vmatpush1.msra.mxu0 0.0
      %3632 = vmatprep.subr.mxu0 0.0
      %3633 = vmatpush1.msra.mxu0 0.0
      %3634 = vmatprep.subr.mxu0 0.0
      %3635 = vmatpush1.msra.mxu0 0.0
      %3636 = vmatprep.subr.mxu0 0.0
      %3637 = vmatpush1.msra.mxu0 0.0
      %3638 = vmatprep.subr.mxu0 0.0
      %3639 = vmatpush1.msra.mxu0 0.0
      %3640 = vmatprep.subr.mxu0 0.0
      %3641 = vmatpush1.msra.mxu0 0.0
      %3642 = vmatprep.subr.mxu0 0.0
      %3643 = vmatpush1.msra.mxu0 0.0
      %3644 = vmatprep.subr.mxu0 0.0
      %3645 = vmatpush1.msra.mxu0 0.0
      %3646 = vmatprep.subr.mxu0 0.0
      %3647 = vmatpush1.msra.mxu0 0.0
      %3648 = vmatprep.subr.mxu0 0.0
      %3649 = vmatpush1.msra.mxu0 0.0
      %3650 = vmatprep.subr.mxu0 0.0
      %3651 = vmatpush1.msra.mxu0 0.0
      %3652 = vmatprep.subr.mxu0 0.0
      %3653 = vmatpush1.msra.mxu0 0.0
      %3654 = vmatprep.subr.mxu0 0.0
      %3655 = vmatpush1.msra.mxu0 0.0
      %3656 = vmatprep.subr.mxu0 0.0
      %3657 = vmatpush1.msra.mxu0 0.0
      %3658 = vmatprep.subr.mxu0 0.0
      %3659 = vmatpush1.msra.mxu0 0.0
      %3660 = vmatprep.subr.mxu0 0.0
      %3661 = vmatpush1.msra.mxu0 0.0
      %3662 = vmatprep.subr.mxu0 0.0
      %3663 = vmatpush1.msra.mxu0 0.0
      %3664 = vmatprep.subr.mxu0 0.0
      %3665 = vmatpush1.msra.mxu0 0.0
      %3666 = vmatprep.subr.mxu0 0.0
      %3667 = vmatpush1.msra.mxu0 0.0
      %3668 = vmatprep.subr.mxu0 0.0
      %3669 = vmatpush1.msra.mxu0 0.0
      %3670 = vmatprep.subr.mxu0 0.0
      %3671 = vmatpush1.msra.mxu0 0.0
      %3672 = vmatprep.subr.mxu0 0.0
      %3673 = vmatpush1.msra.mxu0 0.0
      %3674 = vmatprep.subr.mxu0 0.0
      %3675 = vmatpush1.msra.mxu0 0.0
      %3676 = vmatprep.subr.mxu0 0.0
      %3677 = vmatpush1.msra.mxu0 0.0
      %3678 = vmatprep.subr.mxu0 0.0
      %3679 = vmatpush1.msra.mxu0 0.0
      %3680 = vmatprep.subr.mxu0 0.0
      %3681 = vmatpush1.msra.mxu0 0.0
      %3682 = vmatprep.subr.mxu0 0.0
      %3683 = vmatpush1.msra.mxu0 0.0
      %3684 = vmatprep.mubr.f32.mxu0 0.0
      %3685 = vmatmul.mubr.f32.gmra.mrb[0].mxu0 %v3549
      %v3686 = vpop.f32.mrb[0].mxu0
      %v3687 = vadd.f32 0.0, %v3686
      %v3688 = vpop.f32.mrb[0].mxu0
      %3689 = vmatprep.mubr.f32.mxu0 0.0
      %3690 = vmatmul.mubr.f32.gmra.mrb[0].mxu0 %v3552
      %v3691 = vpop.f32.mrb[0].mxu0
      %v3692 = vadd.f32 0.0, %v3691
      %v3693 = vpop.f32.mrb[0].mxu0
      %3694 = vmatprep.mubr.f32.mxu0 0.0
      %3695 = vmatmul.mubr.f32.gmra.mrb[0].mxu0 %v3555
      %v3696 = vpop.f32.mrb[0].mxu0
      %v3697 = vadd.f32 0.0, %v3696
      %v3698 = vpop.f32.mrb[0].mxu0
      %3699 = vmatprep.mubr.f32.mxu0 0.0
      %3700 = vmatmul.mubr.f32.gmra.mrb[0].mxu0 %v3558
      %v3701 = vpop.f32.mrb[0].mxu0
      %v3702 = vadd.f32 0.0, %v3701
      %v3703 = vpop.f32.mrb[0].mxu0
      %3704 = vmatprep.mubr.f32.mxu0 0.0
      %3705 = vmatmul.mubr.f32.gmra.mrb[0].mxu0 %v3561
      %v3706 = vpop.f32.mrb[0].mxu0
      %v3707 = vadd.f32 0.0, %v3706
      %v3708 = vpop.f32.mrb[0].mxu0
      %3709 = vmatprep.mubr.f32.mxu0 0.0
      %3710 = vmatmul.mubr.f32.gmra.mrb[0].mxu0 %v3564
      %v3711 = vpop.f32.mrb[0].mxu0
      %v3712 = vadd.f32 0.0, %v3711
      %v3713 = vpop.f32.mrb[0].mxu0
      %3714 = vmatprep.mubr.f32.mxu0 0.0
      %3715 = vmatmul.mubr.f32.gmra.mrb[0].mxu0 %v3567
      %v3716 = vpop.f32.mrb[0].mxu0
      %v3717 = vadd.f32 0.0, %v3716
      %v3718 = vpop.f32.mrb[0].mxu0
      %3719 = vmatprep.mubr.f32.mxu0 0.0
      %3720 = vmatmul.mubr.f32.gmra.mrb[0].mxu0 %v3570
      %v3721 = vpop.f32.mrb[0].mxu0
      %v3722 = vadd.f32 0.0, %v3721
      %v3723 = vpop.f32.mrb[0].mxu0
      %3724 = vmatprep.mubr.f32.mxu0 0.0
      %3725 = vmatmul.mubr.f32.gmra.mrb[0].mxu0 %v3573
      %v3726 = vpop.f32.mrb[0].mxu0
      %v3727 = vadd.f32 0.0, %v3726
      %v3728 = vpop.f32.mrb[0].mxu0
      %3729 = vmatprep.mubr.f32.mxu0 0.0
      %3730 = vmatmul.mubr.f32.gmra.mrb[0].mxu0 %v3576
      %v3731 = vpop.f32.mrb[0].mxu0
      %v3732 = vadd.f32 0.0, %v3731
      %v3733 = vpop.f32.mrb[0].mxu0
      %3734 = vmatprep.mubr.f32.mxu0 0.0
      %3735 = vmatmul.mubr.f32.gmra.mrb[0].mxu0 %v3579
      %v3736 = vpop.f32.mrb[0].mxu0
      %v3737 = vadd.f32 0.0, %v3736
      %v3738 = vpop.f32.mrb[0].mxu0
      %3739 = vmatprep.mubr.f32.mxu0 0.0
      %3740 = vmatmul.mubr.f32.gmra.mrb[0].mxu0 %v3582
      %v3741 = vpop.f32.mrb[0].mxu0
      %v3742 = vadd.f32 0.0, %v3741
      %v3743 = vpop.f32.mrb[0].mxu0
      %3744 = vmatprep.mubr.f32.mxu0 0.0
      %3745 = vmatmul.mubr.f32.gmra.mrb[0].mxu0 %v3585
      %v3746 = vpop.f32.mrb[0].mxu0
      %v3747 = vadd.f32 0.0, %v3746
      %v3748 = vpop.f32.mrb[0].mxu0
      %3749 = vmatprep.mubr.f32.mxu0 0.0
      %3750 = vmatmul.mubr.f32.gmra.mrb[0].mxu0 %v3588
      %v3751 = vpop.f32.mrb[0].mxu0
      %v3752 = vadd.f32 0.0, %v3751
      %v3753 = vpop.f32.mrb[0].mxu0
      %3754 = vmatprep.mubr.f32.mxu0 0.0
      %3755 = vmatmul.mubr.f32.gmra.mrb[0].mxu0 %v3591
      %v3756 = vpop.f32.mrb[0].mxu0
      %v3757 = vadd.f32 0.0, %v3756
      %v3758 = vpop.f32.mrb[0].mxu0
      %3759 = vmatprep.mubr.f32.mxu0 0.0
      %3760 = vmatmul.mubr.f32.gmra.mrb[0].mxu0 %v3594
      %v3761 = vpop.f32.mrb[0].mxu0
      %v3762 = vadd.f32 0.0, %v3761
      %v3763 = vpop.f32.mrb[0].mxu0
      %3764 = vmatprep.mubr.f32.mxu0 0.0
      %3765 = vmatmul.mubr.f32.gmra.mrb[0].mxu0 %v3597
      %v3766 = vpop.f32.mrb[0].mxu0
      %v3767 = vadd.f32 0.0, %v3766
      %v3768 = vpop.f32.mrb[0].mxu0
      %3769 = vmatprep.mubr.f32.mxu0 0.0
      %3770 = vmatmul.mubr.f32.gmra.mrb[0].mxu0 %v3600
      %v3771 = vpop.f32.mrb[0].mxu0
      %v3772 = vadd.f32 0.0, %v3771
      %v3773 = vpop.f32.mrb[0].mxu0
      %3774 = vmatprep.mubr.f32.mxu0 0.0
      %3775 = vmatmul.mubr.f32.gmra.mrb[0].mxu0 %v3603
      %v3776 = vpop.f32.mrb[0].mxu0
      %v3777 = vadd.f32 0.0, %v3776
      %v3778 = vpop.f32.mrb[0].mxu0
      %3779 = vmatprep.mubr.f32.mxu0 0.0
      %3780 = vmatmul.mubr.f32.gmra.mrb[0].mxu0 %v3606
      %v3781 = vpop.f32.mrb[0].mxu0
      %v3782 = vadd.f32 0.0, %v3781
      %v3783 = vpop.f32.mrb[0].mxu0
      %3784 = vmatprep.mubr.f32.mxu0 0.0
      %3785 = vmatmul.mubr.f32.gmra.mrb[0].mxu0 %v3609
      %v3786 = vpop.f32.mrb[0].mxu0
      %v3787 = vadd.f32 0.0, %v3786
      %v3788 = vpop.f32.mrb[0].mxu0
      %3789 = vmatprep.mubr.f32.mxu0 0.0
      %3790 = vmatmul.mubr.f32.gmra.mrb[0].mxu0 %v3612
      %v3791 = vpop.f32.mrb[0].mxu0
      %v3792 = vadd.f32 0.0, %v3791
      %v3793 = vpop.f32.mrb[0].mxu0
      %3794 = vmatprep.mubr.f32.mxu0 0.0
      %3795 = vmatmul.mubr.f32.gmra.mrb[0].mxu0 %v3615
      %v3796 = vpop.f32.mrb[0].mxu0
      %v3797 = vadd.f32 0.0, %v3796
      %v3798 = vpop.f32.mrb[0].mxu0
      %3799 = vmatprep.mubr.f32.mxu0 0.0
      %3800 = vmatmul.mubr.f32.gmra.mrb[0].mxu0 %v3618
      %v3801 = vpop.f32.mrb[0].mxu0
      %v3802 = vadd.f32 0.0, %v3801
      %v3803 = vpop.f32.mrb[0].mxu0
      %3804 = vdwg.mxu0
      %v3806 = vsel %vm3467, %v3498, 0
      %v3809 = vsel %vm3467, %v3499, 0
      %v3812 = vsel %vm3467, %v3500, 0
      %v3815 = vsel %vm3467, %v3501, 0
      %v3818 = vsel %vm3467, %v3502, 0
      %v3821 = vsel %vm3467, %v3503, 0
      %v3824 = vsel %vm3467, %v3504, 0
      %v3827 = vsel %vm3467, %v3505, 0
      %v3830 = vsel %vm3467, %v3506, 0
      %v3833 = vsel %vm3467, %v3507, 0
      %v3836 = vsel %vm3467, %v3508, 0
      %v3839 = vsel %vm3467, %v3509, 0
      %v3842 = vsel %vm3467, %v3510, 0
      %v3845 = vsel %vm3467, %v3511, 0
      %v3848 = vsel %vm3467, %v3512, 0
      %v3851 = vsel %vm3467, %v3513, 0
      %v3854 = vsel %vm3467, %v3514, 0
      %v3857 = vsel %vm3467, %v3515, 0
      %v3860 = vsel %vm3467, %v3516, 0
      %v3863 = vsel %vm3467, %v3517, 0
      %v3866 = vsel %vm3467, %v3518, 0
      %v3869 = vsel %vm3467, %v3519, 0
      %v3872 = vsel %vm3467, %v3520, 0
      %v3875 = vsel %vm3467, %v3521, 0
      %3877 = vmatprep.subr.mxu0 0.0
      %3878 = vmatpush1.msra.mxu0 %v3522
      %3879 = vmatprep.subr.mxu0 0.0
      %3880 = vmatpush1.msra.mxu0 0.0
      %3881 = vmatprep.subr.mxu0 0.0
      %3882 = vmatpush1.msra.mxu0 0.0
      %3883 = vmatprep.subr.mxu0 0.0
      %3884 = vmatpush1.msra.mxu0 0.0
      %3885 = vmatprep.subr.mxu0 0.0
      %3886 = vmatpush1.msra.mxu0 0.0
      %3887 = vmatprep.subr.mxu0 0.0
      %3888 = vmatpush1.msra.mxu0 0.0
      %3889 = vmatprep.subr.mxu0 0.0
      %3890 = vmatpush1.msra.mxu0 0.0
      %3891 = vmatprep.subr.mxu0 0.0
      %3892 = vmatpush1.msra.mxu0 0.0
      %3893 = vmatprep.subr.mxu0 0.0
      %3894 = vmatpush1.msra.mxu0 0.0
      %3895 = vmatprep.subr.mxu0 0.0
      %3896 = vmatpush1.msra.mxu0 0.0
      %3897 = vmatprep.subr.mxu0 0.0
      %3898 = vmatpush1.msra.mxu0 0.0
      %3899 = vmatprep.subr.mxu0 0.0
      %3900 = vmatpush1.msra.mxu0 0.0
      %3901 = vmatprep.subr.mxu0 0.0
      %3902 = vmatpush1.msra.mxu0 0.0
      %3903 = vmatprep.subr.mxu0 0.0
      %3904 = vmatpush1.msra.mxu0 0.0
      %3905 = vmatprep.subr.mxu0 0.0
      %3906 = vmatpush1.msra.mxu0 0.0
      %3907 = vmatprep.subr.mxu0 0.0
      %3908 = vmatpush1.msra.mxu0 0.0
      %3909 = vmatprep.subr.mxu0 0.0
      %3910 = vmatpush1.msra.mxu0 0.0
      %3911 = vmatprep.subr.mxu0 0.0
      %3912 = vmatpush1.msra.mxu0 0.0
      %3913 = vmatprep.subr.mxu0 0.0
      %3914 = vmatpush1.msra.mxu0 0.0
      %3915 = vmatprep.subr.mxu0 0.0
      %3916 = vmatpush1.msra.mxu0 0.0
      %3917 = vmatprep.subr.mxu0 0.0
      %3918 = vmatpush1.msra.mxu0 0.0
      %3919 = vmatprep.subr.mxu0 0.0
      %3920 = vmatpush1.msra.mxu0 0.0
      %3921 = vmatprep.subr.mxu0 0.0
      %3922 = vmatpush1.msra.mxu0 0.0
      %3923 = vmatprep.subr.mxu0 0.0
      %3924 = vmatpush1.msra.mxu0 0.0
      %3925 = vmatprep.subr.mxu0 0.0
      %3926 = vmatpush1.msra.mxu0 0.0
      %3927 = vmatprep.subr.mxu0 0.0
      %3928 = vmatpush1.msra.mxu0 0.0
      %3929 = vmatprep.subr.mxu0 0.0
      %3930 = vmatpush1.msra.mxu0 0.0
      %3931 = vmatprep.subr.mxu0 0.0
      %3932 = vmatpush1.msra.mxu0 0.0
      %3933 = vmatprep.subr.mxu0 0.0
      %3934 = vmatpush1.msra.mxu0 0.0
      %3935 = vmatprep.subr.mxu0 0.0
      %3936 = vmatpush1.msra.mxu0 0.0
      %3937 = vmatprep.subr.mxu0 0.0
      %3938 = vmatpush1.msra.mxu0 0.0
      %3939 = vmatprep.subr.mxu0 0.0
      %3940 = vmatpush1.msra.mxu0 0.0
      %3941 = vmatprep.mubr.f32.mxu0 0.0
      %3942 = vmatmul.mubr.f32.gmra.mrb[0].mxu0 %v3806
      %v3943 = vpop.f32.mrb[0].mxu0
      %v3944 = vadd.f32 %v3687, %v3943
      %v3945 = vpop.f32.mrb[0].mxu0
      %3946 = vmatprep.mubr.f32.mxu0 0.0
      %3947 = vmatmul.mubr.f32.gmra.mrb[0].mxu0 %v3809
      %v3948 = vpop.f32.mrb[0].mxu0
      %v3949 = vadd.f32 %v3692, %v3948
      %v3950 = vpop.f32.mrb[0].mxu0
      %3951 = vmatprep.mubr.f32.mxu0 0.0
      %3952 = vmatmul.mubr.f32.gmra.mrb[0].mxu0 %v3812
      %v3953 = vpop.f32.mrb[0].mxu0
      %v3954 = vadd.f32 %v3697, %v3953
      %v3955 = vpop.f32.mrb[0].mxu0
      %3956 = vmatprep.mubr.f32.mxu0 0.0
      %3957 = vmatmul.mubr.f32.gmra.mrb[0].mxu0 %v3815
      %v3958 = vpop.f32.mrb[0].mxu0
      %v3959 = vadd.f32 %v3702, %v3958
      %v3960 = vpop.f32.mrb[0].mxu0
      %3961 = vmatprep.mubr.f32.mxu0 0.0
      %3962 = vmatmul.mubr.f32.gmra.mrb[0].mxu0 %v3818
      %v3963 = vpop.f32.mrb[0].mxu0
      %v3964 = vadd.f32 %v3707, %v3963
      %v3965 = vpop.f32.mrb[0].mxu0
      %3966 = vmatprep.mubr.f32.mxu0 0.0
      %3967 = vmatmul.mubr.f32.gmra.mrb[0].mxu0 %v3821
      %v3968 = vpop.f32.mrb[0].mxu0
      %v3969 = vadd.f32 %v3712, %v3968
      %v3970 = vpop.f32.mrb[0].mxu0
      %3971 = vmatprep.mubr.f32.mxu0 0.0
      %3972 = vmatmul.mubr.f32.gmra.mrb[0].mxu0 %v3824
      %v3973 = vpop.f32.mrb[0].mxu0
      %v3974 = vadd.f32 %v3717, %v3973
      %v3975 = vpop.f32.mrb[0].mxu0
      %3976 = vmatprep.mubr.f32.mxu0 0.0
      %3977 = vmatmul.mubr.f32.gmra.mrb[0].mxu0 %v3827
      %v3978 = vpop.f32.mrb[0].mxu0
      %v3979 = vadd.f32 %v3722, %v3978
      %v3980 = vpop.f32.mrb[0].mxu0
      %3981 = vmatprep.mubr.f32.mxu0 0.0
      %3982 = vmatmul.mubr.f32.gmra.mrb[0].mxu0 %v3830
      %v3983 = vpop.f32.mrb[0].mxu0
      %v3984 = vadd.f32 %v3727, %v3983
      %v3985 = vpop.f32.mrb[0].mxu0
      %3986 = vmatprep.mubr.f32.mxu0 0.0
      %3987 = vmatmul.mubr.f32.gmra.mrb[0].mxu0 %v3833
      %v3988 = vpop.f32.mrb[0].mxu0
      %v3989 = vadd.f32 %v3732, %v3988
      %v3990 = vpop.f32.mrb[0].mxu0
      %3991 = vmatprep.mubr.f32.mxu0 0.0
      %3992 = vmatmul.mubr.f32.gmra.mrb[0].mxu0 %v3836
      %v3993 = vpop.f32.mrb[0].mxu0
      %v3994 = vadd.f32 %v3737, %v3993
      %v3995 = vpop.f32.mrb[0].mxu0
      %3996 = vmatprep.mubr.f32.mxu0 0.0
      %3997 = vmatmul.mubr.f32.gmra.mrb[0].mxu0 %v3839
      %v3998 = vpop.f32.mrb[0].mxu0
      %v3999 = vadd.f32 %v3742, %v3998
      %v4000 = vpop.f32.mrb[0].mxu0
      %4001 = vmatprep.mubr.f32.mxu0 0.0
      %4002 = vmatmul.mubr.f32.gmra.mrb[0].mxu0 %v3842
      %v4003 = vpop.f32.mrb[0].mxu0
      %v4004 = vadd.f32 %v3747, %v4003
      %v4005 = vpop.f32.mrb[0].mxu0
      %4006 = vmatprep.mubr.f32.mxu0 0.0
      %4007 = vmatmul.mubr.f32.gmra.mrb[0].mxu0 %v3845
      %v4008 = vpop.f32.mrb[0].mxu0
      %v4009 = vadd.f32 %v3752, %v4008
      %v4010 = vpop.f32.mrb[0].mxu0
      %4011 = vmatprep.mubr.f32.mxu0 0.0
      %4012 = vmatmul.mubr.f32.gmra.mrb[0].mxu0 %v3848
      %v4013 = vpop.f32.mrb[0].mxu0
      %v4014 = vadd.f32 %v3757, %v4013
      %v4015 = vpop.f32.mrb[0].mxu0
      %4016 = vmatprep.mubr.f32.mxu0 0.0
      %4017 = vmatmul.mubr.f32.gmra.mrb[0].mxu0 %v3851
      %v4018 = vpop.f32.mrb[0].mxu0
      %v4019 = vadd.f32 %v3762, %v4018
      %v4020 = vpop.f32.mrb[0].mxu0
      %4021 = vmatprep.mubr.f32.mxu0 0.0
      %4022 = vmatmul.mubr.f32.gmra.mrb[0].mxu0 %v3854
      %v4023 = vpop.f32.mrb[0].mxu0
      %v4024 = vadd.f32 %v3767, %v4023
      %v4025 = vpop.f32.mrb[0].mxu0
      %4026 = vmatprep.mubr.f32.mxu0 0.0
      %4027 = vmatmul.mubr.f32.gmra.mrb[0].mxu0 %v3857
      %v4028 = vpop.f32.mrb[0].mxu0
      %v4029 = vadd.f32 %v3772, %v4028
      %v4030 = vpop.f32.mrb[0].mxu0
      %4031 = vmatprep.mubr.f32.mxu0 0.0
      %4032 = vmatmul.mubr.f32.gmra.mrb[0].mxu0 %v3860
      %v4033 = vpop.f32.mrb[0].mxu0
      %v4034 = vadd.f32 %v3777, %v4033
      %v4035 = vpop.f32.mrb[0].mxu0
      %4036 = vmatprep.mubr.f32.mxu0 0.0
      %4037 = vmatmul.mubr.f32.gmra.mrb[0].mxu0 %v3863
      %v4038 = vpop.f32.mrb[0].mxu0
      %v4039 = vadd.f32 %v3782, %v4038
      %v4040 = vpop.f32.mrb[0].mxu0
      %4041 = vmatprep.mubr.f32.mxu0 0.0
      %4042 = vmatmul.mubr.f32.gmra.mrb[0].mxu0 %v3866
      %v4043 = vpop.f32.mrb[0].mxu0
      %v4044 = vadd.f32 %v3787, %v4043
      %v4045 = vpop.f32.mrb[0].mxu0
      %4046 = vmatprep.mubr.f32.mxu0 0.0
      %4047 = vmatmul.mubr.f32.gmra.mrb[0].mxu0 %v3869
      %v4048 = vpop.f32.mrb[0].mxu0
      %v4049 = vadd.f32 %v3792, %v4048
      %v4050 = vpop.f32.mrb[0].mxu0
      %4051 = vmatprep.mubr.f32.mxu0 0.0
      %4052 = vmatmul.mubr.f32.gmra.mrb[0].mxu0 %v3872
      %v4053 = vpop.f32.mrb[0].mxu0
      %v4054 = vadd.f32 %v3797, %v4053
      %v4055 = vpop.f32.mrb[0].mxu0
      %4056 = vmatprep.mubr.f32.mxu0 0.0
      %4057 = vmatmul.mubr.f32.gmra.mrb[0].mxu0 %v3875
      %v4058 = vpop.f32.mrb[0].mxu0
      %v4059 = vadd.f32 %v3802, %v4058
      %v4060 = vpop.f32.mrb[0].mxu0
      %4061 = vdwg.mxu0
      %v4062 = vld [vmem:[#allocation2 + $0x2] sm:$0xff]
      %v4063 = vld [vmem:[#allocation2 + $0xa] sm:$0xff]
      %v4064 = vld [vmem:[#allocation2 + $0x12] sm:$0xff]
      %v4065 = vld [vmem:[#allocation2 + $0x1a] sm:$0xff]
      %v4066 = vld [vmem:[#allocation2 + $0x22] sm:$0xff]
      %v4067 = vld [vmem:[#allocation2 + $0x2a] sm:$0xff]
      %v4068 = vld [vmem:[#allocation2 + $0x32] sm:$0xff]
      %v4069 = vld [vmem:[#allocation2 + $0x3a] sm:$0xff]
      %v4070 = vld [vmem:[#allocation2 + $0x42] sm:$0xff]
      %v4071 = vld [vmem:[#allocation2 + $0x4a] sm:$0xff]
      %v4072 = vld [vmem:[#allocation2 + $0x52] sm:$0xff]
      %v4073 = vld [vmem:[#allocation2 + $0x5a] sm:$0xff]
      %v4074 = vld [vmem:[#allocation2 + $0x62] sm:$0xff]
      %v4075 = vld [vmem:[#allocation2 + $0x6a] sm:$0xff]
      %v4076 = vld [vmem:[#allocation2 + $0x72] sm:$0xff]
      %v4077 = vld [vmem:[#allocation2 + $0x7a] sm:$0xff]
      %v4078 = vld [vmem:[#allocation2 + $0x82] sm:$0xff]
      %v4079 = vld [vmem:[#allocation2 + $0x8a] sm:$0xff]
      %v4080 = vld [vmem:[#allocation2 + $0x92] sm:$0xff]
      %v4081 = vld [vmem:[#allocation2 + $0x9a] sm:$0xff]
      %v4082 = vld [vmem:[#allocation2 + $0xa2] sm:$0xff]
      %v4083 = vld [vmem:[#allocation2 + $0xaa] sm:$0xff]
      %v4084 = vld [vmem:[#allocation2 + $0xb2] sm:$0xff]
      %v4085 = vld [vmem:[#allocation2 + $0xba] sm:$0xff]
      %v4086 = vld [vmem:[%s3 + $0x10] sm:$0xff]
      %v4088 = vsel %vm3467, %v4062, 0
      %v4091 = vsel %vm3467, %v4063, 0
      %v4094 = vsel %vm3467, %v4064, 0
      %v4097 = vsel %vm3467, %v4065, 0
      %v4100 = vsel %vm3467, %v4066, 0
      %v4103 = vsel %vm3467, %v4067, 0
      %v4106 = vsel %vm3467, %v4068, 0
      %v4109 = vsel %vm3467, %v4069, 0
      %v4112 = vsel %vm3467, %v4070, 0
      %v4115 = vsel %vm3467, %v4071, 0
      %v4118 = vsel %vm3467, %v4072, 0
      %v4121 = vsel %vm3467, %v4073, 0
      %v4124 = vsel %vm3467, %v4074, 0
      %v4127 = vsel %vm3467, %v4075, 0
      %v4130 = vsel %vm3467, %v4076, 0
      %v4133 = vsel %vm3467, %v4077, 0
      %v4136 = vsel %vm3467, %v4078, 0
      %v4139 = vsel %vm3467, %v4079, 0
      %v4142 = vsel %vm3467, %v4080, 0
      %v4145 = vsel %vm3467, %v4081, 0
      %v4148 = vsel %vm3467, %v4082, 0
      %v4151 = vsel %vm3467, %v4083, 0
      %v4154 = vsel %vm3467, %v4084, 0
      %v4157 = vsel %vm3467, %v4085, 0
      %4159 = vmatprep.subr.mxu0 0.0
      %4160 = vmatpush1.msra.mxu0 %v4086
      %4161 = vmatprep.subr.mxu0 0.0
      %4162 = vmatpush1.msra.mxu0 0.0
      %4163 = vmatprep.subr.mxu0 0.0
      %4164 = vmatpush1.msra.mxu0 0.0
      %4165 = vmatprep.subr.mxu0 0.0
      %4166 = vmatpush1.msra.mxu0 0.0
      %4167 = vmatprep.subr.mxu0 0.0
      %4168 = vmatpush1.msra.mxu0 0.0
      %4169 = vmatprep.subr.mxu0 0.0
      %4170 = vmatpush1.msra.mxu0 0.0
      %4171 = vmatprep.subr.mxu0 0.0
      %4172 = vmatpush1.msra.mxu0 0.0
      %4173 = vmatprep.subr.mxu0 0.0
      %4174 = vmatpush1.msra.mxu0 0.0
      %4175 = vmatprep.subr.mxu0 0.0
      %4176 = vmatpush1.msra.mxu0 0.0
      %4177 = vmatprep.subr.mxu0 0.0
      %4178 = vmatpush1.msra.mxu0 0.0
      %4179 = vmatprep.subr.mxu0 0.0
      %4180 = vmatpush1.msra.mxu0 0.0
      %4181 = vmatprep.subr.mxu0 0.0
      %4182 = vmatpush1.msra.mxu0 0.0
      %4183 = vmatprep.subr.mxu0 0.0
      %4184 = vmatpush1.msra.mxu0 0.0
      %4185 = vmatprep.subr.mxu0 0.0
      %4186 = vmatpush1.msra.mxu0 0.0
      %4187 = vmatprep.subr.mxu0 0.0
      %4188 = vmatpush1.msra.mxu0 0.0
      %4189 = vmatprep.subr.mxu0 0.0
      %4190 = vmatpush1.msra.mxu0 0.0
      %4191 = vmatprep.subr.mxu0 0.0
      %4192 = vmatpush1.msra.mxu0 0.0
      %4193 = vmatprep.subr.mxu0 0.0
      %4194 = vmatpush1.msra.mxu0 0.0
      %4195 = vmatprep.subr.mxu0 0.0
      %4196 = vmatpush1.msra.mxu0 0.0
      %4197 = vmatprep.subr.mxu0 0.0
      %4198 = vmatpush1.msra.mxu0 0.0
      %4199 = vmatprep.subr.mxu0 0.0
      %4200 = vmatpush1.msra.mxu0 0.0
      %4201 = vmatprep.subr.mxu0 0.0
      %4202 = vmatpush1.msra.mxu0 0.0
      %4203 = vmatprep.subr.mxu0 0.0
      %4204 = vmatpush1.msra.mxu0 0.0
      %4205 = vmatprep.subr.mxu0 0.0
      %4206 = vmatpush1.msra.mxu0 0.0
      %4207 = vmatprep.subr.mxu0 0.0
      %4208 = vmatpush1.msra.mxu0 0.0
      %4209 = vmatprep.subr.mxu0 0.0
      %4210 = vmatpush1.msra.mxu0 0.0
      %4211 = vmatprep.subr.mxu0 0.0
      %4212 = vmatpush1.msra.mxu0 0.0
      %4213 = vmatprep.subr.mxu0 0.0
      %4214 = vmatpush1.msra.mxu0 0.0
      %4215 = vmatprep.subr.mxu0 0.0
      %4216 = vmatpush1.msra.mxu0 0.0
      %4217 = vmatprep.subr.mxu0 0.0
      %4218 = vmatpush1.msra.mxu0 0.0
      %4219 = vmatprep.subr.mxu0 0.0
      %4220 = vmatpush1.msra.mxu0 0.0
      %4221 = vmatprep.subr.mxu0 0.0
      %4222 = vmatpush1.msra.mxu0 0.0
      %4223 = vmatprep.mubr.f32.mxu0 0.0
      %4224 = vmatmul.mubr.f32.gmra.mrb[0].mxu0 %v4088
      %v4225 = vpop.f32.mrb[0].mxu0
      %v4226 = vadd.f32 0.0, %v4225
      %v4227 = vpop.f32.mrb[0].mxu0
      %4228 = vmatprep.mubr.f32.mxu0 0.0
      %4229 = vmatmul.mubr.f32.gmra.mrb[0].mxu0 %v4091
      %v4230 = vpop.f32.mrb[0].mxu0
      %v4231 = vadd.f32 0.0, %v4230
      %v4232 = vpop.f32.mrb[0].mxu0
      %4233 = vmatprep.mubr.f32.mxu0 0.0
      %4234 = vmatmul.mubr.f32.gmra.mrb[0].mxu0 %v4094
      %v4235 = vpop.f32.mrb[0].mxu0
      %v4236 = vadd.f32 0.0, %v4235
      %v4237 = vpop.f32.mrb[0].mxu0
      %4238 = vmatprep.mubr.f32.mxu0 0.0
      %4239 = vmatmul.mubr.f32.gmra.mrb[0].mxu0 %v4097
      %v4240 = vpop.f32.mrb[0].mxu0
      %v4241 = vadd.f32 0.0, %v4240
      %v4242 = vpop.f32.mrb[0].mxu0
      %4243 = vmatprep.mubr.f32.mxu0 0.0
      %4244 = vmatmul.mubr.f32.gmra.mrb[0].mxu0 %v4100
      %v4245 = vpop.f32.mrb[0].mxu0
      %v4246 = vadd.f32 0.0, %v4245
      %v4247 = vpop.f32.mrb[0].mxu0
      %4248 = vmatprep.mubr.f32.mxu0 0.0
      %4249 = vmatmul.mubr.f32.gmra.mrb[0].mxu0 %v4103
      %v4250 = vpop.f32.mrb[0].mxu0
      %v4251 = vadd.f32 0.0, %v4250
      %v4252 = vpop.f32.mrb[0].mxu0
      %4253 = vmatprep.mubr.f32.mxu0 0.0
      %4254 = vmatmul.mubr.f32.gmra.mrb[0].mxu0 %v4106
      %v4255 = vpop.f32.mrb[0].mxu0
      %v4256 = vadd.f32 0.0, %v4255
      %v4257 = vpop.f32.mrb[0].mxu0
      %4258 = vmatprep.mubr.f32.mxu0 0.0
      %4259 = vmatmul.mubr.f32.gmra.mrb[0].mxu0 %v4109
      %v4260 = vpop.f32.mrb[0].mxu0
      %v4261 = vadd.f32 0.0, %v4260
      %v4262 = vpop.f32.mrb[0].mxu0
      %4263 = vmatprep.mubr.f32.mxu0 0.0
      %4264 = vmatmul.mubr.f32.gmra.mrb[0].mxu0 %v4112
      %v4265 = vpop.f32.mrb[0].mxu0
      %v4266 = vadd.f32 0.0, %v4265
      %v4267 = vpop.f32.mrb[0].mxu0
      %4268 = vmatprep.mubr.f32.mxu0 0.0
      %4269 = vmatmul.mubr.f32.gmra.mrb[0].mxu0 %v4115
      %v4270 = vpop.f32.mrb[0].mxu0
      %v4271 = vadd.f32 0.0, %v4270
      %v4272 = vpop.f32.mrb[0].mxu0
      %4273 = vmatprep.mubr.f32.mxu0 0.0
      %4274 = vmatmul.mubr.f32.gmra.mrb[0].mxu0 %v4118
      %v4275 = vpop.f32.mrb[0].mxu0
      %v4276 = vadd.f32 0.0, %v4275
      %v4277 = vpop.f32.mrb[0].mxu0
      %4278 = vmatprep.mubr.f32.mxu0 0.0
      %4279 = vmatmul.mubr.f32.gmra.mrb[0].mxu0 %v4121
      %v4280 = vpop.f32.mrb[0].mxu0
      %v4281 = vadd.f32 0.0, %v4280
      %v4282 = vpop.f32.mrb[0].mxu0
      %4283 = vmatprep.mubr.f32.mxu0 0.0
      %4284 = vmatmul.mubr.f32.gmra.mrb[0].mxu0 %v4124
      %v4285 = vpop.f32.mrb[0].mxu0
      %v4286 = vadd.f32 0.0, %v4285
      %v4287 = vpop.f32.mrb[0].mxu0
      %4288 = vmatprep.mubr.f32.mxu0 0.0
      %4289 = vmatmul.mubr.f32.gmra.mrb[0].mxu0 %v4127
      %v4290 = vpop.f32.mrb[0].mxu0
      %v4291 = vadd.f32 0.0, %v4290
      %v4292 = vpop.f32.mrb[0].mxu0
      %4293 = vmatprep.mubr.f32.mxu0 0.0
      %4294 = vmatmul.mubr.f32.gmra.mrb[0].mxu0 %v4130
      %v4295 = vpop.f32.mrb[0].mxu0
      %v4296 = vadd.f32 0.0, %v4295
      %v4297 = vpop.f32.mrb[0].mxu0
      %4298 = vmatprep.mubr.f32.mxu0 0.0
      %4299 = vmatmul.mubr.f32.gmra.mrb[0].mxu0 %v4133
      %v4300 = vpop.f32.mrb[0].mxu0
      %v4301 = vadd.f32 0.0, %v4300
      %v4302 = vpop.f32.mrb[0].mxu0
      %4303 = vmatprep.mubr.f32.mxu0 0.0
      %4304 = vmatmul.mubr.f32.gmra.mrb[0].mxu0 %v4136
      %v4305 = vpop.f32.mrb[0].mxu0
      %v4306 = vadd.f32 0.0, %v4305
      %v4307 = vpop.f32.mrb[0].mxu0
      %4308 = vmatprep.mubr.f32.mxu0 0.0
      %4309 = vmatmul.mubr.f32.gmra.mrb[0].mxu0 %v4139
      %v4310 = vpop.f32.mrb[0].mxu0
      %v4311 = vadd.f32 0.0, %v4310
      %v4312 = vpop.f32.mrb[0].mxu0
      %4313 = vmatprep.mubr.f32.mxu0 0.0
      %4314 = vmatmul.mubr.f32.gmra.mrb[0].mxu0 %v4142
      %v4315 = vpop.f32.mrb[0].mxu0
      %v4316 = vadd.f32 0.0, %v4315
      %v4317 = vpop.f32.mrb[0].mxu0
      %4318 = vmatprep.mubr.f32.mxu0 0.0
      %4319 = vmatmul.mubr.f32.gmra.mrb[0].mxu0 %v4145
      %v4320 = vpop.f32.mrb[0].mxu0
      %v4321 = vadd.f32 0.0, %v4320
      %v4322 = vpop.f32.mrb[0].mxu0
      %4323 = vmatprep.mubr.f32.mxu0 0.0
      %4324 = vmatmul.mubr.f32.gmra.mrb[0].mxu0 %v4148
      %v4325 = vpop.f32.mrb[0].mxu0
      %v4326 = vadd.f32 0.0, %v4325
      %v4327 = vpop.f32.mrb[0].mxu0
      %4328 = vmatprep.mubr.f32.mxu0 0.0
      %4329 = vmatmul.mubr.f32.gmra.mrb[0].mxu0 %v4151
      %v4330 = vpop.f32.mrb[0].mxu0
      %v4331 = vadd.f32 0.0, %v4330
      %v4332 = vpop.f32.mrb[0].mxu0
      %4333 = vmatprep.mubr.f32.mxu0 0.0
      %4334 = vmatmul.mubr.f32.gmra.mrb[0].mxu0 %v4154
      %v4335 = vpop.f32.mrb[0].mxu0
      %v4336 = vadd.f32 0.0, %v4335
      %v4337 = vpop.f32.mrb[0].mxu0
      %4338 = vmatprep.mubr.f32.mxu0 0.0
      %4339 = vmatmul.mubr.f32.gmra.mrb[0].mxu0 %v4157
      %v4340 = vpop.f32.mrb[0].mxu0
      %v4341 = vadd.f32 0.0, %v4340
      %v4342 = vpop.f32.mrb[0].mxu0
      %4343 = vdwg.mxu0
      %v4344 = vadd.f32 %v3944, %v4226
      %v4345 = vadd.f32 %v3949, %v4231
      %v4346 = vadd.f32 %v3954, %v4236
      %v4347 = vadd.f32 %v3959, %v4241
      %v4348 = vadd.f32 %v3964, %v4246
      %v4349 = vadd.f32 %v3969, %v4251
      %v4350 = vadd.f32 %v3974, %v4256
      %v4351 = vadd.f32 %v3979, %v4261
      %v4352 = vadd.f32 %v3984, %v4266
      %v4353 = vadd.f32 %v3989, %v4271
      %v4354 = vadd.f32 %v3994, %v4276
      %v4355 = vadd.f32 %v3999, %v4281
      %v4356 = vadd.f32 %v4004, %v4286
      %v4357 = vadd.f32 %v4009, %v4291
      %v4358 = vadd.f32 %v4014, %v4296
      %v4359 = vadd.f32 %v4019, %v4301
      %v4360 = vadd.f32 %v4024, %v4306
      %v4361 = vadd.f32 %v4029, %v4311
      %v4362 = vadd.f32 %v4034, %v4316
      %v4363 = vadd.f32 %v4039, %v4321
      %v4364 = vadd.f32 %v4044, %v4326
      %v4365 = vadd.f32 %v4049, %v4331
      %v4366 = vadd.f32 %v4054, %v4336
      %v4367 = vadd.f32 %v4059, %v4341
      %v4368 = vld [vmem:[#allocation2 + $0x10] sm:$0xff]
      %v4369 = vld [vmem:[#allocation2 + $0x18] sm:$0xff]
      %v4370 = vld [vmem:[#allocation2 + $0x20] sm:$0xff]
      %v4371 = vld [vmem:[#allocation2 + $0x28] sm:$0xff]
      %v4372 = vld [vmem:[#allocation2 + $0x30] sm:$0xff]
      %v4373 = vld [vmem:[#allocation2 + $0x38] sm:$0xff]
      %v4374 = vld [vmem:[#allocation2 + $0x40] sm:$0xff]
      %v4375 = vld [vmem:[#allocation2 + $0x48] sm:$0xff]
      %v4376 = vld [vmem:[#allocation2 + $0x50] sm:$0xff]
      %v4377 = vld [vmem:[#allocation2 + $0x58] sm:$0xff]
      %v4378 = vld [vmem:[#allocation2 + $0x60] sm:$0xff]
      %v4379 = vld [vmem:[#allocation2 + $0x68] sm:$0xff]
      %v4380 = vld [vmem:[#allocation2 + $0x70] sm:$0xff]
      %v4381 = vld [vmem:[#allocation2 + $0x78] sm:$0xff]
      %v4382 = vld [vmem:[#allocation2 + $0x80] sm:$0xff]
      %v4383 = vld [vmem:[#allocation2 + $0x88] sm:$0xff]
      %v4384 = vld [vmem:[#allocation2 + $0x90] sm:$0xff]
      %v4385 = vld [vmem:[#allocation2 + $0x98] sm:$0xff]
      %v4386 = vld [vmem:[#allocation2 + $0xa0] sm:$0xff]
      %v4387 = vld [vmem:[#allocation2 + $0xa8] sm:$0xff]
      %v4388 = vld [vmem:[#allocation2 + $0xb0] sm:$0xff]
      %v4389 = vld [vmem:[#allocation2 + $0xb8] sm:$0xff]
      %v4390 = vld [vmem:[#allocation2 + $0xc0] sm:$0xff]
      %v4391 = vld [vmem:[#allocation2 + $0xc8] sm:$0xff]
      %v4392 = vld [vmem:[%s3 + $0x18] sm:$0xff]
      %v4394 = vsel %vm3467, %v4368, 0
      %v4397 = vsel %vm3467, %v4369, 0
      %v4400 = vsel %vm3467, %v4370, 0
      %v4403 = vsel %vm3467, %v4371, 0
      %v4406 = vsel %vm3467, %v4372, 0
      %v4409 = vsel %vm3467, %v4373, 0
      %v4412 = vsel %vm3467, %v4374, 0
      %v4415 = vsel %vm3467, %v4375, 0
      %v4418 = vsel %vm3467, %v4376, 0
      %v4421 = vsel %vm3467, %v4377, 0
      %v4424 = vsel %vm3467, %v4378, 0
      %v4427 = vsel %vm3467, %v4379, 0
      %v4430 = vsel %vm3467, %v4380, 0
      %v4433 = vsel %vm3467, %v4381, 0
      %v4436 = vsel %vm3467, %v4382, 0
      %v4439 = vsel %vm3467, %v4383, 0
      %v4442 = vsel %vm3467, %v4384, 0
      %v4445 = vsel %vm3467, %v4385, 0
      %v4448 = vsel %vm3467, %v4386, 0
      %v4451 = vsel %vm3467, %v4387, 0
      %v4454 = vsel %vm3467, %v4388, 0
      %v4457 = vsel %vm3467, %v4389, 0
      %v4460 = vsel %vm3467, %v4390, 0
      %v4463 = vsel %vm3467, %v4391, 0
      %4465 = vmatprep.subr.mxu0 0.0
      %4466 = vmatpush1.msra.mxu0 %v4392
      %4467 = vmatprep.subr.mxu0 0.0
      %4468 = vmatpush1.msra.mxu0 0.0
      %4469 = vmatprep.subr.mxu0 0.0
      %4470 = vmatpush1.msra.mxu0 0.0
      %4471 = vmatprep.subr.mxu0 0.0
      %4472 = vmatpush1.msra.mxu0 0.0
      %4473 = vmatprep.subr.mxu0 0.0
      %4474 = vmatpush1.msra.mxu0 0.0
      %4475 = vmatprep.subr.mxu0 0.0
      %4476 = vmatpush1.msra.mxu0 0.0
      %4477 = vmatprep.subr.mxu0 0.0
      %4478 = vmatpush1.msra.mxu0 0.0
      %4479 = vmatprep.subr.mxu0 0.0
      %4480 = vmatpush1.msra.mxu0 0.0
      %4481 = vmatprep.subr.mxu0 0.0
      %4482 = vmatpush1.msra.mxu0 0.0
      %4483 = vmatprep.subr.mxu0 0.0
      %4484 = vmatpush1.msra.mxu0 0.0
      %4485 = vmatprep.subr.mxu0 0.0
      %4486 = vmatpush1.msra.mxu0 0.0
      %4487 = vmatprep.subr.mxu0 0.0
      %4488 = vmatpush1.msra.mxu0 0.0
      %4489 = vmatprep.subr.mxu0 0.0
      %4490 = vmatpush1.msra.mxu0 0.0
      %4491 = vmatprep.subr.mxu0 0.0
      %4492 = vmatpush1.msra.mxu0 0.0
      %4493 = vmatprep.subr.mxu0 0.0
      %4494 = vmatpush1.msra.mxu0 0.0
      %4495 = vmatprep.subr.mxu0 0.0
      %4496 = vmatpush1.msra.mxu0 0.0
      %4497 = vmatprep.subr.mxu0 0.0
      %4498 = vmatpush1.msra.mxu0 0.0
      %4499 = vmatprep.subr.mxu0 0.0
      %4500 = vmatpush1.msra.mxu0 0.0
      %4501 = vmatprep.subr.mxu0 0.0
      %4502 = vmatpush1.msra.mxu0 0.0
      %4503 = vmatprep.subr.mxu0 0.0
      %4504 = vmatpush1.msra.mxu0 0.0
      %4505 = vmatprep.subr.mxu0 0.0
      %4506 = vmatpush1.msra.mxu0 0.0
      %4507 = vmatprep.subr.mxu0 0.0
      %4508 = vmatpush1.msra.mxu0 0.0
      %4509 = vmatprep.subr.mxu0 0.0
      %4510 = vmatpush1.msra.mxu0 0.0
      %4511 = vmatprep.subr.mxu0 0.0
      %4512 = vmatpush1.msra.mxu0 0.0
      %4513 = vmatprep.subr.mxu0 0.0
      %4514 = vmatpush1.msra.mxu0 0.0
      %4515 = vmatprep.subr.mxu0 0.0
      %4516 = vmatpush1.msra.mxu0 0.0
      %4517 = vmatprep.subr.mxu0 0.0
      %4518 = vmatpush1.msra.mxu0 0.0
      %4519 = vmatprep.subr.mxu0 0.0
      %4520 = vmatpush1.msra.mxu0 0.0
      %4521 = vmatprep.subr.mxu0 0.0
      %4522 = vmatpush1.msra.mxu0 0.0
      %4523 = vmatprep.subr.mxu0 0.0
      %4524 = vmatpush1.msra.mxu0 0.0
      %4525 = vmatprep.subr.mxu0 0.0
      %4526 = vmatpush1.msra.mxu0 0.0
      %4527 = vmatprep.subr.mxu0 0.0
      %4528 = vmatpush1.msra.mxu0 0.0
      %4529 = vmatprep.mubr.f32.mxu0 0.0
      %4530 = vmatmul.mubr.f32.gmra.mrb[0].mxu0 %v4394
      %v4531 = vpop.f32.mrb[0].mxu0
      %v4532 = vadd.f32 0.0, %v4531
      %v4533 = vpop.f32.mrb[0].mxu0
      %4534 = vmatprep.mubr.f32.mxu0 0.0
      %4535 = vmatmul.mubr.f32.gmra.mrb[0].mxu0 %v4397
      %v4536 = vpop.f32.mrb[0].mxu0
      %v4537 = vadd.f32 0.0, %v4536
      %v4538 = vpop.f32.mrb[0].mxu0
      %4539 = vmatprep.mubr.f32.mxu0 0.0
      %4540 = vmatmul.mubr.f32.gmra.mrb[0].mxu0 %v4400
      %v4541 = vpop.f32.mrb[0].mxu0
      %v4542 = vadd.f32 0.0, %v4541
      %v4543 = vpop.f32.mrb[0].mxu0
      %4544 = vmatprep.mubr.f32.mxu0 0.0
      %4545 = vmatmul.mubr.f32.gmra.mrb[0].mxu0 %v4403
      %v4546 = vpop.f32.mrb[0].mxu0
      %v4547 = vadd.f32 0.0, %v4546
      %v4548 = vpop.f32.mrb[0].mxu0
      %4549 = vmatprep.mubr.f32.mxu0 0.0
      %4550 = vmatmul.mubr.f32.gmra.mrb[0].mxu0 %v4406
      %v4551 = vpop.f32.mrb[0].mxu0
      %v4552 = vadd.f32 0.0, %v4551
      %v4553 = vpop.f32.mrb[0].mxu0
      %4554 = vmatprep.mubr.f32.mxu0 0.0
      %4555 = vmatmul.mubr.f32.gmra.mrb[0].mxu0 %v4409
      %v4556 = vpop.f32.mrb[0].mxu0
      %v4557 = vadd.f32 0.0, %v4556
      %v4558 = vpop.f32.mrb[0].mxu0
      %4559 = vmatprep.mubr.f32.mxu0 0.0
      %4560 = vmatmul.mubr.f32.gmra.mrb[0].mxu0 %v4412
      %v4561 = vpop.f32.mrb[0].mxu0
      %v4562 = vadd.f32 0.0, %v4561
      %v4563 = vpop.f32.mrb[0].mxu0
      %4564 = vmatprep.mubr.f32.mxu0 0.0
      %4565 = vmatmul.mubr.f32.gmra.mrb[0].mxu0 %v4415
      %v4566 = vpop.f32.mrb[0].mxu0
      %v4567 = vadd.f32 0.0, %v4566
      %v4568 = vpop.f32.mrb[0].mxu0
      %4569 = vmatprep.mubr.f32.mxu0 0.0
      %4570 = vmatmul.mubr.f32.gmra.mrb[0].mxu0 %v4418
      %v4571 = vpop.f32.mrb[0].mxu0
      %v4572 = vadd.f32 0.0, %v4571
      %v4573 = vpop.f32.mrb[0].mxu0
      %4574 = vmatprep.mubr.f32.mxu0 0.0
      %4575 = vmatmul.mubr.f32.gmra.mrb[0].mxu0 %v4421
      %v4576 = vpop.f32.mrb[0].mxu0
      %v4577 = vadd.f32 0.0, %v4576
      %v4578 = vpop.f32.mrb[0].mxu0
      %4579 = vmatprep.mubr.f32.mxu0 0.0
      %4580 = vmatmul.mubr.f32.gmra.mrb[0].mxu0 %v4424
      %v4581 = vpop.f32.mrb[0].mxu0
      %v4582 = vadd.f32 0.0, %v4581
      %v4583 = vpop.f32.mrb[0].mxu0
      %4584 = vmatprep.mubr.f32.mxu0 0.0
      %4585 = vmatmul.mubr.f32.gmra.mrb[0].mxu0 %v4427
      %v4586 = vpop.f32.mrb[0].mxu0
      %v4587 = vadd.f32 0.0, %v4586
      %v4588 = vpop.f32.mrb[0].mxu0
      %4589 = vmatprep.mubr.f32.mxu0 0.0
      %4590 = vmatmul.mubr.f32.gmra.mrb[0].mxu0 %v4430
      %v4591 = vpop.f32.mrb[0].mxu0
      %v4592 = vadd.f32 0.0, %v4591
      %v4593 = vpop.f32.mrb[0].mxu0
      %4594 = vmatprep.mubr.f32.mxu0 0.0
      %4595 = vmatmul.mubr.f32.gmra.mrb[0].mxu0 %v4433
      %v4596 = vpop.f32.mrb[0].mxu0
      %v4597 = vadd.f32 0.0, %v4596
      %v4598 = vpop.f32.mrb[0].mxu0
      %4599 = vmatprep.mubr.f32.mxu0 0.0
      %4600 = vmatmul.mubr.f32.gmra.mrb[0].mxu0 %v4436
      %v4601 = vpop.f32.mrb[0].mxu0
      %v4602 = vadd.f32 0.0, %v4601
      %v4603 = vpop.f32.mrb[0].mxu0
      %4604 = vmatprep.mubr.f32.mxu0 0.0
      %4605 = vmatmul.mubr.f32.gmra.mrb[0].mxu0 %v4439
      %v4606 = vpop.f32.mrb[0].mxu0
      %v4607 = vadd.f32 0.0, %v4606
      %v4608 = vpop.f32.mrb[0].mxu0
      %4609 = vmatprep.mubr.f32.mxu0 0.0
      %4610 = vmatmul.mubr.f32.gmra.mrb[0].mxu0 %v4442
      %v4611 = vpop.f32.mrb[0].mxu0
      %v4612 = vadd.f32 0.0, %v4611
      %v4613 = vpop.f32.mrb[0].mxu0
      %4614 = vmatprep.mubr.f32.mxu0 0.0
      %4615 = vmatmul.mubr.f32.gmra.mrb[0].mxu0 %v4445
      %v4616 = vpop.f32.mrb[0].mxu0
      %v4617 = vadd.f32 0.0, %v4616
      %v4618 = vpop.f32.mrb[0].mxu0
      %4619 = vmatprep.mubr.f32.mxu0 0.0
      %4620 = vmatmul.mubr.f32.gmra.mrb[0].mxu0 %v4448
      %v4621 = vpop.f32.mrb[0].mxu0
      %v4622 = vadd.f32 0.0, %v4621
      %v4623 = vpop.f32.mrb[0].mxu0
      %4624 = vmatprep.mubr.f32.mxu0 0.0
      %4625 = vmatmul.mubr.f32.gmra.mrb[0].mxu0 %v4451
      %v4626 = vpop.f32.mrb[0].mxu0
      %v4627 = vadd.f32 0.0, %v4626
      %v4628 = vpop.f32.mrb[0].mxu0
      %4629 = vmatprep.mubr.f32.mxu0 0.0
      %4630 = vmatmul.mubr.f32.gmra.mrb[0].mxu0 %v4454
      %v4631 = vpop.f32.mrb[0].mxu0
      %v4632 = vadd.f32 0.0, %v4631
      %v4633 = vpop.f32.mrb[0].mxu0
      %4634 = vmatprep.mubr.f32.mxu0 0.0
      %4635 = vmatmul.mubr.f32.gmra.mrb[0].mxu0 %v4457
      %v4636 = vpop.f32.mrb[0].mxu0
      %v4637 = vadd.f32 0.0, %v4636
      %v4638 = vpop.f32.mrb[0].mxu0
      %4639 = vmatprep.mubr.f32.mxu0 0.0
      %4640 = vmatmul.mubr.f32.gmra.mrb[0].mxu0 %v4460
      %v4641 = vpop.f32.mrb[0].mxu0
      %v4642 = vadd.f32 0.0, %v4641
      %v4643 = vpop.f32.mrb[0].mxu0
      %4644 = vmatprep.mubr.f32.mxu0 0.0
      %4645 = vmatmul.mubr.f32.gmra.mrb[0].mxu0 %v4463
      %v4646 = vpop.f32.mrb[0].mxu0
      %v4647 = vadd.f32 0.0, %v4646
      %v4648 = vpop.f32.mrb[0].mxu0
      %4649 = vdwg.mxu0
      %v4650 = vadd.f32 %v4344, %v4532
      %v4651 = vadd.f32 %v4345, %v4537
      %v4652 = vadd.f32 %v4346, %v4542
      %v4653 = vadd.f32 %v4347, %v4547
      %v4654 = vadd.f32 %v4348, %v4552
      %v4655 = vadd.f32 %v4349, %v4557
      %v4656 = vadd.f32 %v4350, %v4562
      %v4657 = vadd.f32 %v4351, %v4567
      %v4658 = vadd.f32 %v4352, %v4572
      %v4659 = vadd.f32 %v4353, %v4577
      %v4660 = vadd.f32 %v4354, %v4582
      %v4661 = vadd.f32 %v4355, %v4587
      %v4662 = vadd.f32 %v4356, %v4592
      %v4663 = vadd.f32 %v4357, %v4597
      %v4664 = vadd.f32 %v4358, %v4602
      %v4665 = vadd.f32 %v4359, %v4607
      %v4666 = vadd.f32 %v4360, %v4612
      %v4667 = vadd.f32 %v4361, %v4617
      %v4668 = vadd.f32 %v4362, %v4622
      %v4669 = vadd.f32 %v4363, %v4627
      %v4670 = vadd.f32 %v4364, %v4632
      %v4671 = vadd.f32 %v4365, %v4637
      %v4672 = vadd.f32 %v4366, %v4642
      %v4673 = vadd.f32 %v4367, %v4647
      %v4674 = vld [vmem:[#allocation2 + $0x11] sm:$0xff]
      %v4675 = vld [vmem:[#allocation2 + $0x19] sm:$0xff]
      %v4676 = vld [vmem:[#allocation2 + $0x21] sm:$0xff]
      %v4677 = vld [vmem:[#allocation2 + $0x29] sm:$0xff]
      %v4678 = vld [vmem:[#allocation2 + $0x31] sm:$0xff]
      %v4679 = vld [vmem:[#allocation2 + $0x39] sm:$0xff]
      %v4680 = vld [vmem:[#allocation2 + $0x41] sm:$0xff]
      %v4681 = vld [vmem:[#allocation2 + $0x49] sm:$0xff]
      %v4682 = vld [vmem:[#allocation2 + $0x51] sm:$0xff]
      %v4683 = vld [vmem:[#allocation2 + $0x59] sm:$0xff]
      %v4684 = vld [vmem:[#allocation2 + $0x61] sm:$0xff]
      %v4685 = vld [vmem:[#allocation2 + $0x69] sm:$0xff]
      %v4686 = vld [vmem:[#allocation2 + $0x71] sm:$0xff]
      %v4687 = vld [vmem:[#allocation2 + $0x79] sm:$0xff]
      %v4688 = vld [vmem:[#allocation2 + $0x81] sm:$0xff]
      %v4689 = vld [vmem:[#allocation2 + $0x89] sm:$0xff]
      %v4690 = vld [vmem:[#allocation2 + $0x91] sm:$0xff]
      %v4691 = vld [vmem:[#allocation2 + $0x99] sm:$0xff]
      %v4692 = vld [vmem:[#allocation2 + $0xa1] sm:$0xff]
      %v4693 = vld [vmem:[#allocation2 + $0xa9] sm:$0xff]
      %v4694 = vld [vmem:[#allocation2 + $0xb1] sm:$0xff]
      %v4695 = vld [vmem:[#allocation2 + $0xb9] sm:$0xff]
      %v4696 = vld [vmem:[#allocation2 + $0xc1] sm:$0xff]
      %v4697 = vld [vmem:[#allocation2 + $0xc9] sm:$0xff]
      %v4698 = vld [vmem:[%s3 + $0x20] sm:$0xff]
      %v4700 = vsel %vm3467, %v4674, 0
      %v4703 = vsel %vm3467, %v4675, 0
      %v4706 = vsel %vm3467, %v4676, 0
      %v4709 = vsel %vm3467, %v4677, 0
      %v4712 = vsel %vm3467, %v4678, 0
      %v4715 = vsel %vm3467, %v4679, 0
      %v4718 = vsel %vm3467, %v4680, 0
      %v4721 = vsel %vm3467, %v4681, 0
      %v4724 = vsel %vm3467, %v4682, 0
      %v4727 = vsel %vm3467, %v4683, 0
      %v4730 = vsel %vm3467, %v4684, 0
      %v4733 = vsel %vm3467, %v4685, 0
      %v4736 = vsel %vm3467, %v4686, 0
      %v4739 = vsel %vm3467, %v4687, 0
      %v4742 = vsel %vm3467, %v4688, 0
      %v4745 = vsel %vm3467, %v4689, 0
      %v4748 = vsel %vm3467, %v4690, 0
      %v4751 = vsel %vm3467, %v4691, 0
      %v4754 = vsel %vm3467, %v4692, 0
      %v4757 = vsel %vm3467, %v4693, 0
      %v4760 = vsel %vm3467, %v4694, 0
      %v4763 = vsel %vm3467, %v4695, 0
      %v4766 = vsel %vm3467, %v4696, 0
      %v4769 = vsel %vm3467, %v4697, 0
      %4771 = vmatprep.subr.mxu0 0.0
      %4772 = vmatpush1.msra.mxu0 %v4698
      %4773 = vmatprep.subr.mxu0 0.0
      %4774 = vmatpush1.msra.mxu0 0.0
      %4775 = vmatprep.subr.mxu0 0.0
      %4776 = vmatpush1.msra.mxu0 0.0
      %4777 = vmatprep.subr.mxu0 0.0
      %4778 = vmatpush1.msra.mxu0 0.0
      %4779 = vmatprep.subr.mxu0 0.0
      %4780 = vmatpush1.msra.mxu0 0.0
      %4781 = vmatprep.subr.mxu0 0.0
      %4782 = vmatpush1.msra.mxu0 0.0
      %4783 = vmatprep.subr.mxu0 0.0
      %4784 = vmatpush1.msra.mxu0 0.0
      %4785 = vmatprep.subr.mxu0 0.0
      %4786 = vmatpush1.msra.mxu0 0.0
      %4787 = vmatprep.subr.mxu0 0.0
      %4788 = vmatpush1.msra.mxu0 0.0
      %4789 = vmatprep.subr.mxu0 0.0
      %4790 = vmatpush1.msra.mxu0 0.0
      %4791 = vmatprep.subr.mxu0 0.0
      %4792 = vmatpush1.msra.mxu0 0.0
      %4793 = vmatprep.subr.mxu0 0.0
      %4794 = vmatpush1.msra.mxu0 0.0
      %4795 = vmatprep.subr.mxu0 0.0
      %4796 = vmatpush1.msra.mxu0 0.0
      %4797 = vmatprep.subr.mxu0 0.0
      %4798 = vmatpush1.msra.mxu0 0.0
      %4799 = vmatprep.subr.mxu0 0.0
      %4800 = vmatpush1.msra.mxu0 0.0
      %4801 = vmatprep.subr.mxu0 0.0
      %4802 = vmatpush1.msra.mxu0 0.0
      %4803 = vmatprep.subr.mxu0 0.0
      %4804 = vmatpush1.msra.mxu0 0.0
      %4805 = vmatprep.subr.mxu0 0.0
      %4806 = vmatpush1.msra.mxu0 0.0
      %4807 = vmatprep.subr.mxu0 0.0
      %4808 = vmatpush1.msra.mxu0 0.0
      %4809 = vmatprep.subr.mxu0 0.0
      %4810 = vmatpush1.msra.mxu0 0.0
      %4811 = vmatprep.subr.mxu0 0.0
      %4812 = vmatpush1.msra.mxu0 0.0
      %4813 = vmatprep.subr.mxu0 0.0
      %4814 = vmatpush1.msra.mxu0 0.0
      %4815 = vmatprep.subr.mxu0 0.0
      %4816 = vmatpush1.msra.mxu0 0.0
      %4817 = vmatprep.subr.mxu0 0.0
      %4818 = vmatpush1.msra.mxu0 0.0
      %4819 = vmatprep.subr.mxu0 0.0
      %4820 = vmatpush1.msra.mxu0 0.0
      %4821 = vmatprep.subr.mxu0 0.0
      %4822 = vmatpush1.msra.mxu0 0.0
      %4823 = vmatprep.subr.mxu0 0.0
      %4824 = vmatpush1.msra.mxu0 0.0
      %4825 = vmatprep.subr.mxu0 0.0
      %4826 = vmatpush1.msra.mxu0 0.0
      %4827 = vmatprep.subr.mxu0 0.0
      %4828 = vmatpush1.msra.mxu0 0.0
      %4829 = vmatprep.subr.mxu0 0.0
      %4830 = vmatpush1.msra.mxu0 0.0
      %4831 = vmatprep.subr.mxu0 0.0
      %4832 = vmatpush1.msra.mxu0 0.0
      %4833 = vmatprep.subr.mxu0 0.0
      %4834 = vmatpush1.msra.mxu0 0.0
      %4835 = vmatprep.mubr.f32.mxu0 0.0
      %4836 = vmatmul.mubr.f32.gmra.mrb[0].mxu0 %v4700
      %v4837 = vpop.f32.mrb[0].mxu0
      %v4838 = vadd.f32 0.0, %v4837
      %v4839 = vpop.f32.mrb[0].mxu0
      %4840 = vmatprep.mubr.f32.mxu0 0.0
      %4841 = vmatmul.mubr.f32.gmra.mrb[0].mxu0 %v4703
      %v4842 = vpop.f32.mrb[0].mxu0
      %v4843 = vadd.f32 0.0, %v4842
      %v4844 = vpop.f32.mrb[0].mxu0
      %4845 = vmatprep.mubr.f32.mxu0 0.0
      %4846 = vmatmul.mubr.f32.gmra.mrb[0].mxu0 %v4706
      %v4847 = vpop.f32.mrb[0].mxu0
      %v4848 = vadd.f32 0.0, %v4847
      %v4849 = vpop.f32.mrb[0].mxu0
      %4850 = vmatprep.mubr.f32.mxu0 0.0
      %4851 = vmatmul.mubr.f32.gmra.mrb[0].mxu0 %v4709
      %v4852 = vpop.f32.mrb[0].mxu0
      %v4853 = vadd.f32 0.0, %v4852
      %v4854 = vpop.f32.mrb[0].mxu0
      %4855 = vmatprep.mubr.f32.mxu0 0.0
      %4856 = vmatmul.mubr.f32.gmra.mrb[0].mxu0 %v4712
      %v4857 = vpop.f32.mrb[0].mxu0
      %v4858 = vadd.f32 0.0, %v4857
      %v4859 = vpop.f32.mrb[0].mxu0
      %4860 = vmatprep.mubr.f32.mxu0 0.0
      %4861 = vmatmul.mubr.f32.gmra.mrb[0].mxu0 %v4715
      %v4862 = vpop.f32.mrb[0].mxu0
      %v4863 = vadd.f32 0.0, %v4862
      %v4864 = vpop.f32.mrb[0].mxu0
      %4865 = vmatprep.mubr.f32.mxu0 0.0
      %4866 = vmatmul.mubr.f32.gmra.mrb[0].mxu0 %v4718
      %v4867 = vpop.f32.mrb[0].mxu0
      %v4868 = vadd.f32 0.0, %v4867
      %v4869 = vpop.f32.mrb[0].mxu0
      %4870 = vmatprep.mubr.f32.mxu0 0.0
      %4871 = vmatmul.mubr.f32.gmra.mrb[0].mxu0 %v4721
      %v4872 = vpop.f32.mrb[0].mxu0
      %v4873 = vadd.f32 0.0, %v4872
      %v4874 = vpop.f32.mrb[0].mxu0
      %4875 = vmatprep.mubr.f32.mxu0 0.0
      %4876 = vmatmul.mubr.f32.gmra.mrb[0].mxu0 %v4724
      %v4877 = vpop.f32.mrb[0].mxu0
      %v4878 = vadd.f32 0.0, %v4877
      %v4879 = vpop.f32.mrb[0].mxu0
      %4880 = vmatprep.mubr.f32.mxu0 0.0
      %4881 = vmatmul.mubr.f32.gmra.mrb[0].mxu0 %v4727
      %v4882 = vpop.f32.mrb[0].mxu0
      %v4883 = vadd.f32 0.0, %v4882
      %v4884 = vpop.f32.mrb[0].mxu0
      %4885 = vmatprep.mubr.f32.mxu0 0.0
      %4886 = vmatmul.mubr.f32.gmra.mrb[0].mxu0 %v4730
      %v4887 = vpop.f32.mrb[0].mxu0
      %v4888 = vadd.f32 0.0, %v4887
      %v4889 = vpop.f32.mrb[0].mxu0
      %4890 = vmatprep.mubr.f32.mxu0 0.0
      %4891 = vmatmul.mubr.f32.gmra.mrb[0].mxu0 %v4733
      %v4892 = vpop.f32.mrb[0].mxu0
      %v4893 = vadd.f32 0.0, %v4892
      %v4894 = vpop.f32.mrb[0].mxu0
      %4895 = vmatprep.mubr.f32.mxu0 0.0
      %4896 = vmatmul.mubr.f32.gmra.mrb[0].mxu0 %v4736
      %v4897 = vpop.f32.mrb[0].mxu0
      %v4898 = vadd.f32 0.0, %v4897
      %v4899 = vpop.f32.mrb[0].mxu0
      %4900 = vmatprep.mubr.f32.mxu0 0.0
      %4901 = vmatmul.mubr.f32.gmra.mrb[0].mxu0 %v4739
      %v4902 = vpop.f32.mrb[0].mxu0
      %v4903 = vadd.f32 0.0, %v4902
      %v4904 = vpop.f32.mrb[0].mxu0
      %4905 = vmatprep.mubr.f32.mxu0 0.0
      %4906 = vmatmul.mubr.f32.gmra.mrb[0].mxu0 %v4742
      %v4907 = vpop.f32.mrb[0].mxu0
      %v4908 = vadd.f32 0.0, %v4907
      %v4909 = vpop.f32.mrb[0].mxu0
      %4910 = vmatprep.mubr.f32.mxu0 0.0
      %4911 = vmatmul.mubr.f32.gmra.mrb[0].mxu0 %v4745
      %v4912 = vpop.f32.mrb[0].mxu0
      %v4913 = vadd.f32 0.0, %v4912
      %v4914 = vpop.f32.mrb[0].mxu0
      %4915 = vmatprep.mubr.f32.mxu0 0.0
      %4916 = vmatmul.mubr.f32.gmra.mrb[0].mxu0 %v4748
      %v4917 = vpop.f32.mrb[0].mxu0
      %v4918 = vadd.f32 0.0, %v4917
      %v4919 = vpop.f32.mrb[0].mxu0
      %4920 = vmatprep.mubr.f32.mxu0 0.0
      %4921 = vmatmul.mubr.f32.gmra.mrb[0].mxu0 %v4751
      %v4922 = vpop.f32.mrb[0].mxu0
      %v4923 = vadd.f32 0.0, %v4922
      %v4924 = vpop.f32.mrb[0].mxu0
      %4925 = vmatprep.mubr.f32.mxu0 0.0
      %4926 = vmatmul.mubr.f32.gmra.mrb[0].mxu0 %v4754
      %v4927 = vpop.f32.mrb[0].mxu0
      %v4928 = vadd.f32 0.0, %v4927
      %v4929 = vpop.f32.mrb[0].mxu0
      %4930 = vmatprep.mubr.f32.mxu0 0.0
      %4931 = vmatmul.mubr.f32.gmra.mrb[0].mxu0 %v4757
      %v4932 = vpop.f32.mrb[0].mxu0
      %v4933 = vadd.f32 0.0, %v4932
      %v4934 = vpop.f32.mrb[0].mxu0
      %4935 = vmatprep.mubr.f32.mxu0 0.0
      %4936 = vmatmul.mubr.f32.gmra.mrb[0].mxu0 %v4760
      %v4937 = vpop.f32.mrb[0].mxu0
      %v4938 = vadd.f32 0.0, %v4937
      %v4939 = vpop.f32.mrb[0].mxu0
      %4940 = vmatprep.mubr.f32.mxu0 0.0
      %4941 = vmatmul.mubr.f32.gmra.mrb[0].mxu0 %v4763
      %v4942 = vpop.f32.mrb[0].mxu0
      %v4943 = vadd.f32 0.0, %v4942
      %v4944 = vpop.f32.mrb[0].mxu0
      %4945 = vmatprep.mubr.f32.mxu0 0.0
      %4946 = vmatmul.mubr.f32.gmra.mrb[0].mxu0 %v4766
      %v4947 = vpop.f32.mrb[0].mxu0
      %v4948 = vadd.f32 0.0, %v4947
      %v4949 = vpop.f32.mrb[0].mxu0
      %4950 = vmatprep.mubr.f32.mxu0 0.0
      %4951 = vmatmul.mubr.f32.gmra.mrb[0].mxu0 %v4769
      %v4952 = vpop.f32.mrb[0].mxu0
      %v4953 = vadd.f32 0.0, %v4952
      %v4954 = vpop.f32.mrb[0].mxu0
      %4955 = vdwg.mxu0
      %v4956 = vadd.f32 %v4650, %v4838
      %v4957 = vadd.f32 %v4651, %v4843
      %v4958 = vadd.f32 %v4652, %v4848
      %v4959 = vadd.f32 %v4653, %v4853
      %v4960 = vadd.f32 %v4654, %v4858
      %v4961 = vadd.f32 %v4655, %v4863
      %v4962 = vadd.f32 %v4656, %v4868
      %v4963 = vadd.f32 %v4657, %v4873
      %v4964 = vadd.f32 %v4658, %v4878
      %v4965 = vadd.f32 %v4659, %v4883
      %v4966 = vadd.f32 %v4660, %v4888
      %v4967 = vadd.f32 %v4661, %v4893
      %v4968 = vadd.f32 %v4662, %v4898
      %v4969 = vadd.f32 %v4663, %v4903
      %v4970 = vadd.f32 %v4664, %v4908
      %v4971 = vadd.f32 %v4665, %v4913
      %v4972 = vadd.f32 %v4666, %v4918
      %v4973 = vadd.f32 %v4667, %v4923
      %v4974 = vadd.f32 %v4668, %v4928
      %v4975 = vadd.f32 %v4669, %v4933
      %v4976 = vadd.f32 %v4670, %v4938
      %v4977 = vadd.f32 %v4671, %v4943
      %v4978 = vadd.f32 %v4672, %v4948
      %v4979 = vadd.f32 %v4673, %v4953
      %v4980 = vld [vmem:[#allocation2 + $0x12] sm:$0xff]
      %v4981 = vld [vmem:[#allocation2 + $0x1a] sm:$0xff]
      %v4982 = vld [vmem:[#allocation2 + $0x22] sm:$0xff]
      %v4983 = vld [vmem:[#allocation2 + $0x2a] sm:$0xff]
      %v4984 = vld [vmem:[#allocation2 + $0x32] sm:$0xff]
      %v4985 = vld [vmem:[#allocation2 + $0x3a] sm:$0xff]
      %v4986 = vld [vmem:[#allocation2 + $0x42] sm:$0xff]
      %v4987 = vld [vmem:[#allocation2 + $0x4a] sm:$0xff]
      %v4988 = vld [vmem:[#allocation2 + $0x52] sm:$0xff]
      %v4989 = vld [vmem:[#allocation2 + $0x5a] sm:$0xff]
      %v4990 = vld [vmem:[#allocation2 + $0x62] sm:$0xff]
      %v4991 = vld [vmem:[#allocation2 + $0x6a] sm:$0xff]
      %v4992 = vld [vmem:[#allocation2 + $0x72] sm:$0xff]
      %v4993 = vld [vmem:[#allocation2 + $0x7a] sm:$0xff]
      %v4994 = vld [vmem:[#allocation2 + $0x82] sm:$0xff]
      %v4995 = vld [vmem:[#allocation2 + $0x8a] sm:$0xff]
      %v4996 = vld [vmem:[#allocation2 + $0x92] sm:$0xff]
      %v4997 = vld [vmem:[#allocation2 + $0x9a] sm:$0xff]
      %v4998 = vld [vmem:[#allocation2 + $0xa2] sm:$0xff]
      %v4999 = vld [vmem:[#allocation2 + $0xaa] sm:$0xff]
      %v5000 = vld [vmem:[#allocation2 + $0xb2] sm:$0xff]
      %v5001 = vld [vmem:[#allocation2 + $0xba] sm:$0xff]
      %v5002 = vld [vmem:[#allocation2 + $0xc2] sm:$0xff]
      %v5003 = vld [vmem:[#allocation2 + $0xca] sm:$0xff]
      %v5004 = vld [vmem:[%s3 + $0x28] sm:$0xff]
      %v5006 = vsel %vm3467, %v4980, 0
      %v5009 = vsel %vm3467, %v4981, 0
      %v5012 = vsel %vm3467, %v4982, 0
      %v5015 = vsel %vm3467, %v4983, 0
      %v5018 = vsel %vm3467, %v4984, 0
      %v5021 = vsel %vm3467, %v4985, 0
      %v5024 = vsel %vm3467, %v4986, 0
      %v5027 = vsel %vm3467, %v4987, 0
      %v5030 = vsel %vm3467, %v4988, 0
      %v5033 = vsel %vm3467, %v4989, 0
      %v5036 = vsel %vm3467, %v4990, 0
      %v5039 = vsel %vm3467, %v4991, 0
      %v5042 = vsel %vm3467, %v4992, 0
      %v5045 = vsel %vm3467, %v4993, 0
      %v5048 = vsel %vm3467, %v4994, 0
      %v5051 = vsel %vm3467, %v4995, 0
      %v5054 = vsel %vm3467, %v4996, 0
      %v5057 = vsel %vm3467, %v4997, 0
      %v5060 = vsel %vm3467, %v4998, 0
      %v5063 = vsel %vm3467, %v4999, 0
      %v5066 = vsel %vm3467, %v5000, 0
      %v5069 = vsel %vm3467, %v5001, 0
      %v5072 = vsel %vm3467, %v5002, 0
      %v5075 = vsel %vm3467, %v5003, 0
      %5077 = vmatprep.subr.mxu0 0.0
      %5078 = vmatpush1.msra.mxu0 %v5004
      %5079 = vmatprep.subr.mxu0 0.0
      %5080 = vmatpush1.msra.mxu0 0.0
      %5081 = vmatprep.subr.mxu0 0.0
      %5082 = vmatpush1.msra.mxu0 0.0
      %5083 = vmatprep.subr.mxu0 0.0
      %5084 = vmatpush1.msra.mxu0 0.0
      %5085 = vmatprep.subr.mxu0 0.0
      %5086 = vmatpush1.msra.mxu0 0.0
      %5087 = vmatprep.subr.mxu0 0.0
      %5088 = vmatpush1.msra.mxu0 0.0
      %5089 = vmatprep.subr.mxu0 0.0
      %5090 = vmatpush1.msra.mxu0 0.0
      %5091 = vmatprep.subr.mxu0 0.0
      %5092 = vmatpush1.msra.mxu0 0.0
      %5093 = vmatprep.subr.mxu0 0.0
      %5094 = vmatpush1.msra.mxu0 0.0
      %5095 = vmatprep.subr.mxu0 0.0
      %5096 = vmatpush1.msra.mxu0 0.0
      %5097 = vmatprep.subr.mxu0 0.0
      %5098 = vmatpush1.msra.mxu0 0.0
      %5099 = vmatprep.subr.mxu0 0.0
      %5100 = vmatpush1.msra.mxu0 0.0
      %5101 = vmatprep.subr.mxu0 0.0
      %5102 = vmatpush1.msra.mxu0 0.0
      %5103 = vmatprep.subr.mxu0 0.0
      %5104 = vmatpush1.msra.mxu0 0.0
      %5105 = vmatprep.subr.mxu0 0.0
      %5106 = vmatpush1.msra.mxu0 0.0
      %5107 = vmatprep.subr.mxu0 0.0
      %5108 = vmatpush1.msra.mxu0 0.0
      %5109 = vmatprep.subr.mxu0 0.0
      %5110 = vmatpush1.msra.mxu0 0.0
      %5111 = vmatprep.subr.mxu0 0.0
      %5112 = vmatpush1.msra.mxu0 0.0
      %5113 = vmatprep.subr.mxu0 0.0
      %5114 = vmatpush1.msra.mxu0 0.0
      %5115 = vmatprep.subr.mxu0 0.0
      %5116 = vmatpush1.msra.mxu0 0.0
      %5117 = vmatprep.subr.mxu0 0.0
      %5118 = vmatpush1.msra.mxu0 0.0
      %5119 = vmatprep.subr.mxu0 0.0
      %5120 = vmatpush1.msra.mxu0 0.0
      %5121 = vmatprep.subr.mxu0 0.0
      %5122 = vmatpush1.msra.mxu0 0.0
      %5123 = vmatprep.subr.mxu0 0.0
      %5124 = vmatpush1.msra.mxu0 0.0
      %5125 = vmatprep.subr.mxu0 0.0
      %5126 = vmatpush1.msra.mxu0 0.0
      %5127 = vmatprep.subr.mxu0 0.0
      %5128 = vmatpush1.msra.mxu0 0.0
      %5129 = vmatprep.subr.mxu0 0.0
      %5130 = vmatpush1.msra.mxu0 0.0
      %5131 = vmatprep.subr.mxu0 0.0
      %5132 = vmatpush1.msra.mxu0 0.0
      %5133 = vmatprep.subr.mxu0 0.0
      %5134 = vmatpush1.msra.mxu0 0.0
      %5135 = vmatprep.subr.mxu0 0.0
      %5136 = vmatpush1.msra.mxu0 0.0
      %5137 = vmatprep.subr.mxu0 0.0
      %5138 = vmatpush1.msra.mxu0 0.0
      %5139 = vmatprep.subr.mxu0 0.0
      %5140 = vmatpush1.msra.mxu0 0.0
      %5141 = vmatprep.mubr.f32.mxu0 0.0
      %5142 = vmatmul.mubr.f32.gmra.mrb[0].mxu0 %v5006
      %v5143 = vpop.f32.mrb[0].mxu0
      %v5144 = vadd.f32 0.0, %v5143
      %v5145 = vpop.f32.mrb[0].mxu0
      %5146 = vmatprep.mubr.f32.mxu0 0.0
      %5147 = vmatmul.mubr.f32.gmra.mrb[0].mxu0 %v5009
      %v5148 = vpop.f32.mrb[0].mxu0
      %v5149 = vadd.f32 0.0, %v5148
      %v5150 = vpop.f32.mrb[0].mxu0
      %5151 = vmatprep.mubr.f32.mxu0 0.0
      %5152 = vmatmul.mubr.f32.gmra.mrb[0].mxu0 %v5012
      %v5153 = vpop.f32.mrb[0].mxu0
      %v5154 = vadd.f32 0.0, %v5153
      %v5155 = vpop.f32.mrb[0].mxu0
      %5156 = vmatprep.mubr.f32.mxu0 0.0
      %5157 = vmatmul.mubr.f32.gmra.mrb[0].mxu0 %v5015
      %v5158 = vpop.f32.mrb[0].mxu0
      %v5159 = vadd.f32 0.0, %v5158
      %v5160 = vpop.f32.mrb[0].mxu0
      %5161 = vmatprep.mubr.f32.mxu0 0.0
      %5162 = vmatmul.mubr.f32.gmra.mrb[0].mxu0 %v5018
      %v5163 = vpop.f32.mrb[0].mxu0
      %v5164 = vadd.f32 0.0, %v5163
      %v5165 = vpop.f32.mrb[0].mxu0
      %5166 = vmatprep.mubr.f32.mxu0 0.0
      %5167 = vmatmul.mubr.f32.gmra.mrb[0].mxu0 %v5021
      %v5168 = vpop.f32.mrb[0].mxu0
      %v5169 = vadd.f32 0.0, %v5168
      %v5170 = vpop.f32.mrb[0].mxu0
      %5171 = vmatprep.mubr.f32.mxu0 0.0
      %5172 = vmatmul.mubr.f32.gmra.mrb[0].mxu0 %v5024
      %v5173 = vpop.f32.mrb[0].mxu0
      %v5174 = vadd.f32 0.0, %v5173
      %v5175 = vpop.f32.mrb[0].mxu0
      %5176 = vmatprep.mubr.f32.mxu0 0.0
      %5177 = vmatmul.mubr.f32.gmra.mrb[0].mxu0 %v5027
      %v5178 = vpop.f32.mrb[0].mxu0
      %v5179 = vadd.f32 0.0, %v5178
      %v5180 = vpop.f32.mrb[0].mxu0
      %5181 = vmatprep.mubr.f32.mxu0 0.0
      %5182 = vmatmul.mubr.f32.gmra.mrb[0].mxu0 %v5030
      %v5183 = vpop.f32.mrb[0].mxu0
      %v5184 = vadd.f32 0.0, %v5183
      %v5185 = vpop.f32.mrb[0].mxu0
      %5186 = vmatprep.mubr.f32.mxu0 0.0
      %5187 = vmatmul.mubr.f32.gmra.mrb[0].mxu0 %v5033
      %v5188 = vpop.f32.mrb[0].mxu0
      %v5189 = vadd.f32 0.0, %v5188
      %v5190 = vpop.f32.mrb[0].mxu0
      %5191 = vmatprep.mubr.f32.mxu0 0.0
      %5192 = vmatmul.mubr.f32.gmra.mrb[0].mxu0 %v5036
      %v5193 = vpop.f32.mrb[0].mxu0
      %v5194 = vadd.f32 0.0, %v5193
      %v5195 = vpop.f32.mrb[0].mxu0
      %5196 = vmatprep.mubr.f32.mxu0 0.0
      %5197 = vmatmul.mubr.f32.gmra.mrb[0].mxu0 %v5039
      %v5198 = vpop.f32.mrb[0].mxu0
      %v5199 = vadd.f32 0.0, %v5198
      %v5200 = vpop.f32.mrb[0].mxu0
      %5201 = vmatprep.mubr.f32.mxu0 0.0
      %5202 = vmatmul.mubr.f32.gmra.mrb[0].mxu0 %v5042
      %v5203 = vpop.f32.mrb[0].mxu0
      %v5204 = vadd.f32 0.0, %v5203
      %v5205 = vpop.f32.mrb[0].mxu0
      %5206 = vmatprep.mubr.f32.mxu0 0.0
      %5207 = vmatmul.mubr.f32.gmra.mrb[0].mxu0 %v5045
      %v5208 = vpop.f32.mrb[0].mxu0
      %v5209 = vadd.f32 0.0, %v5208
      %v5210 = vpop.f32.mrb[0].mxu0
      %5211 = vmatprep.mubr.f32.mxu0 0.0
      %5212 = vmatmul.mubr.f32.gmra.mrb[0].mxu0 %v5048
      %v5213 = vpop.f32.mrb[0].mxu0
      %v5214 = vadd.f32 0.0, %v5213
      %v5215 = vpop.f32.mrb[0].mxu0
      %5216 = vmatprep.mubr.f32.mxu0 0.0
      %5217 = vmatmul.mubr.f32.gmra.mrb[0].mxu0 %v5051
      %v5218 = vpop.f32.mrb[0].mxu0
      %v5219 = vadd.f32 0.0, %v5218
      %v5220 = vpop.f32.mrb[0].mxu0
      %5221 = vmatprep.mubr.f32.mxu0 0.0
      %5222 = vmatmul.mubr.f32.gmra.mrb[0].mxu0 %v5054
      %v5223 = vpop.f32.mrb[0].mxu0
      %v5224 = vadd.f32 0.0, %v5223
      %v5225 = vpop.f32.mrb[0].mxu0
      %5226 = vmatprep.mubr.f32.mxu0 0.0
      %5227 = vmatmul.mubr.f32.gmra.mrb[0].mxu0 %v5057
      %v5228 = vpop.f32.mrb[0].mxu0
      %v5229 = vadd.f32 0.0, %v5228
      %v5230 = vpop.f32.mrb[0].mxu0
      %5231 = vmatprep.mubr.f32.mxu0 0.0
      %5232 = vmatmul.mubr.f32.gmra.mrb[0].mxu0 %v5060
      %v5233 = vpop.f32.mrb[0].mxu0
      %v5234 = vadd.f32 0.0, %v5233
      %v5235 = vpop.f32.mrb[0].mxu0
      %5236 = vmatprep.mubr.f32.mxu0 0.0
      %5237 = vmatmul.mubr.f32.gmra.mrb[0].mxu0 %v5063
      %v5238 = vpop.f32.mrb[0].mxu0
      %v5239 = vadd.f32 0.0, %v5238
      %v5240 = vpop.f32.mrb[0].mxu0
      %5241 = vmatprep.mubr.f32.mxu0 0.0
      %5242 = vmatmul.mubr.f32.gmra.mrb[0].mxu0 %v5066
      %v5243 = vpop.f32.mrb[0].mxu0
      %v5244 = vadd.f32 0.0, %v5243
      %v5245 = vpop.f32.mrb[0].mxu0
      %5246 = vmatprep.mubr.f32.mxu0 0.0
      %5247 = vmatmul.mubr.f32.gmra.mrb[0].mxu0 %v5069
      %v5248 = vpop.f32.mrb[0].mxu0
      %v5249 = vadd.f32 0.0, %v5248
      %v5250 = vpop.f32.mrb[0].mxu0
      %5251 = vmatprep.mubr.f32.mxu0 0.0
      %5252 = vmatmul.mubr.f32.gmra.mrb[0].mxu0 %v5072
      %v5253 = vpop.f32.mrb[0].mxu0
      %v5254 = vadd.f32 0.0, %v5253
      %v5255 = vpop.f32.mrb[0].mxu0
      %5256 = vmatprep.mubr.f32.mxu0 0.0
      %5257 = vmatmul.mubr.f32.gmra.mrb[0].mxu0 %v5075
      %v5258 = vpop.f32.mrb[0].mxu0
      %v5259 = vadd.f32 0.0, %v5258
      %v5260 = vpop.f32.mrb[0].mxu0
      %5261 = vdwg.mxu0
      %v5262 = vadd.f32 %v4956, %v5144
      %v5263 = vadd.f32 %v4957, %v5149
      %v5264 = vadd.f32 %v4958, %v5154
      %v5265 = vadd.f32 %v4959, %v5159
      %v5266 = vadd.f32 %v4960, %v5164
      %v5267 = vadd.f32 %v4961, %v5169
      %v5268 = vadd.f32 %v4962, %v5174
      %v5269 = vadd.f32 %v4963, %v5179
      %v5270 = vadd.f32 %v4964, %v5184
      %v5271 = vadd.f32 %v4965, %v5189
      %v5272 = vadd.f32 %v4966, %v5194
      %v5273 = vadd.f32 %v4967, %v5199
      %v5274 = vadd.f32 %v4968, %v5204
      %v5275 = vadd.f32 %v4969, %v5209
      %v5276 = vadd.f32 %v4970, %v5214
      %v5277 = vadd.f32 %v4971, %v5219
      %v5278 = vadd.f32 %v4972, %v5224
      %v5279 = vadd.f32 %v4973, %v5229
      %v5280 = vadd.f32 %v4974, %v5234
      %v5281 = vadd.f32 %v4975, %v5239
      %v5282 = vadd.f32 %v4976, %v5244
      %v5283 = vadd.f32 %v4977, %v5249
      %v5284 = vadd.f32 %v4978, %v5254
      %v5285 = vadd.f32 %v4979, %v5259
      %v5286 = vld [vmem:[#allocation2 + $0x20] sm:$0xff]
      %v5287 = vld [vmem:[#allocation2 + $0x28] sm:$0xff]
      %v5288 = vld [vmem:[#allocation2 + $0x30] sm:$0xff]
      %v5289 = vld [vmem:[#allocation2 + $0x38] sm:$0xff]
      %v5290 = vld [vmem:[#allocation2 + $0x40] sm:$0xff]
      %v5291 = vld [vmem:[#allocation2 + $0x48] sm:$0xff]
      %v5292 = vld [vmem:[#allocation2 + $0x50] sm:$0xff]
      %v5293 = vld [vmem:[#allocation2 + $0x58] sm:$0xff]
      %v5294 = vld [vmem:[#allocation2 + $0x60] sm:$0xff]
      %v5295 = vld [vmem:[#allocation2 + $0x68] sm:$0xff]
      %v5296 = vld [vmem:[#allocation2 + $0x70] sm:$0xff]
      %v5297 = vld [vmem:[#allocation2 + $0x78] sm:$0xff]
      %v5298 = vld [vmem:[#allocation2 + $0x80] sm:$0xff]
      %v5299 = vld [vmem:[#allocation2 + $0x88] sm:$0xff]
      %v5300 = vld [vmem:[#allocation2 + $0x90] sm:$0xff]
      %v5301 = vld [vmem:[#allocation2 + $0x98] sm:$0xff]
      %v5302 = vld [vmem:[#allocation2 + $0xa0] sm:$0xff]
      %v5303 = vld [vmem:[#allocation2 + $0xa8] sm:$0xff]
      %v5304 = vld [vmem:[#allocation2 + $0xb0] sm:$0xff]
      %v5305 = vld [vmem:[#allocation2 + $0xb8] sm:$0xff]
      %v5306 = vld [vmem:[#allocation2 + $0xc0] sm:$0xff]
      %v5307 = vld [vmem:[#allocation2 + $0xc8] sm:$0xff]
      %v5308 = vld [vmem:[#allocation2 + $0xd0] sm:$0xff]
      %v5309 = vld [vmem:[#allocation2 + $0xd8] sm:$0xff]
      %v5310 = vld [vmem:[%s3 + $0x30] sm:$0xff]
      %v5312 = vsel %vm3467, %v5286, 0
      %v5315 = vsel %vm3467, %v5287, 0
      %v5318 = vsel %vm3467, %v5288, 0
      %v5321 = vsel %vm3467, %v5289, 0
      %v5324 = vsel %vm3467, %v5290, 0
      %v5327 = vsel %vm3467, %v5291, 0
      %v5330 = vsel %vm3467, %v5292, 0
      %v5333 = vsel %vm3467, %v5293, 0
      %v5336 = vsel %vm3467, %v5294, 0
      %v5339 = vsel %vm3467, %v5295, 0
      %v5342 = vsel %vm3467, %v5296, 0
      %v5345 = vsel %vm3467, %v5297, 0
      %v5348 = vsel %vm3467, %v5298, 0
      %v5351 = vsel %vm3467, %v5299, 0
      %v5354 = vsel %vm3467, %v5300, 0
      %v5357 = vsel %vm3467, %v5301, 0
      %v5360 = vsel %vm3467, %v5302, 0
      %v5363 = vsel %vm3467, %v5303, 0
      %v5366 = vsel %vm3467, %v5304, 0
      %v5369 = vsel %vm3467, %v5305, 0
      %v5372 = vsel %vm3467, %v5306, 0
      %v5375 = vsel %vm3467, %v5307, 0
      %v5378 = vsel %vm3467, %v5308, 0
      %v5381 = vsel %vm3467, %v5309, 0
      %5383 = vmatprep.subr.mxu0 0.0
      %5384 = vmatpush1.msra.mxu0 %v5310
      %5385 = vmatprep.subr.mxu0 0.0
      %5386 = vmatpush1.msra.mxu0 0.0
      %5387 = vmatprep.subr.mxu0 0.0
      %5388 = vmatpush1.msra.mxu0 0.0
      %5389 = vmatprep.subr.mxu0 0.0
      %5390 = vmatpush1.msra.mxu0 0.0
      %5391 = vmatprep.subr.mxu0 0.0
      %5392 = vmatpush1.msra.mxu0 0.0
      %5393 = vmatprep.subr.mxu0 0.0
      %5394 = vmatpush1.msra.mxu0 0.0
      %5395 = vmatprep.subr.mxu0 0.0
      %5396 = vmatpush1.msra.mxu0 0.0
      %5397 = vmatprep.subr.mxu0 0.0
      %5398 = vmatpush1.msra.mxu0 0.0
      %5399 = vmatprep.subr.mxu0 0.0
      %5400 = vmatpush1.msra.mxu0 0.0
      %5401 = vmatprep.subr.mxu0 0.0
      %5402 = vmatpush1.msra.mxu0 0.0
      %5403 = vmatprep.subr.mxu0 0.0
      %5404 = vmatpush1.msra.mxu0 0.0
      %5405 = vmatprep.subr.mxu0 0.0
      %5406 = vmatpush1.msra.mxu0 0.0
      %5407 = vmatprep.subr.mxu0 0.0
      %5408 = vmatpush1.msra.mxu0 0.0
      %5409 = vmatprep.subr.mxu0 0.0
      %5410 = vmatpush1.msra.mxu0 0.0
      %5411 = vmatprep.subr.mxu0 0.0
      %5412 = vmatpush1.msra.mxu0 0.0
      %5413 = vmatprep.subr.mxu0 0.0
      %5414 = vmatpush1.msra.mxu0 0.0
      %5415 = vmatprep.subr.mxu0 0.0
      %5416 = vmatpush1.msra.mxu0 0.0
      %5417 = vmatprep.subr.mxu0 0.0
      %5418 = vmatpush1.msra.mxu0 0.0
      %5419 = vmatprep.subr.mxu0 0.0
      %5420 = vmatpush1.msra.mxu0 0.0
      %5421 = vmatprep.subr.mxu0 0.0
      %5422 = vmatpush1.msra.mxu0 0.0
      %5423 = vmatprep.subr.mxu0 0.0
      %5424 = vmatpush1.msra.mxu0 0.0
      %5425 = vmatprep.subr.mxu0 0.0
      %5426 = vmatpush1.msra.mxu0 0.0
      %5427 = vmatprep.subr.mxu0 0.0
      %5428 = vmatpush1.msra.mxu0 0.0
      %5429 = vmatprep.subr.mxu0 0.0
      %5430 = vmatpush1.msra.mxu0 0.0
      %5431 = vmatprep.subr.mxu0 0.0
      %5432 = vmatpush1.msra.mxu0 0.0
      %5433 = vmatprep.subr.mxu0 0.0
      %5434 = vmatpush1.msra.mxu0 0.0
      %5435 = vmatprep.subr.mxu0 0.0
      %5436 = vmatpush1.msra.mxu0 0.0
      %5437 = vmatprep.subr.mxu0 0.0
      %5438 = vmatpush1.msra.mxu0 0.0
      %5439 = vmatprep.subr.mxu0 0.0
      %5440 = vmatpush1.msra.mxu0 0.0
      %5441 = vmatprep.subr.mxu0 0.0
      %5442 = vmatpush1.msra.mxu0 0.0
      %5443 = vmatprep.subr.mxu0 0.0
      %5444 = vmatpush1.msra.mxu0 0.0
      %5445 = vmatprep.subr.mxu0 0.0
      %5446 = vmatpush1.msra.mxu0 0.0
      %5447 = vmatprep.mubr.f32.mxu0 0.0
      %5448 = vmatmul.mubr.f32.gmra.mrb[0].mxu0 %v5312
      %v5449 = vpop.f32.mrb[0].mxu0
      %v5450 = vadd.f32 0.0, %v5449
      %v5451 = vpop.f32.mrb[0].mxu0
      %5452 = vmatprep.mubr.f32.mxu0 0.0
      %5453 = vmatmul.mubr.f32.gmra.mrb[0].mxu0 %v5315
      %v5454 = vpop.f32.mrb[0].mxu0
      %v5455 = vadd.f32 0.0, %v5454
      %v5456 = vpop.f32.mrb[0].mxu0
      %5457 = vmatprep.mubr.f32.mxu0 0.0
      %5458 = vmatmul.mubr.f32.gmra.mrb[0].mxu0 %v5318
      %v5459 = vpop.f32.mrb[0].mxu0
      %v5460 = vadd.f32 0.0, %v5459
      %v5461 = vpop.f32.mrb[0].mxu0
      %5462 = vmatprep.mubr.f32.mxu0 0.0
      %5463 = vmatmul.mubr.f32.gmra.mrb[0].mxu0 %v5321
      %v5464 = vpop.f32.mrb[0].mxu0
      %v5465 = vadd.f32 0.0, %v5464
      %v5466 = vpop.f32.mrb[0].mxu0
      %5467 = vmatprep.mubr.f32.mxu0 0.0
      %5468 = vmatmul.mubr.f32.gmra.mrb[0].mxu0 %v5324
      %v5469 = vpop.f32.mrb[0].mxu0
      %v5470 = vadd.f32 0.0, %v5469
      %v5471 = vpop.f32.mrb[0].mxu0
      %5472 = vmatprep.mubr.f32.mxu0 0.0
      %5473 = vmatmul.mubr.f32.gmra.mrb[0].mxu0 %v5327
      %v5474 = vpop.f32.mrb[0].mxu0
      %v5475 = vadd.f32 0.0, %v5474
      %v5476 = vpop.f32.mrb[0].mxu0
      %5477 = vmatprep.mubr.f32.mxu0 0.0
      %5478 = vmatmul.mubr.f32.gmra.mrb[0].mxu0 %v5330
      %v5479 = vpop.f32.mrb[0].mxu0
      %v5480 = vadd.f32 0.0, %v5479
      %v5481 = vpop.f32.mrb[0].mxu0
      %5482 = vmatprep.mubr.f32.mxu0 0.0
      %5483 = vmatmul.mubr.f32.gmra.mrb[0].mxu0 %v5333
      %v5484 = vpop.f32.mrb[0].mxu0
      %v5485 = vadd.f32 0.0, %v5484
      %v5486 = vpop.f32.mrb[0].mxu0
      %5487 = vmatprep.mubr.f32.mxu0 0.0
      %5488 = vmatmul.mubr.f32.gmra.mrb[0].mxu0 %v5336
      %v5489 = vpop.f32.mrb[0].mxu0
      %v5490 = vadd.f32 0.0, %v5489
      %v5491 = vpop.f32.mrb[0].mxu0
      %5492 = vmatprep.mubr.f32.mxu0 0.0
      %5493 = vmatmul.mubr.f32.gmra.mrb[0].mxu0 %v5339
      %v5494 = vpop.f32.mrb[0].mxu0
      %v5495 = vadd.f32 0.0, %v5494
      %v5496 = vpop.f32.mrb[0].mxu0
      %5497 = vmatprep.mubr.f32.mxu0 0.0
      %5498 = vmatmul.mubr.f32.gmra.mrb[0].mxu0 %v5342
      %v5499 = vpop.f32.mrb[0].mxu0
      %v5500 = vadd.f32 0.0, %v5499
      %v5501 = vpop.f32.mrb[0].mxu0
      %5502 = vmatprep.mubr.f32.mxu0 0.0
      %5503 = vmatmul.mubr.f32.gmra.mrb[0].mxu0 %v5345
      %v5504 = vpop.f32.mrb[0].mxu0
      %v5505 = vadd.f32 0.0, %v5504
      %v5506 = vpop.f32.mrb[0].mxu0
      %5507 = vmatprep.mubr.f32.mxu0 0.0
      %5508 = vmatmul.mubr.f32.gmra.mrb[0].mxu0 %v5348
      %v5509 = vpop.f32.mrb[0].mxu0
      %v5510 = vadd.f32 0.0, %v5509
      %v5511 = vpop.f32.mrb[0].mxu0
      %5512 = vmatprep.mubr.f32.mxu0 0.0
      %5513 = vmatmul.mubr.f32.gmra.mrb[0].mxu0 %v5351
      %v5514 = vpop.f32.mrb[0].mxu0
      %v5515 = vadd.f32 0.0, %v5514
      %v5516 = vpop.f32.mrb[0].mxu0
      %5517 = vmatprep.mubr.f32.mxu0 0.0
      %5518 = vmatmul.mubr.f32.gmra.mrb[0].mxu0 %v5354
      %v5519 = vpop.f32.mrb[0].mxu0
      %v5520 = vadd.f32 0.0, %v5519
      %v5521 = vpop.f32.mrb[0].mxu0
      %5522 = vmatprep.mubr.f32.mxu0 0.0
      %5523 = vmatmul.mubr.f32.gmra.mrb[0].mxu0 %v5357
      %v5524 = vpop.f32.mrb[0].mxu0
      %v5525 = vadd.f32 0.0, %v5524
      %v5526 = vpop.f32.mrb[0].mxu0
      %5527 = vmatprep.mubr.f32.mxu0 0.0
      %5528 = vmatmul.mubr.f32.gmra.mrb[0].mxu0 %v5360
      %v5529 = vpop.f32.mrb[0].mxu0
      %v5530 = vadd.f32 0.0, %v5529
      %v5531 = vpop.f32.mrb[0].mxu0
      %5532 = vmatprep.mubr.f32.mxu0 0.0
      %5533 = vmatmul.mubr.f32.gmra.mrb[0].mxu0 %v5363
      %v5534 = vpop.f32.mrb[0].mxu0
      %v5535 = vadd.f32 0.0, %v5534
      %v5536 = vpop.f32.mrb[0].mxu0
      %5537 = vmatprep.mubr.f32.mxu0 0.0
      %5538 = vmatmul.mubr.f32.gmra.mrb[0].mxu0 %v5366
      %v5539 = vpop.f32.mrb[0].mxu0
      %v5540 = vadd.f32 0.0, %v5539
      %v5541 = vpop.f32.mrb[0].mxu0
      %5542 = vmatprep.mubr.f32.mxu0 0.0
      %5543 = vmatmul.mubr.f32.gmra.mrb[0].mxu0 %v5369
      %v5544 = vpop.f32.mrb[0].mxu0
      %v5545 = vadd.f32 0.0, %v5544
      %v5546 = vpop.f32.mrb[0].mxu0
      %5547 = vmatprep.mubr.f32.mxu0 0.0
      %5548 = vmatmul.mubr.f32.gmra.mrb[0].mxu0 %v5372
      %v5549 = vpop.f32.mrb[0].mxu0
      %v5550 = vadd.f32 0.0, %v5549
      %v5551 = vpop.f32.mrb[0].mxu0
      %5552 = vmatprep.mubr.f32.mxu0 0.0
      %5553 = vmatmul.mubr.f32.gmra.mrb[0].mxu0 %v5375
      %v5554 = vpop.f32.mrb[0].mxu0
      %v5555 = vadd.f32 0.0, %v5554
      %v5556 = vpop.f32.mrb[0].mxu0
      %5557 = vmatprep.mubr.f32.mxu0 0.0
      %5558 = vmatmul.mubr.f32.gmra.mrb[0].mxu0 %v5378
      %v5559 = vpop.f32.mrb[0].mxu0
      %v5560 = vadd.f32 0.0, %v5559
      %v5561 = vpop.f32.mrb[0].mxu0
      %5562 = vmatprep.mubr.f32.mxu0 0.0
      %5563 = vmatmul.mubr.f32.gmra.mrb[0].mxu0 %v5381
      %v5564 = vpop.f32.mrb[0].mxu0
      %v5565 = vadd.f32 0.0, %v5564
      %v5566 = vpop.f32.mrb[0].mxu0
      %5567 = vdwg.mxu0
      %v5568 = vadd.f32 %v5262, %v5450
      %v5569 = vadd.f32 %v5263, %v5455
      %v5570 = vadd.f32 %v5264, %v5460
      %v5571 = vadd.f32 %v5265, %v5465
      %v5572 = vadd.f32 %v5266, %v5470
      %v5573 = vadd.f32 %v5267, %v5475
      %v5574 = vadd.f32 %v5268, %v5480
      %v5575 = vadd.f32 %v5269, %v5485
      %v5576 = vadd.f32 %v5270, %v5490
      %v5577 = vadd.f32 %v5271, %v5495
      %v5578 = vadd.f32 %v5272, %v5500
      %v5579 = vadd.f32 %v5273, %v5505
      %v5580 = vadd.f32 %v5274, %v5510
      %v5581 = vadd.f32 %v5275, %v5515
      %v5582 = vadd.f32 %v5276, %v5520
      %v5583 = vadd.f32 %v5277, %v5525
      %v5584 = vadd.f32 %v5278, %v5530
      %v5585 = vadd.f32 %v5279, %v5535
      %v5586 = vadd.f32 %v5280, %v5540
      %v5587 = vadd.f32 %v5281, %v5545
      %v5588 = vadd.f32 %v5282, %v5550
      %v5589 = vadd.f32 %v5283, %v5555
      %v5590 = vadd.f32 %v5284, %v5560
      %v5591 = vadd.f32 %v5285, %v5565
      %v5592 = vld [vmem:[#allocation2 + $0x21] sm:$0xff]
      %v5593 = vld [vmem:[#allocation2 + $0x29] sm:$0xff]
      %v5594 = vld [vmem:[#allocation2 + $0x31] sm:$0xff]
      %v5595 = vld [vmem:[#allocation2 + $0x39] sm:$0xff]
      %v5596 = vld [vmem:[#allocation2 + $0x41] sm:$0xff]
      %v5597 = vld [vmem:[#allocation2 + $0x49] sm:$0xff]
      %v5598 = vld [vmem:[#allocation2 + $0x51] sm:$0xff]
      %v5599 = vld [vmem:[#allocation2 + $0x59] sm:$0xff]
      %v5600 = vld [vmem:[#allocation2 + $0x61] sm:$0xff]
      %v5601 = vld [vmem:[#allocation2 + $0x69] sm:$0xff]
      %v5602 = vld [vmem:[#allocation2 + $0x71] sm:$0xff]
      %v5603 = vld [vmem:[#allocation2 + $0x79] sm:$0xff]
      %v5604 = vld [vmem:[#allocation2 + $0x81] sm:$0xff]
      %v5605 = vld [vmem:[#allocation2 + $0x89] sm:$0xff]
      %v5606 = vld [vmem:[#allocation2 + $0x91] sm:$0xff]
      %v5607 = vld [vmem:[#allocation2 + $0x99] sm:$0xff]
      %v5608 = vld [vmem:[#allocation2 + $0xa1] sm:$0xff]
      %v5609 = vld [vmem:[#allocation2 + $0xa9] sm:$0xff]
      %v5610 = vld [vmem:[#allocation2 + $0xb1] sm:$0xff]
      %v5611 = vld [vmem:[#allocation2 + $0xb9] sm:$0xff]
      %v5612 = vld [vmem:[#allocation2 + $0xc1] sm:$0xff]
      %v5613 = vld [vmem:[#allocation2 + $0xc9] sm:$0xff]
      %v5614 = vld [vmem:[#allocation2 + $0xd1] sm:$0xff]
      %v5615 = vld [vmem:[#allocation2 + $0xd9] sm:$0xff]
      %v5616 = vld [vmem:[%s3 + $0x38] sm:$0xff]
      %v5618 = vsel %vm3467, %v5592, 0
      %v5621 = vsel %vm3467, %v5593, 0
      %v5624 = vsel %vm3467, %v5594, 0
      %v5627 = vsel %vm3467, %v5595, 0
      %v5630 = vsel %vm3467, %v5596, 0
      %v5633 = vsel %vm3467, %v5597, 0
      %v5636 = vsel %vm3467, %v5598, 0
      %v5639 = vsel %vm3467, %v5599, 0
      %v5642 = vsel %vm3467, %v5600, 0
      %v5645 = vsel %vm3467, %v5601, 0
      %v5648 = vsel %vm3467, %v5602, 0
      %v5651 = vsel %vm3467, %v5603, 0
      %v5654 = vsel %vm3467, %v5604, 0
      %v5657 = vsel %vm3467, %v5605, 0
      %v5660 = vsel %vm3467, %v5606, 0
      %v5663 = vsel %vm3467, %v5607, 0
      %v5666 = vsel %vm3467, %v5608, 0
      %v5669 = vsel %vm3467, %v5609, 0
      %v5672 = vsel %vm3467, %v5610, 0
      %v5675 = vsel %vm3467, %v5611, 0
      %v5678 = vsel %vm3467, %v5612, 0
      %v5681 = vsel %vm3467, %v5613, 0
      %v5684 = vsel %vm3467, %v5614, 0
      %v5687 = vsel %vm3467, %v5615, 0
      %5689 = vmatprep.subr.mxu0 0.0
      %5690 = vmatpush1.msra.mxu0 %v5616
      %5691 = vmatprep.subr.mxu0 0.0
      %5692 = vmatpush1.msra.mxu0 0.0
      %5693 = vmatprep.subr.mxu0 0.0
      %5694 = vmatpush1.msra.mxu0 0.0
      %5695 = vmatprep.subr.mxu0 0.0
      %5696 = vmatpush1.msra.mxu0 0.0
      %5697 = vmatprep.subr.mxu0 0.0
      %5698 = vmatpush1.msra.mxu0 0.0
      %5699 = vmatprep.subr.mxu0 0.0
      %5700 = vmatpush1.msra.mxu0 0.0
      %5701 = vmatprep.subr.mxu0 0.0
      %5702 = vmatpush1.msra.mxu0 0.0
      %5703 = vmatprep.subr.mxu0 0.0
      %5704 = vmatpush1.msra.mxu0 0.0
      %5705 = vmatprep.subr.mxu0 0.0
      %5706 = vmatpush1.msra.mxu0 0.0
      %5707 = vmatprep.subr.mxu0 0.0
      %5708 = vmatpush1.msra.mxu0 0.0
      %5709 = vmatprep.subr.mxu0 0.0
      %5710 = vmatpush1.msra.mxu0 0.0
      %5711 = vmatprep.subr.mxu0 0.0
      %5712 = vmatpush1.msra.mxu0 0.0
      %5713 = vmatprep.subr.mxu0 0.0
      %5714 = vmatpush1.msra.mxu0 0.0
      %5715 = vmatprep.subr.mxu0 0.0
      %5716 = vmatpush1.msra.mxu0 0.0
      %5717 = vmatprep.subr.mxu0 0.0
      %5718 = vmatpush1.msra.mxu0 0.0
      %5719 = vmatprep.subr.mxu0 0.0
      %5720 = vmatpush1.msra.mxu0 0.0
      %5721 = vmatprep.subr.mxu0 0.0
      %5722 = vmatpush1.msra.mxu0 0.0
      %5723 = vmatprep.subr.mxu0 0.0
      %5724 = vmatpush1.msra.mxu0 0.0
      %5725 = vmatprep.subr.mxu0 0.0
      %5726 = vmatpush1.msra.mxu0 0.0
      %5727 = vmatprep.subr.mxu0 0.0
      %5728 = vmatpush1.msra.mxu0 0.0
      %5729 = vmatprep.subr.mxu0 0.0
      %5730 = vmatpush1.msra.mxu0 0.0
      %5731 = vmatprep.subr.mxu0 0.0
      %5732 = vmatpush1.msra.mxu0 0.0
      %5733 = vmatprep.subr.mxu0 0.0
      %5734 = vmatpush1.msra.mxu0 0.0
      %5735 = vmatprep.subr.mxu0 0.0
      %5736 = vmatpush1.msra.mxu0 0.0
      %5737 = vmatprep.subr.mxu0 0.0
      %5738 = vmatpush1.msra.mxu0 0.0
      %5739 = vmatprep.subr.mxu0 0.0
      %5740 = vmatpush1.msra.mxu0 0.0
      %5741 = vmatprep.subr.mxu0 0.0
      %5742 = vmatpush1.msra.mxu0 0.0
      %5743 = vmatprep.subr.mxu0 0.0
      %5744 = vmatpush1.msra.mxu0 0.0
      %5745 = vmatprep.subr.mxu0 0.0
      %5746 = vmatpush1.msra.mxu0 0.0
      %5747 = vmatprep.subr.mxu0 0.0
      %5748 = vmatpush1.msra.mxu0 0.0
      %5749 = vmatprep.subr.mxu0 0.0
      %5750 = vmatpush1.msra.mxu0 0.0
      %5751 = vmatprep.subr.mxu0 0.0
      %5752 = vmatpush1.msra.mxu0 0.0
      %5753 = vmatprep.mubr.f32.mxu0 0.0
      %5754 = vmatmul.mubr.f32.gmra.mrb[0].mxu0 %v5618
      %v5755 = vpop.f32.mrb[0].mxu0
      %v5756 = vadd.f32 0.0, %v5755
      %v5757 = vpop.f32.mrb[0].mxu0
      %5758 = vmatprep.mubr.f32.mxu0 0.0
      %5759 = vmatmul.mubr.f32.gmra.mrb[0].mxu0 %v5621
      %v5760 = vpop.f32.mrb[0].mxu0
      %v5761 = vadd.f32 0.0, %v5760
      %v5762 = vpop.f32.mrb[0].mxu0
      %5763 = vmatprep.mubr.f32.mxu0 0.0
      %5764 = vmatmul.mubr.f32.gmra.mrb[0].mxu0 %v5624
      %v5765 = vpop.f32.mrb[0].mxu0
      %v5766 = vadd.f32 0.0, %v5765
      %v5767 = vpop.f32.mrb[0].mxu0
      %5768 = vmatprep.mubr.f32.mxu0 0.0
      %5769 = vmatmul.mubr.f32.gmra.mrb[0].mxu0 %v5627
      %v5770 = vpop.f32.mrb[0].mxu0
      %v5771 = vadd.f32 0.0, %v5770
      %v5772 = vpop.f32.mrb[0].mxu0
      %5773 = vmatprep.mubr.f32.mxu0 0.0
      %5774 = vmatmul.mubr.f32.gmra.mrb[0].mxu0 %v5630
      %v5775 = vpop.f32.mrb[0].mxu0
      %v5776 = vadd.f32 0.0, %v5775
      %v5777 = vpop.f32.mrb[0].mxu0
      %5778 = vmatprep.mubr.f32.mxu0 0.0
      %5779 = vmatmul.mubr.f32.gmra.mrb[0].mxu0 %v5633
      %v5780 = vpop.f32.mrb[0].mxu0
      %v5781 = vadd.f32 0.0, %v5780
      %v5782 = vpop.f32.mrb[0].mxu0
      %5783 = vmatprep.mubr.f32.mxu0 0.0
      %5784 = vmatmul.mubr.f32.gmra.mrb[0].mxu0 %v5636
      %v5785 = vpop.f32.mrb[0].mxu0
      %v5786 = vadd.f32 0.0, %v5785
      %v5787 = vpop.f32.mrb[0].mxu0
      %5788 = vmatprep.mubr.f32.mxu0 0.0
      %5789 = vmatmul.mubr.f32.gmra.mrb[0].mxu0 %v5639
      %v5790 = vpop.f32.mrb[0].mxu0
      %v5791 = vadd.f32 0.0, %v5790
      %v5792 = vpop.f32.mrb[0].mxu0
      %5793 = vmatprep.mubr.f32.mxu0 0.0
      %5794 = vmatmul.mubr.f32.gmra.mrb[0].mxu0 %v5642
      %v5795 = vpop.f32.mrb[0].mxu0
      %v5796 = vadd.f32 0.0, %v5795
      %v5797 = vpop.f32.mrb[0].mxu0
      %5798 = vmatprep.mubr.f32.mxu0 0.0
      %5799 = vmatmul.mubr.f32.gmra.mrb[0].mxu0 %v5645
      %v5800 = vpop.f32.mrb[0].mxu0
      %v5801 = vadd.f32 0.0, %v5800
      %v5802 = vpop.f32.mrb[0].mxu0
      %5803 = vmatprep.mubr.f32.mxu0 0.0
      %5804 = vmatmul.mubr.f32.gmra.mrb[0].mxu0 %v5648
      %v5805 = vpop.f32.mrb[0].mxu0
      %v5806 = vadd.f32 0.0, %v5805
      %v5807 = vpop.f32.mrb[0].mxu0
      %5808 = vmatprep.mubr.f32.mxu0 0.0
      %5809 = vmatmul.mubr.f32.gmra.mrb[0].mxu0 %v5651
      %v5810 = vpop.f32.mrb[0].mxu0
      %v5811 = vadd.f32 0.0, %v5810
      %v5812 = vpop.f32.mrb[0].mxu0
      %5813 = vmatprep.mubr.f32.mxu0 0.0
      %5814 = vmatmul.mubr.f32.gmra.mrb[0].mxu0 %v5654
      %v5815 = vpop.f32.mrb[0].mxu0
      %v5816 = vadd.f32 0.0, %v5815
      %v5817 = vpop.f32.mrb[0].mxu0
      %5818 = vmatprep.mubr.f32.mxu0 0.0
      %5819 = vmatmul.mubr.f32.gmra.mrb[0].mxu0 %v5657
      %v5820 = vpop.f32.mrb[0].mxu0
      %v5821 = vadd.f32 0.0, %v5820
      %v5822 = vpop.f32.mrb[0].mxu0
      %5823 = vmatprep.mubr.f32.mxu0 0.0
      %5824 = vmatmul.mubr.f32.gmra.mrb[0].mxu0 %v5660
      %v5825 = vpop.f32.mrb[0].mxu0
      %v5826 = vadd.f32 0.0, %v5825
      %v5827 = vpop.f32.mrb[0].mxu0
      %5828 = vmatprep.mubr.f32.mxu0 0.0
      %5829 = vmatmul.mubr.f32.gmra.mrb[0].mxu0 %v5663
      %v5830 = vpop.f32.mrb[0].mxu0
      %v5831 = vadd.f32 0.0, %v5830
      %v5832 = vpop.f32.mrb[0].mxu0
      %5833 = vmatprep.mubr.f32.mxu0 0.0
      %5834 = vmatmul.mubr.f32.gmra.mrb[0].mxu0 %v5666
      %v5835 = vpop.f32.mrb[0].mxu0
      %v5836 = vadd.f32 0.0, %v5835
      %v5837 = vpop.f32.mrb[0].mxu0
      %5838 = vmatprep.mubr.f32.mxu0 0.0
      %5839 = vmatmul.mubr.f32.gmra.mrb[0].mxu0 %v5669
      %v5840 = vpop.f32.mrb[0].mxu0
      %v5841 = vadd.f32 0.0, %v5840
      %v5842 = vpop.f32.mrb[0].mxu0
      %5843 = vmatprep.mubr.f32.mxu0 0.0
      %5844 = vmatmul.mubr.f32.gmra.mrb[0].mxu0 %v5672
      %v5845 = vpop.f32.mrb[0].mxu0
      %v5846 = vadd.f32 0.0, %v5845
      %v5847 = vpop.f32.mrb[0].mxu0
      %5848 = vmatprep.mubr.f32.mxu0 0.0
      %5849 = vmatmul.mubr.f32.gmra.mrb[0].mxu0 %v5675
      %v5850 = vpop.f32.mrb[0].mxu0
      %v5851 = vadd.f32 0.0, %v5850
      %v5852 = vpop.f32.mrb[0].mxu0
      %5853 = vmatprep.mubr.f32.mxu0 0.0
      %5854 = vmatmul.mubr.f32.gmra.mrb[0].mxu0 %v5678
      %v5855 = vpop.f32.mrb[0].mxu0
      %v5856 = vadd.f32 0.0, %v5855
      %v5857 = vpop.f32.mrb[0].mxu0
      %5858 = vmatprep.mubr.f32.mxu0 0.0
      %5859 = vmatmul.mubr.f32.gmra.mrb[0].mxu0 %v5681
      %v5860 = vpop.f32.mrb[0].mxu0
      %v5861 = vadd.f32 0.0, %v5860
      %v5862 = vpop.f32.mrb[0].mxu0
      %5863 = vmatprep.mubr.f32.mxu0 0.0
      %5864 = vmatmul.mubr.f32.gmra.mrb[0].mxu0 %v5684
      %v5865 = vpop.f32.mrb[0].mxu0
      %v5866 = vadd.f32 0.0, %v5865
      %v5867 = vpop.f32.mrb[0].mxu0
      %5868 = vmatprep.mubr.f32.mxu0 0.0
      %5869 = vmatmul.mubr.f32.gmra.mrb[0].mxu0 %v5687
      %v5870 = vpop.f32.mrb[0].mxu0
      %v5871 = vadd.f32 0.0, %v5870
      %v5872 = vpop.f32.mrb[0].mxu0
      %5873 = vdwg.mxu0
      %v5874 = vadd.f32 %v5568, %v5756
      %v5875 = vadd.f32 %v5569, %v5761
      %v5876 = vadd.f32 %v5570, %v5766
      %v5877 = vadd.f32 %v5571, %v5771
      %v5878 = vadd.f32 %v5572, %v5776
      %v5879 = vadd.f32 %v5573, %v5781
      %v5880 = vadd.f32 %v5574, %v5786
      %v5881 = vadd.f32 %v5575, %v5791
      %v5882 = vadd.f32 %v5576, %v5796
      %v5883 = vadd.f32 %v5577, %v5801
      %v5884 = vadd.f32 %v5578, %v5806
      %v5885 = vadd.f32 %v5579, %v5811
      %v5886 = vadd.f32 %v5580, %v5816
      %v5887 = vadd.f32 %v5581, %v5821
      %v5888 = vadd.f32 %v5582, %v5826
      %v5889 = vadd.f32 %v5583, %v5831
      %v5890 = vadd.f32 %v5584, %v5836
      %v5891 = vadd.f32 %v5585, %v5841
      %v5892 = vadd.f32 %v5586, %v5846
      %v5893 = vadd.f32 %v5587, %v5851
      %v5894 = vadd.f32 %v5588, %v5856
      %v5895 = vadd.f32 %v5589, %v5861
      %v5896 = vadd.f32 %v5590, %v5866
      %v5897 = vadd.f32 %v5591, %v5871
      %v5898 = vld [vmem:[#allocation2 + $0x22] sm:$0xff]
      %v5899 = vld [vmem:[#allocation2 + $0x2a] sm:$0xff]
      %v5900 = vld [vmem:[#allocation2 + $0x32] sm:$0xff]
      %v5901 = vld [vmem:[#allocation2 + $0x3a] sm:$0xff]
      %v5902 = vld [vmem:[#allocation2 + $0x42] sm:$0xff]
      %v5903 = vld [vmem:[#allocation2 + $0x4a] sm:$0xff]
      %v5904 = vld [vmem:[#allocation2 + $0x52] sm:$0xff]
      %v5905 = vld [vmem:[#allocation2 + $0x5a] sm:$0xff]
      %v5906 = vld [vmem:[#allocation2 + $0x62] sm:$0xff]
      %v5907 = vld [vmem:[#allocation2 + $0x6a] sm:$0xff]
      %v5908 = vld [vmem:[#allocation2 + $0x72] sm:$0xff]
      %v5909 = vld [vmem:[#allocation2 + $0x7a] sm:$0xff]
      %v5910 = vld [vmem:[#allocation2 + $0x82] sm:$0xff]
      %v5911 = vld [vmem:[#allocation2 + $0x8a] sm:$0xff]
      %v5912 = vld [vmem:[#allocation2 + $0x92] sm:$0xff]
      %v5913 = vld [vmem:[#allocation2 + $0x9a] sm:$0xff]
      %v5914 = vld [vmem:[#allocation2 + $0xa2] sm:$0xff]
      %v5915 = vld [vmem:[#allocation2 + $0xaa] sm:$0xff]
      %v5916 = vld [vmem:[#allocation2 + $0xb2] sm:$0xff]
      %v5917 = vld [vmem:[#allocation2 + $0xba] sm:$0xff]
      %v5918 = vld [vmem:[#allocation2 + $0xc2] sm:$0xff]
      %v5919 = vld [vmem:[#allocation2 + $0xca] sm:$0xff]
      %v5920 = vld [vmem:[#allocation2 + $0xd2] sm:$0xff]
      %v5921 = vld [vmem:[#allocation2 + $0xda] sm:$0xff]
      %v5922 = vld [vmem:[%s3 + $0x40] sm:$0xff]
      %v5924 = vsel %vm3467, %v5898, 0
      %v5927 = vsel %vm3467, %v5899, 0
      %v5930 = vsel %vm3467, %v5900, 0
      %v5933 = vsel %vm3467, %v5901, 0
      %v5936 = vsel %vm3467, %v5902, 0
      %v5939 = vsel %vm3467, %v5903, 0
      %v5942 = vsel %vm3467, %v5904, 0
      %v5945 = vsel %vm3467, %v5905, 0
      %v5948 = vsel %vm3467, %v5906, 0
      %v5951 = vsel %vm3467, %v5907, 0
      %v5954 = vsel %vm3467, %v5908, 0
      %v5957 = vsel %vm3467, %v5909, 0
      %v5960 = vsel %vm3467, %v5910, 0
      %v5963 = vsel %vm3467, %v5911, 0
      %v5966 = vsel %vm3467, %v5912, 0
      %v5969 = vsel %vm3467, %v5913, 0
      %v5972 = vsel %vm3467, %v5914, 0
      %v5975 = vsel %vm3467, %v5915, 0
      %v5978 = vsel %vm3467, %v5916, 0
      %v5981 = vsel %vm3467, %v5917, 0
      %v5984 = vsel %vm3467, %v5918, 0
      %v5987 = vsel %vm3467, %v5919, 0
      %v5990 = vsel %vm3467, %v5920, 0
      %v5993 = vsel %vm3467, %v5921, 0
      %5995 = vmatprep.subr.mxu0 0.0
      %5996 = vmatpush1.msra.mxu0 %v5922
      %5997 = vmatprep.subr.mxu0 0.0
      %5998 = vmatpush1.msra.mxu0 0.0
      %5999 = vmatprep.subr.mxu0 0.0
      %6000 = vmatpush1.msra.mxu0 0.0
      %6001 = vmatprep.subr.mxu0 0.0
      %6002 = vmatpush1.msra.mxu0 0.0
      %6003 = vmatprep.subr.mxu0 0.0
      %6004 = vmatpush1.msra.mxu0 0.0
      %6005 = vmatprep.subr.mxu0 0.0
      %6006 = vmatpush1.msra.mxu0 0.0
      %6007 = vmatprep.subr.mxu0 0.0
      %6008 = vmatpush1.msra.mxu0 0.0
      %6009 = vmatprep.subr.mxu0 0.0
      %6010 = vmatpush1.msra.mxu0 0.0
      %6011 = vmatprep.subr.mxu0 0.0
      %6012 = vmatpush1.msra.mxu0 0.0
      %6013 = vmatprep.subr.mxu0 0.0
      %6014 = vmatpush1.msra.mxu0 0.0
      %6015 = vmatprep.subr.mxu0 0.0
      %6016 = vmatpush1.msra.mxu0 0.0
      %6017 = vmatprep.subr.mxu0 0.0
      %6018 = vmatpush1.msra.mxu0 0.0
      %6019 = vmatprep.subr.mxu0 0.0
      %6020 = vmatpush1.msra.mxu0 0.0
      %6021 = vmatprep.subr.mxu0 0.0
      %6022 = vmatpush1.msra.mxu0 0.0
      %6023 = vmatprep.subr.mxu0 0.0
      %6024 = vmatpush1.msra.mxu0 0.0
      %6025 = vmatprep.subr.mxu0 0.0
      %6026 = vmatpush1.msra.mxu0 0.0
      %6027 = vmatprep.subr.mxu0 0.0
      %6028 = vmatpush1.msra.mxu0 0.0
      %6029 = vmatprep.subr.mxu0 0.0
      %6030 = vmatpush1.msra.mxu0 0.0
      %6031 = vmatprep.subr.mxu0 0.0
      %6032 = vmatpush1.msra.mxu0 0.0
      %6033 = vmatprep.subr.mxu0 0.0
      %6034 = vmatpush1.msra.mxu0 0.0
      %6035 = vmatprep.subr.mxu0 0.0
      %6036 = vmatpush1.msra.mxu0 0.0
      %6037 = vmatprep.subr.mxu0 0.0
      %6038 = vmatpush1.msra.mxu0 0.0
      %6039 = vmatprep.subr.mxu0 0.0
      %6040 = vmatpush1.msra.mxu0 0.0
      %6041 = vmatprep.subr.mxu0 0.0
      %6042 = vmatpush1.msra.mxu0 0.0
      %6043 = vmatprep.subr.mxu0 0.0
      %6044 = vmatpush1.msra.mxu0 0.0
      %6045 = vmatprep.subr.mxu0 0.0
      %6046 = vmatpush1.msra.mxu0 0.0
      %6047 = vmatprep.subr.mxu0 0.0
      %6048 = vmatpush1.msra.mxu0 0.0
      %6049 = vmatprep.subr.mxu0 0.0
      %6050 = vmatpush1.msra.mxu0 0.0
      %6051 = vmatprep.subr.mxu0 0.0
      %6052 = vmatpush1.msra.mxu0 0.0
      %6053 = vmatprep.subr.mxu0 0.0
      %6054 = vmatpush1.msra.mxu0 0.0
      %6055 = vmatprep.subr.mxu0 0.0
      %6056 = vmatpush1.msra.mxu0 0.0
      %6057 = vmatprep.subr.mxu0 0.0
      %6058 = vmatpush1.msra.mxu0 0.0
      %6059 = vmatprep.mubr.f32.mxu0 0.0
      %6060 = vmatmul.mubr.f32.gmra.mrb[0].mxu0 %v5924
      %v6061 = vpop.f32.mrb[0].mxu0
      %v6062 = vadd.f32 0.0, %v6061
      %v6063 = vpop.f32.mrb[0].mxu0
      %6064 = vmatprep.mubr.f32.mxu0 0.0
      %6065 = vmatmul.mubr.f32.gmra.mrb[0].mxu0 %v5927
      %v6066 = vpop.f32.mrb[0].mxu0
      %v6067 = vadd.f32 0.0, %v6066
      %v6068 = vpop.f32.mrb[0].mxu0
      %6069 = vmatprep.mubr.f32.mxu0 0.0
      %6070 = vmatmul.mubr.f32.gmra.mrb[0].mxu0 %v5930
      %v6071 = vpop.f32.mrb[0].mxu0
      %v6072 = vadd.f32 0.0, %v6071
      %v6073 = vpop.f32.mrb[0].mxu0
      %6074 = vmatprep.mubr.f32.mxu0 0.0
      %6075 = vmatmul.mubr.f32.gmra.mrb[0].mxu0 %v5933
      %v6076 = vpop.f32.mrb[0].mxu0
      %v6077 = vadd.f32 0.0, %v6076
      %v6078 = vpop.f32.mrb[0].mxu0
      %6079 = vmatprep.mubr.f32.mxu0 0.0
      %6080 = vmatmul.mubr.f32.gmra.mrb[0].mxu0 %v5936
      %v6081 = vpop.f32.mrb[0].mxu0
      %v6082 = vadd.f32 0.0, %v6081
      %v6083 = vpop.f32.mrb[0].mxu0
      %6084 = vmatprep.mubr.f32.mxu0 0.0
      %6085 = vmatmul.mubr.f32.gmra.mrb[0].mxu0 %v5939
      %v6086 = vpop.f32.mrb[0].mxu0
      %v6087 = vadd.f32 0.0, %v6086
      %v6088 = vpop.f32.mrb[0].mxu0
      %6089 = vmatprep.mubr.f32.mxu0 0.0
      %6090 = vmatmul.mubr.f32.gmra.mrb[0].mxu0 %v5942
      %v6091 = vpop.f32.mrb[0].mxu0
      %v6092 = vadd.f32 0.0, %v6091
      %v6093 = vpop.f32.mrb[0].mxu0
      %6094 = vmatprep.mubr.f32.mxu0 0.0
      %6095 = vmatmul.mubr.f32.gmra.mrb[0].mxu0 %v5945
      %v6096 = vpop.f32.mrb[0].mxu0
      %v6097 = vadd.f32 0.0, %v6096
      %v6098 = vpop.f32.mrb[0].mxu0
      %6099 = vmatprep.mubr.f32.mxu0 0.0
      %6100 = vmatmul.mubr.f32.gmra.mrb[0].mxu0 %v5948
      %v6101 = vpop.f32.mrb[0].mxu0
      %v6102 = vadd.f32 0.0, %v6101
      %v6103 = vpop.f32.mrb[0].mxu0
      %6104 = vmatprep.mubr.f32.mxu0 0.0
      %6105 = vmatmul.mubr.f32.gmra.mrb[0].mxu0 %v5951
      %v6106 = vpop.f32.mrb[0].mxu0
      %v6107 = vadd.f32 0.0, %v6106
      %v6108 = vpop.f32.mrb[0].mxu0
      %6109 = vmatprep.mubr.f32.mxu0 0.0
      %6110 = vmatmul.mubr.f32.gmra.mrb[0].mxu0 %v5954
      %v6111 = vpop.f32.mrb[0].mxu0
      %v6112 = vadd.f32 0.0, %v6111
      %v6113 = vpop.f32.mrb[0].mxu0
      %6114 = vmatprep.mubr.f32.mxu0 0.0
      %6115 = vmatmul.mubr.f32.gmra.mrb[0].mxu0 %v5957
      %v6116 = vpop.f32.mrb[0].mxu0
      %v6117 = vadd.f32 0.0, %v6116
      %v6118 = vpop.f32.mrb[0].mxu0
      %6119 = vmatprep.mubr.f32.mxu0 0.0
      %6120 = vmatmul.mubr.f32.gmra.mrb[0].mxu0 %v5960
      %v6121 = vpop.f32.mrb[0].mxu0
      %v6122 = vadd.f32 0.0, %v6121
      %v6123 = vpop.f32.mrb[0].mxu0
      %6124 = vmatprep.mubr.f32.mxu0 0.0
      %6125 = vmatmul.mubr.f32.gmra.mrb[0].mxu0 %v5963
      %v6126 = vpop.f32.mrb[0].mxu0
      %v6127 = vadd.f32 0.0, %v6126
      %v6128 = vpop.f32.mrb[0].mxu0
      %6129 = vmatprep.mubr.f32.mxu0 0.0
      %6130 = vmatmul.mubr.f32.gmra.mrb[0].mxu0 %v5966
      %v6131 = vpop.f32.mrb[0].mxu0
      %v6132 = vadd.f32 0.0, %v6131
      %v6133 = vpop.f32.mrb[0].mxu0
      %6134 = vmatprep.mubr.f32.mxu0 0.0
      %6135 = vmatmul.mubr.f32.gmra.mrb[0].mxu0 %v5969
      %v6136 = vpop.f32.mrb[0].mxu0
      %v6137 = vadd.f32 0.0, %v6136
      %v6138 = vpop.f32.mrb[0].mxu0
      %6139 = vmatprep.mubr.f32.mxu0 0.0
      %6140 = vmatmul.mubr.f32.gmra.mrb[0].mxu0 %v5972
      %v6141 = vpop.f32.mrb[0].mxu0
      %v6142 = vadd.f32 0.0, %v6141
      %v6143 = vpop.f32.mrb[0].mxu0
      %6144 = vmatprep.mubr.f32.mxu0 0.0
      %6145 = vmatmul.mubr.f32.gmra.mrb[0].mxu0 %v5975
      %v6146 = vpop.f32.mrb[0].mxu0
      %v6147 = vadd.f32 0.0, %v6146
      %v6148 = vpop.f32.mrb[0].mxu0
      %6149 = vmatprep.mubr.f32.mxu0 0.0
      %6150 = vmatmul.mubr.f32.gmra.mrb[0].mxu0 %v5978
      %v6151 = vpop.f32.mrb[0].mxu0
      %v6152 = vadd.f32 0.0, %v6151
      %v6153 = vpop.f32.mrb[0].mxu0
      %6154 = vmatprep.mubr.f32.mxu0 0.0
      %6155 = vmatmul.mubr.f32.gmra.mrb[0].mxu0 %v5981
      %v6156 = vpop.f32.mrb[0].mxu0
      %v6157 = vadd.f32 0.0, %v6156
      %v6158 = vpop.f32.mrb[0].mxu0
      %6159 = vmatprep.mubr.f32.mxu0 0.0
      %6160 = vmatmul.mubr.f32.gmra.mrb[0].mxu0 %v5984
      %v6161 = vpop.f32.mrb[0].mxu0
      %v6162 = vadd.f32 0.0, %v6161
      %v6163 = vpop.f32.mrb[0].mxu0
      %6164 = vmatprep.mubr.f32.mxu0 0.0
      %6165 = vmatmul.mubr.f32.gmra.mrb[0].mxu0 %v5987
      %v6166 = vpop.f32.mrb[0].mxu0
      %v6167 = vadd.f32 0.0, %v6166
      %v6168 = vpop.f32.mrb[0].mxu0
      %6169 = vmatprep.mubr.f32.mxu0 0.0
      %6170 = vmatmul.mubr.f32.gmra.mrb[0].mxu0 %v5990
      %v6171 = vpop.f32.mrb[0].mxu0
      %v6172 = vadd.f32 0.0, %v6171
      %v6173 = vpop.f32.mrb[0].mxu0
      %6174 = vmatprep.mubr.f32.mxu0 0.0
      %6175 = vmatmul.mubr.f32.gmra.mrb[0].mxu0 %v5993
      %v6176 = vpop.f32.mrb[0].mxu0
      %v6177 = vadd.f32 0.0, %v6176
      %v6178 = vpop.f32.mrb[0].mxu0
      %6179 = vdwg.mxu0
      %v6180 = vadd.f32 %v5874, %v6062
      %v6181 = vadd.f32 %v5875, %v6067
      %v6182 = vadd.f32 %v5876, %v6072
      %v6183 = vadd.f32 %v5877, %v6077
      %v6184 = vadd.f32 %v5878, %v6082
      %v6185 = vadd.f32 %v5879, %v6087
      %v6186 = vadd.f32 %v5880, %v6092
      %v6187 = vadd.f32 %v5881, %v6097
      %v6188 = vadd.f32 %v5882, %v6102
      %v6189 = vadd.f32 %v5883, %v6107
      %v6190 = vadd.f32 %v5884, %v6112
      %v6191 = vadd.f32 %v5885, %v6117
      %v6192 = vadd.f32 %v5886, %v6122
      %v6193 = vadd.f32 %v5887, %v6127
      %v6194 = vadd.f32 %v5888, %v6132
      %v6195 = vadd.f32 %v5889, %v6137
      %v6196 = vadd.f32 %v5890, %v6142
      %v6197 = vadd.f32 %v5891, %v6147
      %v6198 = vadd.f32 %v5892, %v6152
      %v6199 = vadd.f32 %v5893, %v6157
      %v6200 = vadd.f32 %v5894, %v6162
      %v6201 = vadd.f32 %v5895, %v6167
      %v6202 = vadd.f32 %v5896, %v6172
      %v6203 = vadd.f32 %v5897, %v6177
      %v6204 = vld [vmem:[%s4] sm:$0x1]
      %v6206 = vlaneseq
      %v6207 = vshrl.u32 %v6206, 7
      %v6208 = vsub.s32 0, %v6207
      %v6209 = vrot.slane %v6204, %v6208
      %v6211 = vadd.f32 %v6180, %v6209
      %v6212 = vadd.f32 %v6181, %v6209
      %v6213 = vadd.f32 %v6182, %v6209
      %v6214 = vadd.f32 %v6183, %v6209
      %v6215 = vadd.f32 %v6184, %v6209
      %v6216 = vadd.f32 %v6185, %v6209
      %v6217 = vadd.f32 %v6186, %v6209
      %v6218 = vadd.f32 %v6187, %v6209
      %v6219 = vadd.f32 %v6188, %v6209
      %v6220 = vadd.f32 %v6189, %v6209
      %v6221 = vadd.f32 %v6190, %v6209
      %v6222 = vadd.f32 %v6191, %v6209
      %v6223 = vadd.f32 %v6192, %v6209
      %v6224 = vadd.f32 %v6193, %v6209
      %v6225 = vadd.f32 %v6194, %v6209
      %v6226 = vadd.f32 %v6195, %v6209
      %v6227 = vadd.f32 %v6196, %v6209
      %v6228 = vadd.f32 %v6197, %v6209
      %v6229 = vadd.f32 %v6198, %v6209
      %v6230 = vadd.f32 %v6199, %v6209
      %v6231 = vadd.f32 %v6200, %v6209
      %v6232 = vadd.f32 %v6201, %v6209
      %v6233 = vadd.f32 %v6202, %v6209
      %v6234 = vadd.f32 %v6203, %v6209
      %v6235 = vmax.f32 %v6211, 0.0
      %v6236 = vmax.f32 %v6212, 0.0
      %v6237 = vmax.f32 %v6213, 0.0
      %v6238 = vmax.f32 %v6214, 0.0
      %v6239 = vmax.f32 %v6215, 0.0
      %v6240 = vmax.f32 %v6216, 0.0
      %v6241 = vmax.f32 %v6217, 0.0
      %v6242 = vmax.f32 %v6218, 0.0
      %v6243 = vmax.f32 %v6219, 0.0
      %v6244 = vmax.f32 %v6220, 0.0
      %v6245 = vmax.f32 %v6221, 0.0
      %v6246 = vmax.f32 %v6222, 0.0
      %v6247 = vmax.f32 %v6223, 0.0
      %v6248 = vmax.f32 %v6224, 0.0
      %v6249 = vmax.f32 %v6225, 0.0
      %v6250 = vmax.f32 %v6226, 0.0
      %v6251 = vmax.f32 %v6227, 0.0
      %v6252 = vmax.f32 %v6228, 0.0
      %v6253 = vmax.f32 %v6229, 0.0
      %v6254 = vmax.f32 %v6230, 0.0
      %v6255 = vmax.f32 %v6231, 0.0
      %v6256 = vmax.f32 %v6232, 0.0
      %v6257 = vmax.f32 %v6233, 0.0
      %v6258 = vmax.f32 %v6234, 0.0
      %6259 = vst.msk [vmem:[#allocation3] sm:$0xff] %vm3467, %v6235
      %6260 = vst.msk [vmem:[#allocation3 + $0x8] sm:$0xff] %vm3467, %v6236
      %6261 = vst.msk [vmem:[#allocation3 + $0x10] sm:$0xff] %vm3467, %v6237
      %6262 = vst.msk [vmem:[#allocation3 + $0x18] sm:$0xff] %vm3467, %v6238
      %6263 = vst.msk [vmem:[#allocation3 + $0x20] sm:$0xff] %vm3467, %v6239
      %6264 = vst.msk [vmem:[#allocation3 + $0x28] sm:$0xff] %vm3467, %v6240
      %6265 = vst.msk [vmem:[#allocation3 + $0x30] sm:$0xff] %vm3467, %v6241
      %6266 = vst.msk [vmem:[#allocation3 + $0x38] sm:$0xff] %vm3467, %v6242
      %6267 = vst.msk [vmem:[#allocation3 + $0x40] sm:$0xff] %vm3467, %v6243
      %6268 = vst.msk [vmem:[#allocation3 + $0x48] sm:$0xff] %vm3467, %v6244
      %6269 = vst.msk [vmem:[#allocation3 + $0x50] sm:$0xff] %vm3467, %v6245
      %6270 = vst.msk [vmem:[#allocation3 + $0x58] sm:$0xff] %vm3467, %v6246
      %6271 = vst.msk [vmem:[#allocation3 + $0x60] sm:$0xff] %vm3467, %v6247
      %6272 = vst.msk [vmem:[#allocation3 + $0x68] sm:$0xff] %vm3467, %v6248
      %6273 = vst.msk [vmem:[#allocation3 + $0x70] sm:$0xff] %vm3467, %v6249
      %6274 = vst.msk [vmem:[#allocation3 + $0x78] sm:$0xff] %vm3467, %v6250
      %6275 = vst.msk [vmem:[#allocation3 + $0x80] sm:$0xff] %vm3467, %v6251
      %6276 = vst.msk [vmem:[#allocation3 + $0x88] sm:$0xff] %vm3467, %v6252
      %6277 = vst.msk [vmem:[#allocation3 + $0x90] sm:$0xff] %vm3467, %v6253
      %6278 = vst.msk [vmem:[#allocation3 + $0x98] sm:$0xff] %vm3467, %v6254
      %6279 = vst.msk [vmem:[#allocation3 + $0xa0] sm:$0xff] %vm3467, %v6255
      %6280 = vst.msk [vmem:[#allocation3 + $0xa8] sm:$0xff] %vm3467, %v6256
      %6281 = vst.msk [vmem:[#allocation3 + $0xb0] sm:$0xff] %vm3467, %v6257
      %6282 = vst.msk [vmem:[#allocation3 + $0xb8] sm:$0xff] %vm3467, %v6258
      %v6283 = vld [vmem:[#allocation3] ss:$2 sm:$0xff]
      %s6284 = scalar_lea.vmem [#allocation3], 16
      %v6285 = vld [vmem:[%s6284] ss:$2 sm:$0xff]
      %s6286 = scalar_lea.vmem [#allocation3], 32
      %v6287 = vld [vmem:[%s6286] ss:$2 sm:$0xff]
      %s6288 = scalar_lea.vmem [#allocation3], 48
      %v6289 = vld [vmem:[%s6288] ss:$2 sm:$0xff]
      %s6290 = scalar_lea.vmem [#allocation3], 64
      %v6291 = vld [vmem:[%s6290] ss:$2 sm:$0xff]
      %s6292 = scalar_lea.vmem [#allocation3], 80
      %v6293 = vld [vmem:[%s6292] ss:$2 sm:$0xff]
      %s6294 = scalar_lea.vmem [#allocation3], 96
      %v6295 = vld [vmem:[%s6294] ss:$2 sm:$0xff]
      %s6296 = scalar_lea.vmem [#allocation3], 112
      %v6297 = vld [vmem:[%s6296] ss:$2 sm:$0xff]
      %s6298 = scalar_lea.vmem [#allocation3], 128
      %v6299 = vld [vmem:[%s6298] ss:$2 sm:$0xff]
      %s6300 = scalar_lea.vmem [#allocation3], 144
      %v6301 = vld [vmem:[%s6300] ss:$2 sm:$0xff]
      %s6302 = scalar_lea.vmem [#allocation3], 160
      %v6303 = vld [vmem:[%s6302] ss:$2 sm:$0xff]
      %s6304 = scalar_lea.vmem [#allocation3], 176
      %v6305 = vld [vmem:[%s6304] ss:$2 sm:$0xff]
      %s6306 = scalar_lea.vmem [#allocation3], 1
      %v6307 = vld [vmem:[%s6306] ss:$2 sm:$0xff]
      %s6308 = scalar_lea.vmem [#allocation3], 17
      %v6309 = vld [vmem:[%s6308] ss:$2 sm:$0xff]
      %s6310 = scalar_lea.vmem [#allocation3], 33
      %v6311 = vld [vmem:[%s6310] ss:$2 sm:$0xff]
      %s6312 = scalar_lea.vmem [#allocation3], 49
      %v6313 = vld [vmem:[%s6312] ss:$2 sm:$0xff]
      %s6314 = scalar_lea.vmem [#allocation3], 65
      %v6315 = vld [vmem:[%s6314] ss:$2 sm:$0xff]
      %s6316 = scalar_lea.vmem [#allocation3], 81
      %v6317 = vld [vmem:[%s6316] ss:$2 sm:$0xff]
      %s6318 = scalar_lea.vmem [#allocation3], 97
      %v6319 = vld [vmem:[%s6318] ss:$2 sm:$0xff]
      %s6320 = scalar_lea.vmem [#allocation3], 113
      %v6321 = vld [vmem:[%s6320] ss:$2 sm:$0xff]
      %s6322 = scalar_lea.vmem [#allocation3], 129
      %v6323 = vld [vmem:[%s6322] ss:$2 sm:$0xff]
      %s6324 = scalar_lea.vmem [#allocation3], 145
      %v6325 = vld [vmem:[%s6324] ss:$2 sm:$0xff]
      %s6326 = scalar_lea.vmem [#allocation3], 161
      %v6327 = vld [vmem:[%s6326] ss:$2 sm:$0xff]
      %s6328 = scalar_lea.vmem [#allocation3], 177
      %v6329 = vld [vmem:[%s6328] ss:$2 sm:$0xff]
      %v6330 = vmax.f32 %v6283, %v6307
      %v6331 = vmax.f32 %v6285, %v6309
      %v6332 = vmax.f32 %v6287, %v6311
      %v6333 = vmax.f32 %v6289, %v6313
      %v6334 = vmax.f32 %v6291, %v6315
      %v6335 = vmax.f32 %v6293, %v6317
      %v6336 = vmax.f32 %v6295, %v6319
      %v6337 = vmax.f32 %v6297, %v6321
      %v6338 = vmax.f32 %v6299, %v6323
      %v6339 = vmax.f32 %v6301, %v6325
      %v6340 = vmax.f32 %v6303, %v6327
      %v6341 = vmax.f32 %v6305, %v6329
      %v6342 = vmax.f32 %v6330, %v6331
      %vm6343 = vcmask 62464
      %6344 = vst.msk [vmem:[%s226] sm:$0x3f] %vm6343, %v6342
      %v6345 = vmax.f32 %v6332, %v6333
      %s6346 = scalar_lea.vmem %s226, 8
      %6347 = vst.msk [vmem:[%s6346] sm:$0x3f] %vm6343, %v6345
      %v6348 = vmax.f32 %v6334, %v6335
      %s6349 = scalar_lea.vmem %s226, 16
      %6350 = vst.msk [vmem:[%s6349] sm:$0x3f] %vm6343, %v6348
      %v6351 = vmax.f32 %v6336, %v6337
      %s6352 = scalar_lea.vmem %s226, 24
      %6353 = vst.msk [vmem:[%s6352] sm:$0x3f] %vm6343, %v6351
      %v6354 = vmax.f32 %v6338, %v6339
      %s6355 = scalar_lea.vmem %s226, 32
      %6356 = vst.msk [vmem:[%s6355] sm:$0x3f] %vm6343, %v6354
      %v6357 = vmax.f32 %v6340, %v6341
      %s6358 = scalar_lea.vmem %s226, 40
      %6359 = vst.msk [vmem:[%s6358] sm:$0x3f] %vm6343, %v6357
      %p6360 = scmp.lt.s32.totalorder %s16, 1
      %s6361 = scalar_select %p6360, %s16, 1
      %s6362 = smul.addr %s6361, 6
      %s6363 = smul.addr %s6362, 8
      %s6364 = scalar_lea.vmem %s5, %s6363
      // Predicated region
      $region41: #{tpu_custom_call.1} parent=39 // pred_check
        %p6365 = pneg %p144
      $region42: #{tpu_custom_call.1} parent=39 // pred_check_branch
        %6367 = sbr.rel (%p6365) target = $region44
      $region43: #{tpu_custom_call.1} parent=39 // pred_region
        _
      $region44: #{tpu_custom_call.1} parent=39 // pred_fallthru
        _
    $region40: #{tpu_custom_call.1} parent=5 // pred_fallthru
      _
    %p6368 = scmp.le.s32.totalorder 2, %s11
    // Predicated region
    $region45: #{tpu_custom_call.1} parent=5 // pred_check
      %p6369 = pneg %p6368
    $region46: #{tpu_custom_call.1} parent=5 // pred_check_branch
      %6371 = sbr.rel (%p6369) target = $region48
    $region47: #{tpu_custom_call.1} parent=5 // pred_region
      %s6372 = ssub.s32 %s11, 2
      // Predicated region
      $region49: #{tpu_custom_call.1} parent=47 // pred_check
        %p6373 = pneg %p150
      $region50: #{tpu_custom_call.1} parent=47 // pred_check_branch
        %6375 = sbr.rel (%p6373) target = $region52
      $region51: #{tpu_custom_call.1} parent=47 // pred_region
        %p6376 = scmp.lt.s32.totalorder %s17, 1
        %s6377 = scalar_select %p6376, %s17, 1
        %s6378 = smul.addr %s6377, 6
        %s6379 = smul.addr %s6378, 8
        %s6380 = scalar_lea.vmem %s5, %s6379
      $region52: #{tpu_custom_call.1} parent=47 // pred_fallthru
        _
    $region48: #{tpu_custom_call.1} parent=5 // pred_fallthru
      _
  $region6: #{tpu_custom_call.1} parent=0 // loop_footer
    %s15 = sadd.s32 1, %s11
  $region7: #{tpu_custom_call.1} parent=0 // loop_footer_branch
    %10 = sbr.rel target = $region3
  $region8: #{tpu_custom_call.1} parent=0 // loop_exit
    _

</llo_original>
